<compile_context>
chip_gen: v6e
topology: v6e:2x2x1
jax: 0.10.0
libtpu: 0.0.40
codegen_flags: <defaults>
</compile_context>

<pallas_src>
import random

import jax
import jax.numpy as jnp
from jax import lax
from jax.experimental import pallas as pl
from jax.experimental.pallas import tpu as pltpu

# ---------------- model sizes (small, synthetic) ----------------
B = 4            # batch
E = 32           # embedding dim
H = 32           # hidden dim
SRC_VOCAB = 16
TGT_VOCAB = 16
T_SRC = 8        # source length
T_TGT = 8        # target length
V_PAD = 128      # decoder vocab padded to a full lane width (lane-dense stores)
NEG = -1e30      # bias on padded vocab lanes: they can never win the argmax

_VMEM = pl.BlockSpec(memory_space=pltpu.MemorySpace.VMEM)
_SMEM = pl.BlockSpec(memory_space=pltpu.MemorySpace.SMEM)


def _gates_to_hc(gates, c):
    """LSTM gate math, PyTorch gate order i, f, g, o."""
    i = jax.nn.sigmoid(gates[:, 0 * H:1 * H])
    f = jax.nn.sigmoid(gates[:, 1 * H:2 * H])
    g = jnp.tanh(gates[:, 2 * H:3 * H])
    o = jax.nn.sigmoid(gates[:, 3 * H:4 * H])
    c_new = f * c + i * g
    h_new = o * jnp.tanh(c_new)
    return h_new, c_new


# ---------------- fused encoder + decoder kernel ----------------
def seq2seq_kernel(tf_ref,          # SMEM (T_TGT,) int32 : teacher-forcing mask
                   src_oh_ref,      # (T_SRC*B, SRC_VOCAB) f32 one-hot source tokens
                   tgt_oh_ref,      # (T_TGT, B, V_PAD)    f32 one-hot target tokens
                   enc_emb_ref,     # (SRC_VOCAB, E)
                   enc_w_ih_ref,    # (E, 4H)
                   enc_w_hh_ref,    # (H, 4H)
                   enc_b_ref,       # (1, 4H)
                   dec_emb_ref,     # (V_PAD, E)   zero-padded rows beyond TGT_VOCAB
                   dec_w_cat_ref,   # (E+H, 4H)    = [dec_w_ih ; dec_w_hh]
                   dec_b_ref,       # (1, 4H)
                   dec_w_out_ref,   # (H, V_PAD)   zero-padded cols beyond TGT_VOCAB
                   dec_b_out_ref,   # (1, V_PAD)   NEG in padded lanes
                   out_ref):        # (T_TGT, B, V_PAD)
    f32 = jnp.float32

    # ---- encoder: hoist the input projection out of the recurrence (one big matmul) ----
    x_emb = jnp.dot(src_oh_ref[...], enc_emb_ref[...],
                    preferred_element_type=f32)                         # (T_SRC*B, E)
    x_proj = jnp.dot(x_emb, enc_w_ih_ref[...],
                     preferred_element_type=f32) + enc_b_ref[...]       # (T_SRC*B, 4H)

    enc_w_hh = enc_w_hh_ref[...]
    h = jnp.zeros((B, H), f32)
    c = jnp.zeros((B, H), f32)
    for t in range(T_SRC):                      # fully unrolled: 1 matmul per serial step
        gates = x_proj[t * B:(t + 1) * B, :] + jnp.dot(
            h, enc_w_hh, preferred_element_type=f32)
        h, c = _gates_to_hc(gates, c)

    # ---- decoder: fused per-step embed + LSTM cell + vocab projection + argmax ----
    dec_emb = dec_emb_ref[...]
    w_cat = dec_w_cat_ref[...]
    dec_b = dec_b_ref[...]
    w_out = dec_w_out_ref[...]
    b_out = dec_b_out_ref[...]

    lane = lax.broadcasted_iota(jnp.int32, (B, V_PAD), 1).astype(f32)   # 0..127 per lane

    out_ref[0] = jnp.zeros((B, V_PAD), f32)     # outputs[0] stays zero (as in the reference)
    x_oh = tgt_oh_ref[0]                        # first decoder input token = target[0]

    for t in range(1, T_TGT):                   # fully unrolled
        x_emb_t = jnp.dot(x_oh, dec_emb, preferred_element_type=f32)    # (B, E) embedding
        xz = jnp.concatenate([x_emb_t, h], axis=1)                      # (B, E+H)
        gates = jnp.dot(xz, w_cat, preferred_element_type=f32) + dec_b  # one fused MXU op
        h, c = _gates_to_hc(gates, c)
        logits = jnp.dot(h, w_out, preferred_element_type=f32) + b_out  # (B, V_PAD)
        out_ref[t] = logits

        # argmax over vocab lanes -> one-hot of best_guess (first-occurrence tie-break)
        m = jnp.max(logits, axis=1, keepdims=True)
        first = jnp.min(jnp.where(logits == m, lane, float(V_PAD)),
                        axis=1, keepdims=True)
        best_oh = (lane == first).astype(f32)                           # (B, V_PAD)

        # teacher forcing: x = target[t] if mask[t] else best_guess (exact 0/1 blend)
        w_tf = (tf_ref[t] != 0).astype(f32)
        x_oh = w_tf * tgt_oh_ref[t] + (1.0 - w_tf) * best_oh


# ---------------- wrapper: one jit, one pallas_call ----------------
@jax.jit
def seq2seq_forward(params, source, target, tf_mask):
    # tiny host-side prep ops, fused into the surrounding jit
    src_oh = jax.nn.one_hot(source.reshape(-1), SRC_VOCAB, dtype=jnp.float32)
    tgt_oh = jax.nn.one_hot(target, V_PAD, dtype=jnp.float32)            # (T_TGT, B, V_PAD)

    dec_w_cat = jnp.concatenate([params["dec_w_ih"], params["dec_w_hh"]], axis=0)
    dec_emb_pad = jnp.zeros((V_PAD, E), jnp.float32).at[:TGT_VOCAB].set(params["dec_emb"])
    dec_w_out_pad = jnp.zeros((H, V_PAD), jnp.float32).at[:, :TGT_VOCAB].set(
        params["dec_w_out"])
    dec_b_out_pad = jnp.full((1, V_PAD), NEG, jnp.float32).at[:, :TGT_VOCAB].set(
        params["dec_b_out"])

    out_pad = pl.pallas_call(
        seq2seq_kernel,
        out_shape=jax.ShapeDtypeStruct((T_TGT, B, V_PAD), jnp.float32),
        in_specs=[_SMEM] + [_VMEM] * 11,
        out_specs=_VMEM,
    )(tf_mask, src_oh, tgt_oh,
      params["enc_emb"], params["enc_w_ih"], params["enc_w_hh"], params["enc_b"],
      dec_emb_pad, dec_w_cat, params["dec_b"], dec_w_out_pad, dec_b_out_pad)

    return out_pad[:, :, :TGT_VOCAB]            # (T_TGT, B, TGT_VOCAB)


# ---------------- pure-JAX reference (same math, unfused) ----------------
def reference_forward(params, source, target, tf_mask):
    def lstm_cell(x, h, c, w_ih, w_hh, b):
        gates = x @ w_ih + h @ w_hh + b
        return _gates_to_hc(gates, c)

    enc_x = jnp.take(params["enc_emb"], source, axis=0)                  # (T_SRC, B, E)
    h = jnp.zeros((B, H), jnp.float32)
    c = jnp.zeros((B, H), jnp.float32)
    for t in range(T_SRC):
        h, c = lstm_cell(enc_x[t], h, c,
                         params["enc_w_ih"], params["enc_w_hh"], params["enc_b"])

    outputs = [jnp.zeros((B, TGT_VOCAB), jnp.float32)]
    x_tok = target[0]
    for t in range(1, T_TGT):
        x_emb = jnp.take(params["dec_emb"], x_tok, axis=0)
        h, c = lstm_cell(x_emb, h, c,
                         params["dec_w_ih"], params["dec_w_hh"], params["dec_b"])
        logits = h @ params["dec_w_out"] + params["dec_b_out"]
        outputs.append(logits)
        best = jnp.argmax(logits, axis=1).astype(target.dtype)
        x_tok = jnp.where(tf_mask[t] != 0, target[t], best)
    return jnp.stack(outputs, axis=0)


def init_params(key):
    ks = jax.random.split(key, 9)
    s = 0.1
    return {
        "enc_emb":   jax.random.normal(ks[0], (SRC_VOCAB, E), jnp.float32) * s,
        "enc_w_ih":  jax.random.normal(ks[1], (E, 4 * H), jnp.float32) * s,
        "enc_w_hh":  jax.random.normal(ks[2], (H, 4 * H), jnp.float32) * s,
        "enc_b":     jnp.zeros((1, 4 * H), jnp.float32),
        "dec_emb":   jax.random.normal(ks[3], (TGT_VOCAB, E), jnp.float32) * s,
        "dec_w_ih":  jax.random.normal(ks[4], (E, 4 * H), jnp.float32) * s,
        "dec_w_hh":  jax.random.normal(ks[5], (H, 4 * H), jnp.float32) * s,
        "dec_b":     jnp.zeros((1, 4 * H), jnp.float32),
        "dec_w_out": jax.random.normal(ks[6], (H, TGT_VOCAB), jnp.float32) * s,
        "dec_b_out": jnp.zeros((1, TGT_VOCAB), jnp.float32),
    }


if __name__ == "__main__":
    random.seed(0)                               # deterministic teacher-forcing decisions
    key = jax.random.PRNGKey(0)
    kp, ksrc, ktgt = jax.random.split(key, 3)

    params = init_params(kp)
    source = jax.random.randint(ksrc, (T_SRC, B), 0, SRC_VOCAB, dtype=jnp.int32)
    target = jax.random.randint(ktgt, (T_TGT, B), 0, TGT_VOCAB, dtype=jnp.int32)

    # teacher-forcing coin flips hoisted to a host-built mask (jit-safe randomness)
    tfr = 0.5
    tf_mask = jnp.array(
        [0] + [1 if random.random() < tfr else 0 for _ in range(1, T_TGT)],
        dtype=jnp.int32)

    out = seq2seq_forward(params, source, target, tf_mask)
    out = jax.block_until_ready(out)

    assert out.shape == (T_TGT, B, TGT_VOCAB)
    assert bool(jnp.all(out[0] == 0.0))

    ref = reference_forward(params, source, target, tf_mask)
    max_err = float(jnp.max(jnp.abs(out - ref)))
    assert jnp.allclose(out, ref, rtol=1e-3, atol=1e-3), f"max_err={max_err}"

    print("KERNEL_OK")
</pallas_src>

<mosaic_0001>
module attributes {stable_mosaic.version = 11 : i64} {
  func.func @seq2seq_kernel(%arg0: memref<8xi32, #tpu.memory_space<smem>>, %arg1: memref<32x16xf32, #tpu.memory_space<vmem>>, %arg2: memref<8x4x128xf32, #tpu.memory_space<vmem>>, %arg3: memref<16x32xf32, #tpu.memory_space<vmem>>, %arg4: memref<32x128xf32, #tpu.memory_space<vmem>>, %arg5: memref<32x128xf32, #tpu.memory_space<vmem>>, %arg6: memref<1x128xf32, #tpu.memory_space<vmem>>, %arg7: memref<128x32xf32, #tpu.memory_space<vmem>>, %arg8: memref<64x128xf32, #tpu.memory_space<vmem>>, %arg9: memref<1x128xf32, #tpu.memory_space<vmem>>, %arg10: memref<32x128xf32, #tpu.memory_space<vmem>>, %arg11: memref<1x128xf32, #tpu.memory_space<vmem>>, %arg12: memref<8x4x128xf32, #tpu.memory_space<vmem>>) attributes {dimension_semantics = [], scalar_prefetch = 0 : i64, scratch_operands = 0 : i64, tpu.core_type = #tpu.core_type<tc>} {
    %c0 = arith.constant 0 : index
    %c0_0 = arith.constant 0 : index
    %0 = vector.load %arg1[%c0, %c0_0] : memref<32x16xf32, #tpu.memory_space<vmem>>, vector<32x16xf32>
    %c0_1 = arith.constant 0 : index
    %c0_2 = arith.constant 0 : index
    %1 = vector.load %arg3[%c0_1, %c0_2] : memref<16x32xf32, #tpu.memory_space<vmem>>, vector<16x32xf32>
    %cst = arith.constant dense<0.000000e+00> : vector<32x32xf32>
    %2 = tpu.matmul %0, %1, %cst {dimension_numbers = #tpu.dot_dimension_numbers<[1], [0], [0], [1], [0, 0, 1, 1], [], []>} : vector<32x16xf32>, vector<16x32xf32>, vector<32x32xf32> -> vector<32x32xf32>
    %c0_3 = arith.constant 0 : index
    %c0_4 = arith.constant 0 : index
    %3 = vector.load %arg4[%c0_3, %c0_4] : memref<32x128xf32, #tpu.memory_space<vmem>>, vector<32x128xf32>
    %cst_5 = arith.constant dense<0.000000e+00> : vector<32x128xf32>
    %4 = tpu.matmul %2, %3, %cst_5 {dimension_numbers = #tpu.dot_dimension_numbers<[1], [0], [0], [1], [0, 0, 1, 1], [], []>} : vector<32x32xf32>, vector<32x128xf32>, vector<32x128xf32> -> vector<32x128xf32>
    %c0_6 = arith.constant 0 : index
    %c0_7 = arith.constant 0 : index
    %5 = vector.load %arg6[%c0_6, %c0_7] : memref<1x128xf32, #tpu.memory_space<vmem>>, vector<1x128xf32>
    %6 = vector.broadcast %5 : vector<1x128xf32> to vector<32x128xf32>
    %7 = arith.addf %4, %6 : vector<32x128xf32>
    %c0_8 = arith.constant 0 : index
    %c0_9 = arith.constant 0 : index
    %8 = vector.load %arg5[%c0_8, %c0_9] : memref<32x128xf32, #tpu.memory_space<vmem>>, vector<32x128xf32>
    %cst_10 = arith.constant 0.000000e+00 : f32
    %9 = vector.broadcast %cst_10 : f32 to vector<4x32xf32>
    %cst_11 = arith.constant 0.000000e+00 : f32
    %10 = vector.broadcast %cst_11 : f32 to vector<4x32xf32>
    %11 = vector.extract_strided_slice %7 {offsets = [0, 0], sizes = [4, 128], strides = [1, 1]} : vector<32x128xf32> to vector<4x128xf32>
    %cst_12 = arith.constant dense<0.000000e+00> : vector<4x128xf32>
    %12 = tpu.matmul %9, %8, %cst_12 {dimension_numbers = #tpu.dot_dimension_numbers<[1], [0], [0], [1], [0, 0, 1, 1], [], []>} : vector<4x32xf32>, vector<32x128xf32>, vector<4x128xf32> -> vector<4x128xf32>
    %13 = arith.addf %11, %12 : vector<4x128xf32>
    %14 = vector.extract_strided_slice %13 {offsets = [0, 0], sizes = [4, 32], strides = [1, 1]} : vector<4x128xf32> to vector<4x32xf32>
    %15 = arith.negf %14 : vector<4x32xf32>
    %16 = math.exp %15 : vector<4x32xf32>
    %cst_13 = arith.constant 1.000000e+00 : f32
    %17 = vector.broadcast %cst_13 : f32 to vector<4x32xf32>
    %18 = arith.addf %17, %16 : vector<4x32xf32>
    %19 = arith.divf %17, %18 : vector<4x32xf32>
    %20 = vector.extract_strided_slice %13 {offsets = [0, 32], sizes = [4, 32], strides = [1, 1]} : vector<4x128xf32> to vector<4x32xf32>
    %21 = arith.negf %20 : vector<4x32xf32>
    %22 = math.exp %21 : vector<4x32xf32>
    %cst_14 = arith.constant 1.000000e+00 : f32
    %23 = vector.broadcast %cst_14 : f32 to vector<4x32xf32>
    %24 = arith.addf %23, %22 : vector<4x32xf32>
    %25 = arith.divf %23, %24 : vector<4x32xf32>
    %26 = vector.extract_strided_slice %13 {offsets = [0, 64], sizes = [4, 32], strides = [1, 1]} : vector<4x128xf32> to vector<4x32xf32>
    %27 = math.tanh %26 : vector<4x32xf32>
    %28 = vector.extract_strided_slice %13 {offsets = [0, 96], sizes = [4, 32], strides = [1, 1]} : vector<4x128xf32> to vector<4x32xf32>
    %29 = arith.negf %28 : vector<4x32xf32>
    %30 = math.exp %29 : vector<4x32xf32>
    %cst_15 = arith.constant 1.000000e+00 : f32
    %31 = vector.broadcast %cst_15 : f32 to vector<4x32xf32>
    %32 = arith.addf %31, %30 : vector<4x32xf32>
    %33 = arith.divf %31, %32 : vector<4x32xf32>
    %34 = arith.mulf %25, %10 : vector<4x32xf32>
    %35 = arith.mulf %19, %27 : vector<4x32xf32>
    %36 = arith.addf %34, %35 : vector<4x32xf32>
    %37 = math.tanh %36 : vector<4x32xf32>
    %38 = arith.mulf %33, %37 : vector<4x32xf32>
    %39 = vector.extract_strided_slice %7 {offsets = [4, 0], sizes = [4, 128], strides = [1, 1]} : vector<32x128xf32> to vector<4x128xf32>
    %cst_16 = arith.constant dense<0.000000e+00> : vector<4x128xf32>
    %40 = tpu.matmul %38, %8, %cst_16 {dimension_numbers = #tpu.dot_dimension_numbers<[1], [0], [0], [1], [0, 0, 1, 1], [], []>} : vector<4x32xf32>, vector<32x128xf32>, vector<4x128xf32> -> vector<4x128xf32>
    %41 = arith.addf %39, %40 : vector<4x128xf32>
    %42 = vector.extract_strided_slice %41 {offsets = [0, 0], sizes = [4, 32], strides = [1, 1]} : vector<4x128xf32> to vector<4x32xf32>
    %43 = arith.negf %42 : vector<4x32xf32>
    %44 = math.exp %43 : vector<4x32xf32>
    %cst_17 = arith.constant 1.000000e+00 : f32
    %45 = vector.broadcast %cst_17 : f32 to vector<4x32xf32>
    %46 = arith.addf %45, %44 : vector<4x32xf32>
    %47 = arith.divf %45, %46 : vector<4x32xf32>
    %48 = vector.extract_strided_slice %41 {offsets = [0, 32], sizes = [4, 32], strides = [1, 1]} : vector<4x128xf32> to vector<4x32xf32>
    %49 = arith.negf %48 : vector<4x32xf32>
    %50 = math.exp %49 : vector<4x32xf32>
    %cst_18 = arith.constant 1.000000e+00 : f32
    %51 = vector.broadcast %cst_18 : f32 to vector<4x32xf32>
    %52 = arith.addf %51, %50 : vector<4x32xf32>
    %53 = arith.divf %51, %52 : vector<4x32xf32>
    %54 = vector.extract_strided_slice %41 {offsets = [0, 64], sizes = [4, 32], strides = [1, 1]} : vector<4x128xf32> to vector<4x32xf32>
    %55 = math.tanh %54 : vector<4x32xf32>
    %56 = vector.extract_strided_slice %41 {offsets = [0, 96], sizes = [4, 32], strides = [1, 1]} : vector<4x128xf32> to vector<4x32xf32>
    %57 = arith.negf %56 : vector<4x32xf32>
    %58 = math.exp %57 : vector<4x32xf32>
    %cst_19 = arith.constant 1.000000e+00 : f32
    %59 = vector.broadcast %cst_19 : f32 to vector<4x32xf32>
    %60 = arith.addf %59, %58 : vector<4x32xf32>
    %61 = arith.divf %59, %60 : vector<4x32xf32>
    %62 = arith.mulf %53, %36 : vector<4x32xf32>
    %63 = arith.mulf %47, %55 : vector<4x32xf32>
    %64 = arith.addf %62, %63 : vector<4x32xf32>
    %65 = math.tanh %64 : vector<4x32xf32>
    %66 = arith.mulf %61, %65 : vector<4x32xf32>
    %67 = vector.extract_strided_slice %7 {offsets = [8, 0], sizes = [4, 128], strides = [1, 1]} : vector<32x128xf32> to vector<4x128xf32>
    %cst_20 = arith.constant dense<0.000000e+00> : vector<4x128xf32>
    %68 = tpu.matmul %66, %8, %cst_20 {dimension_numbers = #tpu.dot_dimension_numbers<[1], [0], [0], [1], [0, 0, 1, 1], [], []>} : vector<4x32xf32>, vector<32x128xf32>, vector<4x128xf32> -> vector<4x128xf32>
    %69 = arith.addf %67, %68 : vector<4x128xf32>
    %70 = vector.extract_strided_slice %69 {offsets = [0, 0], sizes = [4, 32], strides = [1, 1]} : vector<4x128xf32> to vector<4x32xf32>
    %71 = arith.negf %70 : vector<4x32xf32>
    %72 = math.exp %71 : vector<4x32xf32>
    %cst_21 = arith.constant 1.000000e+00 : f32
    %73 = vector.broadcast %cst_21 : f32 to vector<4x32xf32>
    %74 = arith.addf %73, %72 : vector<4x32xf32>
    %75 = arith.divf %73, %74 : vector<4x32xf32>
    %76 = vector.extract_strided_slice %69 {offsets = [0, 32], sizes = [4, 32], strides = [1, 1]} : vector<4x128xf32> to vector<4x32xf32>
    %77 = arith.negf %76 : vector<4x32xf32>
    %78 = math.exp %77 : vector<4x32xf32>
    %cst_22 = arith.constant 1.000000e+00 : f32
    %79 = vector.broadcast %cst_22 : f32 to vector<4x32xf32>
    %80 = arith.addf %79, %78 : vector<4x32xf32>
    %81 = arith.divf %79, %80 : vector<4x32xf32>
    %82 = vector.extract_strided_slice %69 {offsets = [0, 64], sizes = [4, 32], strides = [1, 1]} : vector<4x128xf32> to vector<4x32xf32>
    %83 = math.tanh %82 : vector<4x32xf32>
    %84 = vector.extract_strided_slice %69 {offsets = [0, 96], sizes = [4, 32], strides = [1, 1]} : vector<4x128xf32> to vector<4x32xf32>
    %85 = arith.negf %84 : vector<4x32xf32>
    %86 = math.exp %85 : vector<4x32xf32>
    %cst_23 = arith.constant 1.000000e+00 : f32
    %87 = vector.broadcast %cst_23 : f32 to vector<4x32xf32>
    %88 = arith.addf %87, %86 : vector<4x32xf32>
    %89 = arith.divf %87, %88 : vector<4x32xf32>
    %90 = arith.mulf %81, %64 : vector<4x32xf32>
    %91 = arith.mulf %75, %83 : vector<4x32xf32>
    %92 = arith.addf %90, %91 : vector<4x32xf32>
    %93 = math.tanh %92 : vector<4x32xf32>
    %94 = arith.mulf %89, %93 : vector<4x32xf32>
    %95 = vector.extract_strided_slice %7 {offsets = [12, 0], sizes = [4, 128], strides = [1, 1]} : vector<32x128xf32> to vector<4x128xf32>
    %cst_24 = arith.constant dense<0.000000e+00> : vector<4x128xf32>
    %96 = tpu.matmul %94, %8, %cst_24 {dimension_numbers = #tpu.dot_dimension_numbers<[1], [0], [0], [1], [0, 0, 1, 1], [], []>} : vector<4x32xf32>, vector<32x128xf32>, vector<4x128xf32> -> vector<4x128xf32>
    %97 = arith.addf %95, %96 : vector<4x128xf32>
    %98 = vector.extract_strided_slice %97 {offsets = [0, 0], sizes = [4, 32], strides = [1, 1]} : vector<4x128xf32> to vector<4x32xf32>
    %99 = arith.negf %98 : vector<4x32xf32>
    %100 = math.exp %99 : vector<4x32xf32>
    %cst_25 = arith.constant 1.000000e+00 : f32
    %101 = vector.broadcast %cst_25 : f32 to vector<4x32xf32>
    %102 = arith.addf %101, %100 : vector<4x32xf32>
    %103 = arith.divf %101, %102 : vector<4x32xf32>
    %104 = vector.extract_strided_slice %97 {offsets = [0, 32], sizes = [4, 32], strides = [1, 1]} : vector<4x128xf32> to vector<4x32xf32>
    %105 = arith.negf %104 : vector<4x32xf32>
    %106 = math.exp %105 : vector<4x32xf32>
    %cst_26 = arith.constant 1.000000e+00 : f32
    %107 = vector.broadcast %cst_26 : f32 to vector<4x32xf32>
    %108 = arith.addf %107, %106 : vector<4x32xf32>
    %109 = arith.divf %107, %108 : vector<4x32xf32>
    %110 = vector.extract_strided_slice %97 {offsets = [0, 64], sizes = [4, 32], strides = [1, 1]} : vector<4x128xf32> to vector<4x32xf32>
    %111 = math.tanh %110 : vector<4x32xf32>
    %112 = vector.extract_strided_slice %97 {offsets = [0, 96], sizes = [4, 32], strides = [1, 1]} : vector<4x128xf32> to vector<4x32xf32>
    %113 = arith.negf %112 : vector<4x32xf32>
    %114 = math.exp %113 : vector<4x32xf32>
    %cst_27 = arith.constant 1.000000e+00 : f32
    %115 = vector.broadcast %cst_27 : f32 to vector<4x32xf32>
    %116 = arith.addf %115, %114 : vector<4x32xf32>
    %117 = arith.divf %115, %116 : vector<4x32xf32>
    %118 = arith.mulf %109, %92 : vector<4x32xf32>
    %119 = arith.mulf %103, %111 : vector<4x32xf32>
    %120 = arith.addf %118, %119 : vector<4x32xf32>
    %121 = math.tanh %120 : vector<4x32xf32>
    %122 = arith.mulf %117, %121 : vector<4x32xf32>
    %123 = vector.extract_strided_slice %7 {offsets = [16, 0], sizes = [4, 128], strides = [1, 1]} : vector<32x128xf32> to vector<4x128xf32>
    %cst_28 = arith.constant dense<0.000000e+00> : vector<4x128xf32>
    %124 = tpu.matmul %122, %8, %cst_28 {dimension_numbers = #tpu.dot_dimension_numbers<[1], [0], [0], [1], [0, 0, 1, 1], [], []>} : vector<4x32xf32>, vector<32x128xf32>, vector<4x128xf32> -> vector<4x128xf32>
    %125 = arith.addf %123, %124 : vector<4x128xf32>
    %126 = vector.extract_strided_slice %125 {offsets = [0, 0], sizes = [4, 32], strides = [1, 1]} : vector<4x128xf32> to vector<4x32xf32>
    %127 = arith.negf %126 : vector<4x32xf32>
    %128 = math.exp %127 : vector<4x32xf32>
    %cst_29 = arith.constant 1.000000e+00 : f32
    %129 = vector.broadcast %cst_29 : f32 to vector<4x32xf32>
    %130 = arith.addf %129, %128 : vector<4x32xf32>
    %131 = arith.divf %129, %130 : vector<4x32xf32>
    %132 = vector.extract_strided_slice %125 {offsets = [0, 32], sizes = [4, 32], strides = [1, 1]} : vector<4x128xf32> to vector<4x32xf32>
    %133 = arith.negf %132 : vector<4x32xf32>
    %134 = math.exp %133 : vector<4x32xf32>
    %cst_30 = arith.constant 1.000000e+00 : f32
    %135 = vector.broadcast %cst_30 : f32 to vector<4x32xf32>
    %136 = arith.addf %135, %134 : vector<4x32xf32>
    %137 = arith.divf %135, %136 : vector<4x32xf32>
    %138 = vector.extract_strided_slice %125 {offsets = [0, 64], sizes = [4, 32], strides = [1, 1]} : vector<4x128xf32> to vector<4x32xf32>
    %139 = math.tanh %138 : vector<4x32xf32>
    %140 = vector.extract_strided_slice %125 {offsets = [0, 96], sizes = [4, 32], strides = [1, 1]} : vector<4x128xf32> to vector<4x32xf32>
    %141 = arith.negf %140 : vector<4x32xf32>
    %142 = math.exp %141 : vector<4x32xf32>
    %cst_31 = arith.constant 1.000000e+00 : f32
    %143 = vector.broadcast %cst_31 : f32 to vector<4x32xf32>
    %144 = arith.addf %143, %142 : vector<4x32xf32>
    %145 = arith.divf %143, %144 : vector<4x32xf32>
    %146 = arith.mulf %137, %120 : vector<4x32xf32>
    %147 = arith.mulf %131, %139 : vector<4x32xf32>
    %148 = arith.addf %146, %147 : vector<4x32xf32>
    %149 = math.tanh %148 : vector<4x32xf32>
    %150 = arith.mulf %145, %149 : vector<4x32xf32>
    %151 = vector.extract_strided_slice %7 {offsets = [20, 0], sizes = [4, 128], strides = [1, 1]} : vector<32x128xf32> to vector<4x128xf32>
    %cst_32 = arith.constant dense<0.000000e+00> : vector<4x128xf32>
    %152 = tpu.matmul %150, %8, %cst_32 {dimension_numbers = #tpu.dot_dimension_numbers<[1], [0], [0], [1], [0, 0, 1, 1], [], []>} : vector<4x32xf32>, vector<32x128xf32>, vector<4x128xf32> -> vector<4x128xf32>
    %153 = arith.addf %151, %152 : vector<4x128xf32>
    %154 = vector.extract_strided_slice %153 {offsets = [0, 0], sizes = [4, 32], strides = [1, 1]} : vector<4x128xf32> to vector<4x32xf32>
    %155 = arith.negf %154 : vector<4x32xf32>
    %156 = math.exp %155 : vector<4x32xf32>
    %cst_33 = arith.constant 1.000000e+00 : f32
    %157 = vector.broadcast %cst_33 : f32 to vector<4x32xf32>
    %158 = arith.addf %157, %156 : vector<4x32xf32>
    %159 = arith.divf %157, %158 : vector<4x32xf32>
    %160 = vector.extract_strided_slice %153 {offsets = [0, 32], sizes = [4, 32], strides = [1, 1]} : vector<4x128xf32> to vector<4x32xf32>
    %161 = arith.negf %160 : vector<4x32xf32>
    %162 = math.exp %161 : vector<4x32xf32>
    %cst_34 = arith.constant 1.000000e+00 : f32
    %163 = vector.broadcast %cst_34 : f32 to vector<4x32xf32>
    %164 = arith.addf %163, %162 : vector<4x32xf32>
    %165 = arith.divf %163, %164 : vector<4x32xf32>
    %166 = vector.extract_strided_slice %153 {offsets = [0, 64], sizes = [4, 32], strides = [1, 1]} : vector<4x128xf32> to vector<4x32xf32>
    %167 = math.tanh %166 : vector<4x32xf32>
    %168 = vector.extract_strided_slice %153 {offsets = [0, 96], sizes = [4, 32], strides = [1, 1]} : vector<4x128xf32> to vector<4x32xf32>
    %169 = arith.negf %168 : vector<4x32xf32>
    %170 = math.exp %169 : vector<4x32xf32>
    %cst_35 = arith.constant 1.000000e+00 : f32
    %171 = vector.broadcast %cst_35 : f32 to vector<4x32xf32>
    %172 = arith.addf %171, %170 : vector<4x32xf32>
    %173 = arith.divf %171, %172 : vector<4x32xf32>
    %174 = arith.mulf %165, %148 : vector<4x32xf32>
    %175 = arith.mulf %159, %167 : vector<4x32xf32>
    %176 = arith.addf %174, %175 : vector<4x32xf32>
    %177 = math.tanh %176 : vector<4x32xf32>
    %178 = arith.mulf %173, %177 : vector<4x32xf32>
    %179 = vector.extract_strided_slice %7 {offsets = [24, 0], sizes = [4, 128], strides = [1, 1]} : vector<32x128xf32> to vector<4x128xf32>
    %cst_36 = arith.constant dense<0.000000e+00> : vector<4x128xf32>
    %180 = tpu.matmul %178, %8, %cst_36 {dimension_numbers = #tpu.dot_dimension_numbers<[1], [0], [0], [1], [0, 0, 1, 1], [], []>} : vector<4x32xf32>, vector<32x128xf32>, vector<4x128xf32> -> vector<4x128xf32>
    %181 = arith.addf %179, %180 : vector<4x128xf32>
    %182 = vector.extract_strided_slice %181 {offsets = [0, 0], sizes = [4, 32], strides = [1, 1]} : vector<4x128xf32> to vector<4x32xf32>
    %183 = arith.negf %182 : vector<4x32xf32>
    %184 = math.exp %183 : vector<4x32xf32>
    %cst_37 = arith.constant 1.000000e+00 : f32
    %185 = vector.broadcast %cst_37 : f32 to vector<4x32xf32>
    %186 = arith.addf %185, %184 : vector<4x32xf32>
    %187 = arith.divf %185, %186 : vector<4x32xf32>
    %188 = vector.extract_strided_slice %181 {offsets = [0, 32], sizes = [4, 32], strides = [1, 1]} : vector<4x128xf32> to vector<4x32xf32>
    %189 = arith.negf %188 : vector<4x32xf32>
    %190 = math.exp %189 : vector<4x32xf32>
    %cst_38 = arith.constant 1.000000e+00 : f32
    %191 = vector.broadcast %cst_38 : f32 to vector<4x32xf32>
    %192 = arith.addf %191, %190 : vector<4x32xf32>
    %193 = arith.divf %191, %192 : vector<4x32xf32>
    %194 = vector.extract_strided_slice %181 {offsets = [0, 64], sizes = [4, 32], strides = [1, 1]} : vector<4x128xf32> to vector<4x32xf32>
    %195 = math.tanh %194 : vector<4x32xf32>
    %196 = vector.extract_strided_slice %181 {offsets = [0, 96], sizes = [4, 32], strides = [1, 1]} : vector<4x128xf32> to vector<4x32xf32>
    %197 = arith.negf %196 : vector<4x32xf32>
    %198 = math.exp %197 : vector<4x32xf32>
    %cst_39 = arith.constant 1.000000e+00 : f32
    %199 = vector.broadcast %cst_39 : f32 to vector<4x32xf32>
    %200 = arith.addf %199, %198 : vector<4x32xf32>
    %201 = arith.divf %199, %200 : vector<4x32xf32>
    %202 = arith.mulf %193, %176 : vector<4x32xf32>
    %203 = arith.mulf %187, %195 : vector<4x32xf32>
    %204 = arith.addf %202, %203 : vector<4x32xf32>
    %205 = math.tanh %204 : vector<4x32xf32>
    %206 = arith.mulf %201, %205 : vector<4x32xf32>
    %207 = vector.extract_strided_slice %7 {offsets = [28, 0], sizes = [4, 128], strides = [1, 1]} : vector<32x128xf32> to vector<4x128xf32>
    %cst_40 = arith.constant dense<0.000000e+00> : vector<4x128xf32>
    %208 = tpu.matmul %206, %8, %cst_40 {dimension_numbers = #tpu.dot_dimension_numbers<[1], [0], [0], [1], [0, 0, 1, 1], [], []>} : vector<4x32xf32>, vector<32x128xf32>, vector<4x128xf32> -> vector<4x128xf32>
    %209 = arith.addf %207, %208 : vector<4x128xf32>
    %210 = vector.extract_strided_slice %209 {offsets = [0, 0], sizes = [4, 32], strides = [1, 1]} : vector<4x128xf32> to vector<4x32xf32>
    %211 = arith.negf %210 : vector<4x32xf32>
    %212 = math.exp %211 : vector<4x32xf32>
    %cst_41 = arith.constant 1.000000e+00 : f32
    %213 = vector.broadcast %cst_41 : f32 to vector<4x32xf32>
    %214 = arith.addf %213, %212 : vector<4x32xf32>
    %215 = arith.divf %213, %214 : vector<4x32xf32>
    %216 = vector.extract_strided_slice %209 {offsets = [0, 32], sizes = [4, 32], strides = [1, 1]} : vector<4x128xf32> to vector<4x32xf32>
    %217 = arith.negf %216 : vector<4x32xf32>
    %218 = math.exp %217 : vector<4x32xf32>
    %cst_42 = arith.constant 1.000000e+00 : f32
    %219 = vector.broadcast %cst_42 : f32 to vector<4x32xf32>
    %220 = arith.addf %219, %218 : vector<4x32xf32>
    %221 = arith.divf %219, %220 : vector<4x32xf32>
    %222 = vector.extract_strided_slice %209 {offsets = [0, 64], sizes = [4, 32], strides = [1, 1]} : vector<4x128xf32> to vector<4x32xf32>
    %223 = math.tanh %222 : vector<4x32xf32>
    %224 = vector.extract_strided_slice %209 {offsets = [0, 96], sizes = [4, 32], strides = [1, 1]} : vector<4x128xf32> to vector<4x32xf32>
    %225 = arith.negf %224 : vector<4x32xf32>
    %226 = math.exp %225 : vector<4x32xf32>
    %cst_43 = arith.constant 1.000000e+00 : f32
    %227 = vector.broadcast %cst_43 : f32 to vector<4x32xf32>
    %228 = arith.addf %227, %226 : vector<4x32xf32>
    %229 = arith.divf %227, %228 : vector<4x32xf32>
    %230 = arith.mulf %221, %204 : vector<4x32xf32>
    %231 = arith.mulf %215, %223 : vector<4x32xf32>
    %232 = arith.addf %230, %231 : vector<4x32xf32>
    %233 = math.tanh %232 : vector<4x32xf32>
    %234 = arith.mulf %229, %233 : vector<4x32xf32>
    %c0_44 = arith.constant 0 : index
    %c0_45 = arith.constant 0 : index
    %235 = vector.load %arg7[%c0_44, %c0_45] : memref<128x32xf32, #tpu.memory_space<vmem>>, vector<128x32xf32>
    %c0_46 = arith.constant 0 : index
    %c0_47 = arith.constant 0 : index
    %236 = vector.load %arg8[%c0_46, %c0_47] : memref<64x128xf32, #tpu.memory_space<vmem>>, vector<64x128xf32>
    %c0_48 = arith.constant 0 : index
    %c0_49 = arith.constant 0 : index
    %237 = vector.load %arg9[%c0_48, %c0_49] : memref<1x128xf32, #tpu.memory_space<vmem>>, vector<1x128xf32>
    %c0_50 = arith.constant 0 : index
    %c0_51 = arith.constant 0 : index
    %238 = vector.load %arg10[%c0_50, %c0_51] : memref<32x128xf32, #tpu.memory_space<vmem>>, vector<32x128xf32>
    %c0_52 = arith.constant 0 : index
    %c0_53 = arith.constant 0 : index
    %239 = vector.load %arg11[%c0_52, %c0_53] : memref<1x128xf32, #tpu.memory_space<vmem>>, vector<1x128xf32>
    %240 = tpu.iota {dimensions = array<i32: 1>} : vector<4x128xi32>
    %241 = arith.sitofp %240 : vector<4x128xi32> to vector<4x128xf32>
    %cst_54 = arith.constant 0.000000e+00 : f32
    %242 = vector.broadcast %cst_54 : f32 to vector<4x128xf32>
    %c0_55 = arith.constant 0 : index
    %c0_56 = arith.constant 0 : index
    %c0_57 = arith.constant 0 : index
    %243 = vector.load %arg12[%c0_55, %c0_56, %c0_57] : memref<8x4x128xf32, #tpu.memory_space<vmem>>, vector<1x4x128xf32>
    %244 = vector.shape_cast %243 : vector<1x4x128xf32> to vector<4x128xf32>
    %245 = vector.shape_cast %242 : vector<4x128xf32> to vector<1x4x128xf32>
    tpu.vector_store %arg12[%c0_55, %c0_56, %c0_57], %245 {strides = array<i32>} : memref<8x4x128xf32, #tpu.memory_space<vmem>>, vector<1x4x128xf32>,
    %c0_58 = arith.constant 0 : index
    %c0_59 = arith.constant 0 : index
    %c0_60 = arith.constant 0 : index
    %246 = vector.load %arg2[%c0_58, %c0_59, %c0_60] : memref<8x4x128xf32, #tpu.memory_space<vmem>>, vector<1x4x128xf32>
    %247 = vector.shape_cast %246 : vector<1x4x128xf32> to vector<4x128xf32>
    %cst_61 = arith.constant dense<0.000000e+00> : vector<4x32xf32>
    %248 = tpu.matmul %247, %235, %cst_61 {dimension_numbers = #tpu.dot_dimension_numbers<[1], [0], [0], [1], [0, 0, 1, 1], [], []>} : vector<4x128xf32>, vector<128x32xf32>, vector<4x32xf32> -> vector<4x32xf32>
    %249 = tpu.concatenate %248, %234 in 1 : vector<4x32xf32>, vector<4x32xf32> -> vector<4x64xf32>
    %cst_62 = arith.constant dense<0.000000e+00> : vector<4x128xf32>
    %250 = tpu.matmul %249, %236, %cst_62 {dimension_numbers = #tpu.dot_dimension_numbers<[1], [0], [0], [1], [0, 0, 1, 1], [], []>} : vector<4x64xf32>, vector<64x128xf32>, vector<4x128xf32> -> vector<4x128xf32>
    %251 = vector.broadcast %237 : vector<1x128xf32> to vector<4x128xf32>
    %252 = arith.addf %250, %251 : vector<4x128xf32>
    %253 = vector.extract_strided_slice %252 {offsets = [0, 0], sizes = [4, 32], strides = [1, 1]} : vector<4x128xf32> to vector<4x32xf32>
    %254 = arith.negf %253 : vector<4x32xf32>
    %255 = math.exp %254 : vector<4x32xf32>
    %cst_63 = arith.constant 1.000000e+00 : f32
    %256 = vector.broadcast %cst_63 : f32 to vector<4x32xf32>
    %257 = arith.addf %256, %255 : vector<4x32xf32>
    %258 = arith.divf %256, %257 : vector<4x32xf32>
    %259 = vector.extract_strided_slice %252 {offsets = [0, 32], sizes = [4, 32], strides = [1, 1]} : vector<4x128xf32> to vector<4x32xf32>
    %260 = arith.negf %259 : vector<4x32xf32>
    %261 = math.exp %260 : vector<4x32xf32>
    %cst_64 = arith.constant 1.000000e+00 : f32
    %262 = vector.broadcast %cst_64 : f32 to vector<4x32xf32>
    %263 = arith.addf %262, %261 : vector<4x32xf32>
    %264 = arith.divf %262, %263 : vector<4x32xf32>
    %265 = vector.extract_strided_slice %252 {offsets = [0, 64], sizes = [4, 32], strides = [1, 1]} : vector<4x128xf32> to vector<4x32xf32>
    %266 = math.tanh %265 : vector<4x32xf32>
    %267 = vector.extract_strided_slice %252 {offsets = [0, 96], sizes = [4, 32], strides = [1, 1]} : vector<4x128xf32> to vector<4x32xf32>
    %268 = arith.negf %267 : vector<4x32xf32>
    %269 = math.exp %268 : vector<4x32xf32>
    %cst_65 = arith.constant 1.000000e+00 : f32
    %270 = vector.broadcast %cst_65 : f32 to vector<4x32xf32>
    %271 = arith.addf %270, %269 : vector<4x32xf32>
    %272 = arith.divf %270, %271 : vector<4x32xf32>
    %273 = arith.mulf %264, %232 : vector<4x32xf32>
    %274 = arith.mulf %258, %266 : vector<4x32xf32>
    %275 = arith.addf %273, %274 : vector<4x32xf32>
    %276 = math.tanh %275 : vector<4x32xf32>
    %277 = arith.mulf %272, %276 : vector<4x32xf32>
    %cst_66 = arith.constant dense<0.000000e+00> : vector<4x128xf32>
    %278 = tpu.matmul %277, %238, %cst_66 {dimension_numbers = #tpu.dot_dimension_numbers<[1], [0], [0], [1], [0, 0, 1, 1], [], []>} : vector<4x32xf32>, vector<32x128xf32>, vector<4x128xf32> -> vector<4x128xf32>
    %279 = vector.broadcast %239 : vector<1x128xf32> to vector<4x128xf32>
    %280 = arith.addf %278, %279 : vector<4x128xf32>
    %c1 = arith.constant 1 : index
    %c0_67 = arith.constant 0 : index
    %c0_68 = arith.constant 0 : index
    %281 = vector.load %arg12[%c1, %c0_67, %c0_68] : memref<8x4x128xf32, #tpu.memory_space<vmem>>, vector<1x4x128xf32>
    %282 = vector.shape_cast %281 : vector<1x4x128xf32> to vector<4x128xf32>
    %283 = vector.shape_cast %280 : vector<4x128xf32> to vector<1x4x128xf32>
    tpu.vector_store %arg12[%c1, %c0_67, %c0_68], %283 {strides = array<i32>} : memref<8x4x128xf32, #tpu.memory_space<vmem>>, vector<1x4x128xf32>,
    %cst_69 = arith.constant dense<0xFF800000> : vector<4xf32>
    %284 = vector.multi_reduction <maximumf>, %280, %cst_69 [1] : vector<4x128xf32> to vector<4xf32>
    %285 = vector.shape_cast %284 : vector<4xf32> to vector<4x1xf32>
    %286 = vector.broadcast %285 : vector<4x1xf32> to vector<4x128xf32>
    %287 = arith.cmpf oeq, %280, %286 : vector<4x128xf32>
    %cst_70 = arith.constant 1.280000e+02 : f32
    %288 = vector.broadcast %cst_70 : f32 to vector<4x128xf32>
    %289 = arith.select %287, %241, %288 : vector<4x128xi1>, vector<4x128xf32>
    %cst_71 = arith.constant dense<0x7F800000> : vector<4xf32>
    %290 = vector.multi_reduction <minimumf>, %289, %cst_71 [1] : vector<4x128xf32> to vector<4xf32>
    %291 = vector.shape_cast %290 : vector<4xf32> to vector<4x1xf32>
    %292 = vector.broadcast %291 : vector<4x1xf32> to vector<4x128xf32>
    %293 = arith.cmpf oeq, %241, %292 : vector<4x128xf32>
    %294 = arith.extui %293 : vector<4x128xi1> to vector<4x128xi32>
    %295 = arith.sitofp %294 : vector<4x128xi32> to vector<4x128xf32>
    %c1_72 = arith.constant 1 : index
    %296 = memref.load %arg0[%c1_72] : memref<8xi32, #tpu.memory_space<smem>>
    %c0_i32 = arith.constant 0 : i32
    %297 = arith.cmpi ne, %296, %c0_i32 : i32
    %298 = arith.extui %297 : i1 to i32
    %299 = arith.sitofp %298 : i32 to f32
    %c1_73 = arith.constant 1 : index
    %c0_74 = arith.constant 0 : index
    %c0_75 = arith.constant 0 : index
    %300 = vector.load %arg2[%c1_73, %c0_74, %c0_75] : memref<8x4x128xf32, #tpu.memory_space<vmem>>, vector<1x4x128xf32>
    %301 = vector.shape_cast %300 : vector<1x4x128xf32> to vector<4x128xf32>
    %302 = vector.broadcast %299 : f32 to vector<4x128xf32>
    %303 = arith.mulf %302, %301 : vector<4x128xf32>
    %cst_76 = arith.constant 1.000000e+00 : f32
    %304 = arith.subf %cst_76, %299 : f32
    %305 = vector.broadcast %304 : f32 to vector<4x128xf32>
    %306 = arith.mulf %305, %295 : vector<4x128xf32>
    %307 = arith.addf %303, %306 : vector<4x128xf32>
    %cst_77 = arith.constant dense<0.000000e+00> : vector<4x32xf32>
    %308 = tpu.matmul %307, %235, %cst_77 {dimension_numbers = #tpu.dot_dimension_numbers<[1], [0], [0], [1], [0, 0, 1, 1], [], []>} : vector<4x128xf32>, vector<128x32xf32>, vector<4x32xf32> -> vector<4x32xf32>
    %309 = tpu.concatenate %308, %277 in 1 : vector<4x32xf32>, vector<4x32xf32> -> vector<4x64xf32>
    %cst_78 = arith.constant dense<0.000000e+00> : vector<4x128xf32>
    %310 = tpu.matmul %309, %236, %cst_78 {dimension_numbers = #tpu.dot_dimension_numbers<[1], [0], [0], [1], [0, 0, 1, 1], [], []>} : vector<4x64xf32>, vector<64x128xf32>, vector<4x128xf32> -> vector<4x128xf32>
    %311 = vector.broadcast %237 : vector<1x128xf32> to vector<4x128xf32>
    %312 = arith.addf %310, %311 : vector<4x128xf32>
    %313 = vector.extract_strided_slice %312 {offsets = [0, 0], sizes = [4, 32], strides = [1, 1]} : vector<4x128xf32> to vector<4x32xf32>
    %314 = arith.negf %313 : vector<4x32xf32>
    %315 = math.exp %314 : vector<4x32xf32>
    %cst_79 = arith.constant 1.000000e+00 : f32
    %316 = vector.broadcast %cst_79 : f32 to vector<4x32xf32>
    %317 = arith.addf %316, %315 : vector<4x32xf32>
    %318 = arith.divf %316, %317 : vector<4x32xf32>
    %319 = vector.extract_strided_slice %312 {offsets = [0, 32], sizes = [4, 32], strides = [1, 1]} : vector<4x128xf32> to vector<4x32xf32>
    %320 = arith.negf %319 : vector<4x32xf32>
    %321 = math.exp %320 : vector<4x32xf32>
    %cst_80 = arith.constant 1.000000e+00 : f32
    %322 = vector.broadcast %cst_80 : f32 to vector<4x32xf32>
    %323 = arith.addf %322, %321 : vector<4x32xf32>
    %324 = arith.divf %322, %323 : vector<4x32xf32>
    %325 = vector.extract_strided_slice %312 {offsets = [0, 64], sizes = [4, 32], strides = [1, 1]} : vector<4x128xf32> to vector<4x32xf32>
    %326 = math.tanh %325 : vector<4x32xf32>
    %327 = vector.extract_strided_slice %312 {offsets = [0, 96], sizes = [4, 32], strides = [1, 1]} : vector<4x128xf32> to vector<4x32xf32>
    %328 = arith.negf %327 : vector<4x32xf32>
    %329 = math.exp %328 : vector<4x32xf32>
    %cst_81 = arith.constant 1.000000e+00 : f32
    %330 = vector.broadcast %cst_81 : f32 to vector<4x32xf32>
    %331 = arith.addf %330, %329 : vector<4x32xf32>
    %332 = arith.divf %330, %331 : vector<4x32xf32>
    %333 = arith.mulf %324, %275 : vector<4x32xf32>
    %334 = arith.mulf %318, %326 : vector<4x32xf32>
    %335 = arith.addf %333, %334 : vector<4x32xf32>
    %336 = math.tanh %335 : vector<4x32xf32>
    %337 = arith.mulf %332, %336 : vector<4x32xf32>
    %cst_82 = arith.constant dense<0.000000e+00> : vector<4x128xf32>
    %338 = tpu.matmul %337, %238, %cst_82 {dimension_numbers = #tpu.dot_dimension_numbers<[1], [0], [0], [1], [0, 0, 1, 1], [], []>} : vector<4x32xf32>, vector<32x128xf32>, vector<4x128xf32> -> vector<4x128xf32>
    %339 = vector.broadcast %239 : vector<1x128xf32> to vector<4x128xf32>
    %340 = arith.addf %338, %339 : vector<4x128xf32>
    %c2 = arith.constant 2 : index
    %c0_83 = arith.constant 0 : index
    %c0_84 = arith.constant 0 : index
    %341 = vector.load %arg12[%c2, %c0_83, %c0_84] : memref<8x4x128xf32, #tpu.memory_space<vmem>>, vector<1x4x128xf32>
    %342 = vector.shape_cast %341 : vector<1x4x128xf32> to vector<4x128xf32>
    %343 = vector.shape_cast %340 : vector<4x128xf32> to vector<1x4x128xf32>
    tpu.vector_store %arg12[%c2, %c0_83, %c0_84], %343 {strides = array<i32>} : memref<8x4x128xf32, #tpu.memory_space<vmem>>, vector<1x4x128xf32>,
    %cst_85 = arith.constant dense<0xFF800000> : vector<4xf32>
    %344 = vector.multi_reduction <maximumf>, %340, %cst_85 [1] : vector<4x128xf32> to vector<4xf32>
    %345 = vector.shape_cast %344 : vector<4xf32> to vector<4x1xf32>
    %346 = vector.broadcast %345 : vector<4x1xf32> to vector<4x128xf32>
    %347 = arith.cmpf oeq, %340, %346 : vector<4x128xf32>
    %cst_86 = arith.constant 1.280000e+02 : f32
    %348 = vector.broadcast %cst_86 : f32 to vector<4x128xf32>
    %349 = arith.select %347, %241, %348 : vector<4x128xi1>, vector<4x128xf32>
    %cst_87 = arith.constant dense<0x7F800000> : vector<4xf32>
    %350 = vector.multi_reduction <minimumf>, %349, %cst_87 [1] : vector<4x128xf32> to vector<4xf32>
    %351 = vector.shape_cast %350 : vector<4xf32> to vector<4x1xf32>
    %352 = vector.broadcast %351 : vector<4x1xf32> to vector<4x128xf32>
    %353 = arith.cmpf oeq, %241, %352 : vector<4x128xf32>
    %354 = arith.extui %353 : vector<4x128xi1> to vector<4x128xi32>
    %355 = arith.sitofp %354 : vector<4x128xi32> to vector<4x128xf32>
    %c2_88 = arith.constant 2 : index
    %356 = memref.load %arg0[%c2_88] : memref<8xi32, #tpu.memory_space<smem>>
    %c0_i32_89 = arith.constant 0 : i32
    %357 = arith.cmpi ne, %356, %c0_i32_89 : i32
    %358 = arith.extui %357 : i1 to i32
    %359 = arith.sitofp %358 : i32 to f32
    %c2_90 = arith.constant 2 : index
    %c0_91 = arith.constant 0 : index
    %c0_92 = arith.constant 0 : index
    %360 = vector.load %arg2[%c2_90, %c0_91, %c0_92] : memref<8x4x128xf32, #tpu.memory_space<vmem>>, vector<1x4x128xf32>
    %361 = vector.shape_cast %360 : vector<1x4x128xf32> to vector<4x128xf32>
    %362 = vector.broadcast %359 : f32 to vector<4x128xf32>
    %363 = arith.mulf %362, %361 : vector<4x128xf32>
    %cst_93 = arith.constant 1.000000e+00 : f32
    %364 = arith.subf %cst_93, %359 : f32
    %365 = vector.broadcast %364 : f32 to vector<4x128xf32>
    %366 = arith.mulf %365, %355 : vector<4x128xf32>
    %367 = arith.addf %363, %366 : vector<4x128xf32>
    %cst_94 = arith.constant dense<0.000000e+00> : vector<4x32xf32>
    %368 = tpu.matmul %367, %235, %cst_94 {dimension_numbers = #tpu.dot_dimension_numbers<[1], [0], [0], [1], [0, 0, 1, 1], [], []>} : vector<4x128xf32>, vector<128x32xf32>, vector<4x32xf32> -> vector<4x32xf32>
    %369 = tpu.concatenate %368, %337 in 1 : vector<4x32xf32>, vector<4x32xf32> -> vector<4x64xf32>
    %cst_95 = arith.constant dense<0.000000e+00> : vector<4x128xf32>
    %370 = tpu.matmul %369, %236, %cst_95 {dimension_numbers = #tpu.dot_dimension_numbers<[1], [0], [0], [1], [0, 0, 1, 1], [], []>} : vector<4x64xf32>, vector<64x128xf32>, vector<4x128xf32> -> vector<4x128xf32>
    %371 = vector.broadcast %237 : vector<1x128xf32> to vector<4x128xf32>
    %372 = arith.addf %370, %371 : vector<4x128xf32>
    %373 = vector.extract_strided_slice %372 {offsets = [0, 0], sizes = [4, 32], strides = [1, 1]} : vector<4x128xf32> to vector<4x32xf32>
    %374 = arith.negf %373 : vector<4x32xf32>
    %375 = math.exp %374 : vector<4x32xf32>
    %cst_96 = arith.constant 1.000000e+00 : f32
    %376 = vector.broadcast %cst_96 : f32 to vector<4x32xf32>
    %377 = arith.addf %376, %375 : vector<4x32xf32>
    %378 = arith.divf %376, %377 : vector<4x32xf32>
    %379 = vector.extract_strided_slice %372 {offsets = [0, 32], sizes = [4, 32], strides = [1, 1]} : vector<4x128xf32> to vector<4x32xf32>
    %380 = arith.negf %379 : vector<4x32xf32>
    %381 = math.exp %380 : vector<4x32xf32>
    %cst_97 = arith.constant 1.000000e+00 : f32
    %382 = vector.broadcast %cst_97 : f32 to vector<4x32xf32>
    %383 = arith.addf %382, %381 : vector<4x32xf32>
    %384 = arith.divf %382, %383 : vector<4x32xf32>
    %385 = vector.extract_strided_slice %372 {offsets = [0, 64], sizes = [4, 32], strides = [1, 1]} : vector<4x128xf32> to vector<4x32xf32>
    %386 = math.tanh %385 : vector<4x32xf32>
    %387 = vector.extract_strided_slice %372 {offsets = [0, 96], sizes = [4, 32], strides = [1, 1]} : vector<4x128xf32> to vector<4x32xf32>
    %388 = arith.negf %387 : vector<4x32xf32>
    %389 = math.exp %388 : vector<4x32xf32>
    %cst_98 = arith.constant 1.000000e+00 : f32
    %390 = vector.broadcast %cst_98 : f32 to vector<4x32xf32>
    %391 = arith.addf %390, %389 : vector<4x32xf32>
    %392 = arith.divf %390, %391 : vector<4x32xf32>
    %393 = arith.mulf %384, %335 : vector<4x32xf32>
    %394 = arith.mulf %378, %386 : vector<4x32xf32>
    %395 = arith.addf %393, %394 : vector<4x32xf32>
    %396 = math.tanh %395 : vector<4x32xf32>
    %397 = arith.mulf %392, %396 : vector<4x32xf32>
    %cst_99 = arith.constant dense<0.000000e+00> : vector<4x128xf32>
    %398 = tpu.matmul %397, %238, %cst_99 {dimension_numbers = #tpu.dot_dimension_numbers<[1], [0], [0], [1], [0, 0, 1, 1], [], []>} : vector<4x32xf32>, vector<32x128xf32>, vector<4x128xf32> -> vector<4x128xf32>
    %399 = vector.broadcast %239 : vector<1x128xf32> to vector<4x128xf32>
    %400 = arith.addf %398, %399 : vector<4x128xf32>
    %c3 = arith.constant 3 : index
    %c0_100 = arith.constant 0 : index
    %c0_101 = arith.constant 0 : index
    %401 = vector.load %arg12[%c3, %c0_100, %c0_101] : memref<8x4x128xf32, #tpu.memory_space<vmem>>, vector<1x4x128xf32>
    %402 = vector.shape_cast %401 : vector<1x4x128xf32> to vector<4x128xf32>
    %403 = vector.shape_cast %400 : vector<4x128xf32> to vector<1x4x128xf32>
    tpu.vector_store %arg12[%c3, %c0_100, %c0_101], %403 {strides = array<i32>} : memref<8x4x128xf32, #tpu.memory_space<vmem>>, vector<1x4x128xf32>,
    %cst_102 = arith.constant dense<0xFF800000> : vector<4xf32>
    %404 = vector.multi_reduction <maximumf>, %400, %cst_102 [1] : vector<4x128xf32> to vector<4xf32>
    %405 = vector.shape_cast %404 : vector<4xf32> to vector<4x1xf32>
    %406 = vector.broadcast %405 : vector<4x1xf32> to vector<4x128xf32>
    %407 = arith.cmpf oeq, %400, %406 : vector<4x128xf32>
    %cst_103 = arith.constant 1.280000e+02 : f32
    %408 = vector.broadcast %cst_103 : f32 to vector<4x128xf32>
    %409 = arith.select %407, %241, %408 : vector<4x128xi1>, vector<4x128xf32>
    %cst_104 = arith.constant dense<0x7F800000> : vector<4xf32>
    %410 = vector.multi_reduction <minimumf>, %409, %cst_104 [1] : vector<4x128xf32> to vector<4xf32>
    %411 = vector.shape_cast %410 : vector<4xf32> to vector<4x1xf32>
    %412 = vector.broadcast %411 : vector<4x1xf32> to vector<4x128xf32>
    %413 = arith.cmpf oeq, %241, %412 : vector<4x128xf32>
    %414 = arith.extui %413 : vector<4x128xi1> to vector<4x128xi32>
    %415 = arith.sitofp %414 : vector<4x128xi32> to vector<4x128xf32>
    %c3_105 = arith.constant 3 : index
    %416 = memref.load %arg0[%c3_105] : memref<8xi32, #tpu.memory_space<smem>>
    %c0_i32_106 = arith.constant 0 : i32
    %417 = arith.cmpi ne, %416, %c0_i32_106 : i32
    %418 = arith.extui %417 : i1 to i32
    %419 = arith.sitofp %418 : i32 to f32
    %c3_107 = arith.constant 3 : index
    %c0_108 = arith.constant 0 : index
    %c0_109 = arith.constant 0 : index
    %420 = vector.load %arg2[%c3_107, %c0_108, %c0_109] : memref<8x4x128xf32, #tpu.memory_space<vmem>>, vector<1x4x128xf32>
    %421 = vector.shape_cast %420 : vector<1x4x128xf32> to vector<4x128xf32>
    %422 = vector.broadcast %419 : f32 to vector<4x128xf32>
    %423 = arith.mulf %422, %421 : vector<4x128xf32>
    %cst_110 = arith.constant 1.000000e+00 : f32
    %424 = arith.subf %cst_110, %419 : f32
    %425 = vector.broadcast %424 : f32 to vector<4x128xf32>
    %426 = arith.mulf %425, %415 : vector<4x128xf32>
    %427 = arith.addf %423, %426 : vector<4x128xf32>
    %cst_111 = arith.constant dense<0.000000e+00> : vector<4x32xf32>
    %428 = tpu.matmul %427, %235, %cst_111 {dimension_numbers = #tpu.dot_dimension_numbers<[1], [0], [0], [1], [0, 0, 1, 1], [], []>} : vector<4x128xf32>, vector<128x32xf32>, vector<4x32xf32> -> vector<4x32xf32>
    %429 = tpu.concatenate %428, %397 in 1 : vector<4x32xf32>, vector<4x32xf32> -> vector<4x64xf32>
    %cst_112 = arith.constant dense<0.000000e+00> : vector<4x128xf32>
    %430 = tpu.matmul %429, %236, %cst_112 {dimension_numbers = #tpu.dot_dimension_numbers<[1], [0], [0], [1], [0, 0, 1, 1], [], []>} : vector<4x64xf32>, vector<64x128xf32>, vector<4x128xf32> -> vector<4x128xf32>
    %431 = vector.broadcast %237 : vector<1x128xf32> to vector<4x128xf32>
    %432 = arith.addf %430, %431 : vector<4x128xf32>
    %433 = vector.extract_strided_slice %432 {offsets = [0, 0], sizes = [4, 32], strides = [1, 1]} : vector<4x128xf32> to vector<4x32xf32>
    %434 = arith.negf %433 : vector<4x32xf32>
    %435 = math.exp %434 : vector<4x32xf32>
    %cst_113 = arith.constant 1.000000e+00 : f32
    %436 = vector.broadcast %cst_113 : f32 to vector<4x32xf32>
    %437 = arith.addf %436, %435 : vector<4x32xf32>
    %438 = arith.divf %436, %437 : vector<4x32xf32>
    %439 = vector.extract_strided_slice %432 {offsets = [0, 32], sizes = [4, 32], strides = [1, 1]} : vector<4x128xf32> to vector<4x32xf32>
    %440 = arith.negf %439 : vector<4x32xf32>
    %441 = math.exp %440 : vector<4x32xf32>
    %cst_114 = arith.constant 1.000000e+00 : f32
    %442 = vector.broadcast %cst_114 : f32 to vector<4x32xf32>
    %443 = arith.addf %442, %441 : vector<4x32xf32>
    %444 = arith.divf %442, %443 : vector<4x32xf32>
    %445 = vector.extract_strided_slice %432 {offsets = [0, 64], sizes = [4, 32], strides = [1, 1]} : vector<4x128xf32> to vector<4x32xf32>
    %446 = math.tanh %445 : vector<4x32xf32>
    %447 = vector.extract_strided_slice %432 {offsets = [0, 96], sizes = [4, 32], strides = [1, 1]} : vector<4x128xf32> to vector<4x32xf32>
    %448 = arith.negf %447 : vector<4x32xf32>
    %449 = math.exp %448 : vector<4x32xf32>
    %cst_115 = arith.constant 1.000000e+00 : f32
    %450 = vector.broadcast %cst_115 : f32 to vector<4x32xf32>
    %451 = arith.addf %450, %449 : vector<4x32xf32>
    %452 = arith.divf %450, %451 : vector<4x32xf32>
    %453 = arith.mulf %444, %395 : vector<4x32xf32>
    %454 = arith.mulf %438, %446 : vector<4x32xf32>
    %455 = arith.addf %453, %454 : vector<4x32xf32>
    %456 = math.tanh %455 : vector<4x32xf32>
    %457 = arith.mulf %452, %456 : vector<4x32xf32>
    %cst_116 = arith.constant dense<0.000000e+00> : vector<4x128xf32>
    %458 = tpu.matmul %457, %238, %cst_116 {dimension_numbers = #tpu.dot_dimension_numbers<[1], [0], [0], [1], [0, 0, 1, 1], [], []>} : vector<4x32xf32>, vector<32x128xf32>, vector<4x128xf32> -> vector<4x128xf32>
    %459 = vector.broadcast %239 : vector<1x128xf32> to vector<4x128xf32>
    %460 = arith.addf %458, %459 : vector<4x128xf32>
    %c4 = arith.constant 4 : index
    %c0_117 = arith.constant 0 : index
    %c0_118 = arith.constant 0 : index
    %461 = vector.load %arg12[%c4, %c0_117, %c0_118] : memref<8x4x128xf32, #tpu.memory_space<vmem>>, vector<1x4x128xf32>
    %462 = vector.shape_cast %461 : vector<1x4x128xf32> to vector<4x128xf32>
    %463 = vector.shape_cast %460 : vector<4x128xf32> to vector<1x4x128xf32>
    tpu.vector_store %arg12[%c4, %c0_117, %c0_118], %463 {strides = array<i32>} : memref<8x4x128xf32, #tpu.memory_space<vmem>>, vector<1x4x128xf32>,
    %cst_119 = arith.constant dense<0xFF800000> : vector<4xf32>
    %464 = vector.multi_reduction <maximumf>, %460, %cst_119 [1] : vector<4x128xf32> to vector<4xf32>
    %465 = vector.shape_cast %464 : vector<4xf32> to vector<4x1xf32>
    %466 = vector.broadcast %465 : vector<4x1xf32> to vector<4x128xf32>
    %467 = arith.cmpf oeq, %460, %466 : vector<4x128xf32>
    %cst_120 = arith.constant 1.280000e+02 : f32
    %468 = vector.broadcast %cst_120 : f32 to vector<4x128xf32>
    %469 = arith.select %467, %241, %468 : vector<4x128xi1>, vector<4x128xf32>
    %cst_121 = arith.constant dense<0x7F800000> : vector<4xf32>
    %470 = vector.multi_reduction <minimumf>, %469, %cst_121 [1] : vector<4x128xf32> to vector<4xf32>
    %471 = vector.shape_cast %470 : vector<4xf32> to vector<4x1xf32>
    %472 = vector.broadcast %471 : vector<4x1xf32> to vector<4x128xf32>
    %473 = arith.cmpf oeq, %241, %472 : vector<4x128xf32>
    %474 = arith.extui %473 : vector<4x128xi1> to vector<4x128xi32>
    %475 = arith.sitofp %474 : vector<4x128xi32> to vector<4x128xf32>
    %c4_122 = arith.constant 4 : index
    %476 = memref.load %arg0[%c4_122] : memref<8xi32, #tpu.memory_space<smem>>
    %c0_i32_123 = arith.constant 0 : i32
    %477 = arith.cmpi ne, %476, %c0_i32_123 : i32
    %478 = arith.extui %477 : i1 to i32
    %479 = arith.sitofp %478 : i32 to f32
    %c4_124 = arith.constant 4 : index
    %c0_125 = arith.constant 0 : index
    %c0_126 = arith.constant 0 : index
    %480 = vector.load %arg2[%c4_124, %c0_125, %c0_126] : memref<8x4x128xf32, #tpu.memory_space<vmem>>, vector<1x4x128xf32>
    %481 = vector.shape_cast %480 : vector<1x4x128xf32> to vector<4x128xf32>
    %482 = vector.broadcast %479 : f32 to vector<4x128xf32>
    %483 = arith.mulf %482, %481 : vector<4x128xf32>
    %cst_127 = arith.constant 1.000000e+00 : f32
    %484 = arith.subf %cst_127, %479 : f32
    %485 = vector.broadcast %484 : f32 to vector<4x128xf32>
    %486 = arith.mulf %485, %475 : vector<4x128xf32>
    %487 = arith.addf %483, %486 : vector<4x128xf32>
    %cst_128 = arith.constant dense<0.000000e+00> : vector<4x32xf32>
    %488 = tpu.matmul %487, %235, %cst_128 {dimension_numbers = #tpu.dot_dimension_numbers<[1], [0], [0], [1], [0, 0, 1, 1], [], []>} : vector<4x128xf32>, vector<128x32xf32>, vector<4x32xf32> -> vector<4x32xf32>
    %489 = tpu.concatenate %488, %457 in 1 : vector<4x32xf32>, vector<4x32xf32> -> vector<4x64xf32>
    %cst_129 = arith.constant dense<0.000000e+00> : vector<4x128xf32>
    %490 = tpu.matmul %489, %236, %cst_129 {dimension_numbers = #tpu.dot_dimension_numbers<[1], [0], [0], [1], [0, 0, 1, 1], [], []>} : vector<4x64xf32>, vector<64x128xf32>, vector<4x128xf32> -> vector<4x128xf32>
    %491 = vector.broadcast %237 : vector<1x128xf32> to vector<4x128xf32>
    %492 = arith.addf %490, %491 : vector<4x128xf32>
    %493 = vector.extract_strided_slice %492 {offsets = [0, 0], sizes = [4, 32], strides = [1, 1]} : vector<4x128xf32> to vector<4x32xf32>
    %494 = arith.negf %493 : vector<4x32xf32>
    %495 = math.exp %494 : vector<4x32xf32>
    %cst_130 = arith.constant 1.000000e+00 : f32
    %496 = vector.broadcast %cst_130 : f32 to vector<4x32xf32>
    %497 = arith.addf %496, %495 : vector<4x32xf32>
    %498 = arith.divf %496, %497 : vector<4x32xf32>
    %499 = vector.extract_strided_slice %492 {offsets = [0, 32], sizes = [4, 32], strides = [1, 1]} : vector<4x128xf32> to vector<4x32xf32>
    %500 = arith.negf %499 : vector<4x32xf32>
    %501 = math.exp %500 : vector<4x32xf32>
    %cst_131 = arith.constant 1.000000e+00 : f32
    %502 = vector.broadcast %cst_131 : f32 to vector<4x32xf32>
    %503 = arith.addf %502, %501 : vector<4x32xf32>
    %504 = arith.divf %502, %503 : vector<4x32xf32>
    %505 = vector.extract_strided_slice %492 {offsets = [0, 64], sizes = [4, 32], strides = [1, 1]} : vector<4x128xf32> to vector<4x32xf32>
    %506 = math.tanh %505 : vector<4x32xf32>
    %507 = vector.extract_strided_slice %492 {offsets = [0, 96], sizes = [4, 32], strides = [1, 1]} : vector<4x128xf32> to vector<4x32xf32>
    %508 = arith.negf %507 : vector<4x32xf32>
    %509 = math.exp %508 : vector<4x32xf32>
    %cst_132 = arith.constant 1.000000e+00 : f32
    %510 = vector.broadcast %cst_132 : f32 to vector<4x32xf32>
    %511 = arith.addf %510, %509 : vector<4x32xf32>
    %512 = arith.divf %510, %511 : vector<4x32xf32>
    %513 = arith.mulf %504, %455 : vector<4x32xf32>
    %514 = arith.mulf %498, %506 : vector<4x32xf32>
    %515 = arith.addf %513, %514 : vector<4x32xf32>
    %516 = math.tanh %515 : vector<4x32xf32>
    %517 = arith.mulf %512, %516 : vector<4x32xf32>
    %cst_133 = arith.constant dense<0.000000e+00> : vector<4x128xf32>
    %518 = tpu.matmul %517, %238, %cst_133 {dimension_numbers = #tpu.dot_dimension_numbers<[1], [0], [0], [1], [0, 0, 1, 1], [], []>} : vector<4x32xf32>, vector<32x128xf32>, vector<4x128xf32> -> vector<4x128xf32>
    %519 = vector.broadcast %239 : vector<1x128xf32> to vector<4x128xf32>
    %520 = arith.addf %518, %519 : vector<4x128xf32>
    %c5 = arith.constant 5 : index
    %c0_134 = arith.constant 0 : index
    %c0_135 = arith.constant 0 : index
    %521 = vector.load %arg12[%c5, %c0_134, %c0_135] : memref<8x4x128xf32, #tpu.memory_space<vmem>>, vector<1x4x128xf32>
    %522 = vector.shape_cast %521 : vector<1x4x128xf32> to vector<4x128xf32>
    %523 = vector.shape_cast %520 : vector<4x128xf32> to vector<1x4x128xf32>
    tpu.vector_store %arg12[%c5, %c0_134, %c0_135], %523 {strides = array<i32>} : memref<8x4x128xf32, #tpu.memory_space<vmem>>, vector<1x4x128xf32>,
    %cst_136 = arith.constant dense<0xFF800000> : vector<4xf32>
    %524 = vector.multi_reduction <maximumf>, %520, %cst_136 [1] : vector<4x128xf32> to vector<4xf32>
    %525 = vector.shape_cast %524 : vector<4xf32> to vector<4x1xf32>
    %526 = vector.broadcast %525 : vector<4x1xf32> to vector<4x128xf32>
    %527 = arith.cmpf oeq, %520, %526 : vector<4x128xf32>
    %cst_137 = arith.constant 1.280000e+02 : f32
    %528 = vector.broadcast %cst_137 : f32 to vector<4x128xf32>
    %529 = arith.select %527, %241, %528 : vector<4x128xi1>, vector<4x128xf32>
    %cst_138 = arith.constant dense<0x7F800000> : vector<4xf32>
    %530 = vector.multi_reduction <minimumf>, %529, %cst_138 [1] : vector<4x128xf32> to vector<4xf32>
    %531 = vector.shape_cast %530 : vector<4xf32> to vector<4x1xf32>
    %532 = vector.broadcast %531 : vector<4x1xf32> to vector<4x128xf32>
    %533 = arith.cmpf oeq, %241, %532 : vector<4x128xf32>
    %534 = arith.extui %533 : vector<4x128xi1> to vector<4x128xi32>
    %535 = arith.sitofp %534 : vector<4x128xi32> to vector<4x128xf32>
    %c5_139 = arith.constant 5 : index
    %536 = memref.load %arg0[%c5_139] : memref<8xi32, #tpu.memory_space<smem>>
    %c0_i32_140 = arith.constant 0 : i32
    %537 = arith.cmpi ne, %536, %c0_i32_140 : i32
    %538 = arith.extui %537 : i1 to i32
    %539 = arith.sitofp %538 : i32 to f32
    %c5_141 = arith.constant 5 : index
    %c0_142 = arith.constant 0 : index
    %c0_143 = arith.constant 0 : index
    %540 = vector.load %arg2[%c5_141, %c0_142, %c0_143] : memref<8x4x128xf32, #tpu.memory_space<vmem>>, vector<1x4x128xf32>
    %541 = vector.shape_cast %540 : vector<1x4x128xf32> to vector<4x128xf32>
    %542 = vector.broadcast %539 : f32 to vector<4x128xf32>
    %543 = arith.mulf %542, %541 : vector<4x128xf32>
    %cst_144 = arith.constant 1.000000e+00 : f32
    %544 = arith.subf %cst_144, %539 : f32
    %545 = vector.broadcast %544 : f32 to vector<4x128xf32>
    %546 = arith.mulf %545, %535 : vector<4x128xf32>
    %547 = arith.addf %543, %546 : vector<4x128xf32>
    %cst_145 = arith.constant dense<0.000000e+00> : vector<4x32xf32>
    %548 = tpu.matmul %547, %235, %cst_145 {dimension_numbers = #tpu.dot_dimension_numbers<[1], [0], [0], [1], [0, 0, 1, 1], [], []>} : vector<4x128xf32>, vector<128x32xf32>, vector<4x32xf32> -> vector<4x32xf32>
    %549 = tpu.concatenate %548, %517 in 1 : vector<4x32xf32>, vector<4x32xf32> -> vector<4x64xf32>
    %cst_146 = arith.constant dense<0.000000e+00> : vector<4x128xf32>
    %550 = tpu.matmul %549, %236, %cst_146 {dimension_numbers = #tpu.dot_dimension_numbers<[1], [0], [0], [1], [0, 0, 1, 1], [], []>} : vector<4x64xf32>, vector<64x128xf32>, vector<4x128xf32> -> vector<4x128xf32>
    %551 = vector.broadcast %237 : vector<1x128xf32> to vector<4x128xf32>
    %552 = arith.addf %550, %551 : vector<4x128xf32>
    %553 = vector.extract_strided_slice %552 {offsets = [0, 0], sizes = [4, 32], strides = [1, 1]} : vector<4x128xf32> to vector<4x32xf32>
    %554 = arith.negf %553 : vector<4x32xf32>
    %555 = math.exp %554 : vector<4x32xf32>
    %cst_147 = arith.constant 1.000000e+00 : f32
    %556 = vector.broadcast %cst_147 : f32 to vector<4x32xf32>
    %557 = arith.addf %556, %555 : vector<4x32xf32>
    %558 = arith.divf %556, %557 : vector<4x32xf32>
    %559 = vector.extract_strided_slice %552 {offsets = [0, 32], sizes = [4, 32], strides = [1, 1]} : vector<4x128xf32> to vector<4x32xf32>
    %560 = arith.negf %559 : vector<4x32xf32>
    %561 = math.exp %560 : vector<4x32xf32>
    %cst_148 = arith.constant 1.000000e+00 : f32
    %562 = vector.broadcast %cst_148 : f32 to vector<4x32xf32>
    %563 = arith.addf %562, %561 : vector<4x32xf32>
    %564 = arith.divf %562, %563 : vector<4x32xf32>
    %565 = vector.extract_strided_slice %552 {offsets = [0, 64], sizes = [4, 32], strides = [1, 1]} : vector<4x128xf32> to vector<4x32xf32>
    %566 = math.tanh %565 : vector<4x32xf32>
    %567 = vector.extract_strided_slice %552 {offsets = [0, 96], sizes = [4, 32], strides = [1, 1]} : vector<4x128xf32> to vector<4x32xf32>
    %568 = arith.negf %567 : vector<4x32xf32>
    %569 = math.exp %568 : vector<4x32xf32>
    %cst_149 = arith.constant 1.000000e+00 : f32
    %570 = vector.broadcast %cst_149 : f32 to vector<4x32xf32>
    %571 = arith.addf %570, %569 : vector<4x32xf32>
    %572 = arith.divf %570, %571 : vector<4x32xf32>
    %573 = arith.mulf %564, %515 : vector<4x32xf32>
    %574 = arith.mulf %558, %566 : vector<4x32xf32>
    %575 = arith.addf %573, %574 : vector<4x32xf32>
    %576 = math.tanh %575 : vector<4x32xf32>
    %577 = arith.mulf %572, %576 : vector<4x32xf32>
    %cst_150 = arith.constant dense<0.000000e+00> : vector<4x128xf32>
    %578 = tpu.matmul %577, %238, %cst_150 {dimension_numbers = #tpu.dot_dimension_numbers<[1], [0], [0], [1], [0, 0, 1, 1], [], []>} : vector<4x32xf32>, vector<32x128xf32>, vector<4x128xf32> -> vector<4x128xf32>
    %579 = vector.broadcast %239 : vector<1x128xf32> to vector<4x128xf32>
    %580 = arith.addf %578, %579 : vector<4x128xf32>
    %c6 = arith.constant 6 : index
    %c0_151 = arith.constant 0 : index
    %c0_152 = arith.constant 0 : index
    %581 = vector.load %arg12[%c6, %c0_151, %c0_152] : memref<8x4x128xf32, #tpu.memory_space<vmem>>, vector<1x4x128xf32>
    %582 = vector.shape_cast %581 : vector<1x4x128xf32> to vector<4x128xf32>
    %583 = vector.shape_cast %580 : vector<4x128xf32> to vector<1x4x128xf32>
    tpu.vector_store %arg12[%c6, %c0_151, %c0_152], %583 {strides = array<i32>} : memref<8x4x128xf32, #tpu.memory_space<vmem>>, vector<1x4x128xf32>,
    %cst_153 = arith.constant dense<0xFF800000> : vector<4xf32>
    %584 = vector.multi_reduction <maximumf>, %580, %cst_153 [1] : vector<4x128xf32> to vector<4xf32>
    %585 = vector.shape_cast %584 : vector<4xf32> to vector<4x1xf32>
    %586 = vector.broadcast %585 : vector<4x1xf32> to vector<4x128xf32>
    %587 = arith.cmpf oeq, %580, %586 : vector<4x128xf32>
    %cst_154 = arith.constant 1.280000e+02 : f32
    %588 = vector.broadcast %cst_154 : f32 to vector<4x128xf32>
    %589 = arith.select %587, %241, %588 : vector<4x128xi1>, vector<4x128xf32>
    %cst_155 = arith.constant dense<0x7F800000> : vector<4xf32>
    %590 = vector.multi_reduction <minimumf>, %589, %cst_155 [1] : vector<4x128xf32> to vector<4xf32>
    %591 = vector.shape_cast %590 : vector<4xf32> to vector<4x1xf32>
    %592 = vector.broadcast %591 : vector<4x1xf32> to vector<4x128xf32>
    %593 = arith.cmpf oeq, %241, %592 : vector<4x128xf32>
    %594 = arith.extui %593 : vector<4x128xi1> to vector<4x128xi32>
    %595 = arith.sitofp %594 : vector<4x128xi32> to vector<4x128xf32>
    %c6_156 = arith.constant 6 : index
    %596 = memref.load %arg0[%c6_156] : memref<8xi32, #tpu.memory_space<smem>>
    %c0_i32_157 = arith.constant 0 : i32
    %597 = arith.cmpi ne, %596, %c0_i32_157 : i32
    %598 = arith.extui %597 : i1 to i32
    %599 = arith.sitofp %598 : i32 to f32
    %c6_158 = arith.constant 6 : index
    %c0_159 = arith.constant 0 : index
    %c0_160 = arith.constant 0 : index
    %600 = vector.load %arg2[%c6_158, %c0_159, %c0_160] : memref<8x4x128xf32, #tpu.memory_space<vmem>>, vector<1x4x128xf32>
    %601 = vector.shape_cast %600 : vector<1x4x128xf32> to vector<4x128xf32>
    %602 = vector.broadcast %599 : f32 to vector<4x128xf32>
    %603 = arith.mulf %602, %601 : vector<4x128xf32>
    %cst_161 = arith.constant 1.000000e+00 : f32
    %604 = arith.subf %cst_161, %599 : f32
    %605 = vector.broadcast %604 : f32 to vector<4x128xf32>
    %606 = arith.mulf %605, %595 : vector<4x128xf32>
    %607 = arith.addf %603, %606 : vector<4x128xf32>
    %cst_162 = arith.constant dense<0.000000e+00> : vector<4x32xf32>
    %608 = tpu.matmul %607, %235, %cst_162 {dimension_numbers = #tpu.dot_dimension_numbers<[1], [0], [0], [1], [0, 0, 1, 1], [], []>} : vector<4x128xf32>, vector<128x32xf32>, vector<4x32xf32> -> vector<4x32xf32>
    %609 = tpu.concatenate %608, %577 in 1 : vector<4x32xf32>, vector<4x32xf32> -> vector<4x64xf32>
    %cst_163 = arith.constant dense<0.000000e+00> : vector<4x128xf32>
    %610 = tpu.matmul %609, %236, %cst_163 {dimension_numbers = #tpu.dot_dimension_numbers<[1], [0], [0], [1], [0, 0, 1, 1], [], []>} : vector<4x64xf32>, vector<64x128xf32>, vector<4x128xf32> -> vector<4x128xf32>
    %611 = vector.broadcast %237 : vector<1x128xf32> to vector<4x128xf32>
    %612 = arith.addf %610, %611 : vector<4x128xf32>
    %613 = vector.extract_strided_slice %612 {offsets = [0, 0], sizes = [4, 32], strides = [1, 1]} : vector<4x128xf32> to vector<4x32xf32>
    %614 = arith.negf %613 : vector<4x32xf32>
    %615 = math.exp %614 : vector<4x32xf32>
    %cst_164 = arith.constant 1.000000e+00 : f32
    %616 = vector.broadcast %cst_164 : f32 to vector<4x32xf32>
    %617 = arith.addf %616, %615 : vector<4x32xf32>
    %618 = arith.divf %616, %617 : vector<4x32xf32>
    %619 = vector.extract_strided_slice %612 {offsets = [0, 32], sizes = [4, 32], strides = [1, 1]} : vector<4x128xf32> to vector<4x32xf32>
    %620 = arith.negf %619 : vector<4x32xf32>
    %621 = math.exp %620 : vector<4x32xf32>
    %cst_165 = arith.constant 1.000000e+00 : f32
    %622 = vector.broadcast %cst_165 : f32 to vector<4x32xf32>
    %623 = arith.addf %622, %621 : vector<4x32xf32>
    %624 = arith.divf %622, %623 : vector<4x32xf32>
    %625 = vector.extract_strided_slice %612 {offsets = [0, 64], sizes = [4, 32], strides = [1, 1]} : vector<4x128xf32> to vector<4x32xf32>
    %626 = math.tanh %625 : vector<4x32xf32>
    %627 = vector.extract_strided_slice %612 {offsets = [0, 96], sizes = [4, 32], strides = [1, 1]} : vector<4x128xf32> to vector<4x32xf32>
    %628 = arith.negf %627 : vector<4x32xf32>
    %629 = math.exp %628 : vector<4x32xf32>
    %cst_166 = arith.constant 1.000000e+00 : f32
    %630 = vector.broadcast %cst_166 : f32 to vector<4x32xf32>
    %631 = arith.addf %630, %629 : vector<4x32xf32>
    %632 = arith.divf %630, %631 : vector<4x32xf32>
    %633 = arith.mulf %624, %575 : vector<4x32xf32>
    %634 = arith.mulf %618, %626 : vector<4x32xf32>
    %635 = arith.addf %633, %634 : vector<4x32xf32>
    %636 = math.tanh %635 : vector<4x32xf32>
    %637 = arith.mulf %632, %636 : vector<4x32xf32>
    %cst_167 = arith.constant dense<0.000000e+00> : vector<4x128xf32>
    %638 = tpu.matmul %637, %238, %cst_167 {dimension_numbers = #tpu.dot_dimension_numbers<[1], [0], [0], [1], [0, 0, 1, 1], [], []>} : vector<4x32xf32>, vector<32x128xf32>, vector<4x128xf32> -> vector<4x128xf32>
    %639 = vector.broadcast %239 : vector<1x128xf32> to vector<4x128xf32>
    %640 = arith.addf %638, %639 : vector<4x128xf32>
    %c7 = arith.constant 7 : index
    %c0_168 = arith.constant 0 : index
    %c0_169 = arith.constant 0 : index
    %641 = vector.load %arg12[%c7, %c0_168, %c0_169] : memref<8x4x128xf32, #tpu.memory_space<vmem>>, vector<1x4x128xf32>
    %642 = vector.shape_cast %641 : vector<1x4x128xf32> to vector<4x128xf32>
    %643 = vector.shape_cast %640 : vector<4x128xf32> to vector<1x4x128xf32>
    tpu.vector_store %arg12[%c7, %c0_168, %c0_169], %643 {strides = array<i32>} : memref<8x4x128xf32, #tpu.memory_space<vmem>>, vector<1x4x128xf32>,
    return
  }
}

</mosaic_0001>

<llo_original>
// kernel: eq.1
$region0: #{eq.1}
  %s0 = inlined_call_operand.vmem [shape: s32[8,4], index: 0, kind: input, shape index: {}]
  %s1 = inlined_call_operand.vmem [shape: s32[32], index: 1, kind: output, shape index: {}]
  $region1: #{eq.1} parent=0
    #allocation0 [shape = 'u8[4096]{0}', space=vmem, size = 0x1000, scoped, tag = 'scoped mem for output reshape']
    %v2 = vld [vmem:[%s0] sm:$0x1]
    %vm3 = vcmask 31744
    %4 = vst.msk [vmem:[#allocation0] sm:$0x1] %vm3, %v2
    %s5 = scalar_lea.vmem %s0, 7
    %v6 = vld [vmem:[%s5] sm:$0x1]
    %7 = vrot.lane.b32.xlu0 %v6, 28
    %v8 = vpop.permute.xlu0 %7
    %vm9 = vcmask 261344
    %10 = vst.msk [vmem:[#allocation0] sm:$0x1] %vm9, %v8
    %s11 = scalar_lea.vmem %s0, 6
    %v12 = vld [vmem:[%s11] sm:$0x1]
    %13 = vrot.lane.b32.xlu0 %v12, 24
    %v14 = vpop.permute.xlu0 %13
    %vm15 = vcmask 228544
    %16 = vst.msk [vmem:[#allocation0] sm:$0x1] %vm15, %v14
    %s17 = scalar_lea.vmem %s0, 5
    %v18 = vld [vmem:[%s17] sm:$0x1]
    %19 = vrot.lane.b32.xlu0 %v18, 20
    %v20 = vpop.permute.xlu0 %19
    %vm21 = vcmask 195744
    %22 = vst.msk [vmem:[#allocation0] sm:$0x1] %vm21, %v20
    %s23 = scalar_lea.vmem %s0, 4
    %v24 = vld [vmem:[%s23] sm:$0x1]
    %25 = vrot.lane.b32.xlu0 %v24, 16
    %v26 = vpop.permute.xlu0 %25
    %vm27 = vcmask 162944
    %28 = vst.msk [vmem:[#allocation0] sm:$0x1] %vm27, %v26
    %s29 = scalar_lea.vmem %s0, 3
    %v30 = vld [vmem:[%s29] sm:$0x1]
    %31 = vrot.lane.b32.xlu0 %v30, 12
    %v32 = vpop.permute.xlu0 %31
    %vm33 = vcmask 130144
    %34 = vst.msk [vmem:[#allocation0] sm:$0x1] %vm33, %v32
    %s35 = scalar_lea.vmem %s0, 2
    %v36 = vld [vmem:[%s35] sm:$0x1]
    %37 = vrot.lane.b32.xlu0 %v36, 8
    %v38 = vpop.permute.xlu0 %37
    %vm39 = vcmask 97344
    %40 = vst.msk [vmem:[#allocation0] sm:$0x1] %vm39, %v38
    %s41 = scalar_lea.vmem %s0, 1
    %v42 = vld [vmem:[%s41] sm:$0x1]
    %43 = vrot.lane.b32.xlu0 %v42, 4
    %v44 = vpop.permute.xlu0 %43
    %vm45 = vcmask 64544
    %46 = vst.msk [vmem:[#allocation0] sm:$0x1] %vm45, %v44
    %s48 = sshll.u32 1, 1
    %s49 = ssub.s32 %s48, 1
    %v51 = vld [vmem:[#allocation0] sm:%s49]
    %s52 = sshll.u32 1, 1
    %s53 = ssub.s32 %s52, 1
    %54 = vst [vmem:[%s1] sm:%s53] %v51

// kernel: seq2seq_forward.1
$region0: #{seq2seq_forward.1}
  #allocation0 [shape = 'u32[]', space=smem, size = 0x4, offset = 0x4, fixed_abs, tag = 'smem constant byte address 0x4 - core index']
  #allocation1 [shape = 'u32[144,128]{1,0:T(1,128)}', space=vmem, size = 0x12000, scoped, tag = 'internal scratch']
  %s0 = inlined_call_operand.vmem [shape: s32[8], index: 0, kind: input, shape index: {}]
  %s1 = inlined_call_operand.vmem [shape: f32[32,16], index: 1, kind: input, shape index: {}]
  %s2 = inlined_call_operand.vmem [shape: f32[8,4,128], index: 2, kind: input, shape index: {}]
  %s3 = inlined_call_operand.vmem [shape: f32[16,32], index: 3, kind: input, shape index: {}]
  %s4 = inlined_call_operand.vmem [shape: f32[32,128], index: 4, kind: input, shape index: {}]
  %s5 = inlined_call_operand.vmem [shape: f32[32,128], index: 5, kind: input, shape index: {}]
  %s6 = inlined_call_operand.vmem [shape: f32[1,128], index: 6, kind: input, shape index: {}]
  %s7 = inlined_call_operand.vmem [shape: f32[128,32], index: 7, kind: input, shape index: {}]
  %s8 = inlined_call_operand.vmem [shape: f32[64,128], index: 8, kind: input, shape index: {}]
  %s9 = inlined_call_operand.vmem [shape: f32[1,128], index: 9, kind: input, shape index: {}]
  %s10 = inlined_call_operand.vmem [shape: f32[32,128], index: 10, kind: input, shape index: {}]
  %s11 = inlined_call_operand.vmem [shape: f32[1,128], index: 11, kind: input, shape index: {}]
  %s12 = inlined_call_operand.hbm [shape: f32[8,4,128], index: 12, kind: output, shape index: {}]
  %s13 = sld [smem:[#allocation0]]
  $region62: #{seq2seq_forward.1} parent=0
    _
  %s15 = ssub.s32 1, %s13
  %s16 = scalar_select 0, %s15, %s13
  $region1: #{seq2seq_forward.1} parent=0
    #allocation2 [shape = 'u8[512]{0}', space=smem, size = 0x200, scoped, tag = 'input window, operand 0, single buffered']
    #allocation3 [shape = 's32[1]{0}', space=sflag, size = 0x4, scoped, tag = 'scoped memory for seq2seq_forward.1']
    #allocation4 [shape = 's32[1]{0}', space=sflag, size = 0x4, scoped, tag = 'scoped memory for seq2seq_forward.1']
    #allocation5 [shape = 'u8[16384]{0}', space=vmem, size = 0x4000, scoped, tag = 'output window, operand 0, single buffered']
    %17 = vsyncpa [#allocation4], 0
    %18 = vsyncpa [#allocation3], 0
    // Predicated region
    $region2: #{seq2seq_forward.1} parent=1 // pred_check
      _
    $region3: #{seq2seq_forward.1} parent=1 // pred_check_branch
      %20 = sbr.rel (0) target = $region5
    $region4: #{seq2seq_forward.1} parent=1 // pred_region
      %s22 = ssub.s32 16, 16
      %23 = vsyncadd [#allocation4], %s22
      %s25 = sshll.u32 %s0, 4
      %s26 = int_to_ptr.vmem [resolvable:$true] %s25
      %28 = dma.vmem_to_smem %s26, 16, [#allocation2], [#allocation4]
    $region5: #{seq2seq_forward.1} parent=1 // pred_fallthru
      _
    // Predicated region
    $region6: #{seq2seq_forward.1} parent=1 // pred_check
      _
    $region7: #{seq2seq_forward.1} parent=1 // pred_check_branch
      %30 = sbr.rel (0) target = $region9
    $region8: #{seq2seq_forward.1} parent=1 // pred_region
      _
    $region9: #{seq2seq_forward.1} parent=1 // pred_fallthru
      _
    // Predicated region
    $region10: #{seq2seq_forward.1} parent=1 // pred_check
      _
    $region11: #{seq2seq_forward.1} parent=1 // pred_check_branch
      %32 = sbr.rel (0) target = $region13
    $region12: #{seq2seq_forward.1} parent=1 // pred_region
      _
    $region13: #{seq2seq_forward.1} parent=1 // pred_fallthru
      _
    // Predicated region
    $region14: #{seq2seq_forward.1} parent=1 // pred_check
      _
    $region15: #{seq2seq_forward.1} parent=1 // pred_check_branch
      %34 = sbr.rel (0) target = $region17
    $region16: #{seq2seq_forward.1} parent=1 // pred_region
      _
    $region17: #{seq2seq_forward.1} parent=1 // pred_fallthru
      _
    // Predicated region
    $region18: #{seq2seq_forward.1} parent=1 // pred_check
      _
    $region19: #{seq2seq_forward.1} parent=1 // pred_check_branch
      %36 = sbr.rel (0) target = $region21
    $region20: #{seq2seq_forward.1} parent=1 // pred_region
      _
    $region21: #{seq2seq_forward.1} parent=1 // pred_fallthru
      _
    // Predicated region
    $region22: #{seq2seq_forward.1} parent=1 // pred_check
      _
    $region23: #{seq2seq_forward.1} parent=1 // pred_check_branch
      %38 = sbr.rel (0) target = $region25
    $region24: #{seq2seq_forward.1} parent=1 // pred_region
      _
    $region25: #{seq2seq_forward.1} parent=1 // pred_fallthru
      _
    // Predicated region
    $region26: #{seq2seq_forward.1} parent=1 // pred_check
      _
    $region27: #{seq2seq_forward.1} parent=1 // pred_check_branch
      %40 = sbr.rel (0) target = $region29
    $region28: #{seq2seq_forward.1} parent=1 // pred_region
      _
    $region29: #{seq2seq_forward.1} parent=1 // pred_fallthru
      _
    // Predicated region
    $region30: #{seq2seq_forward.1} parent=1 // pred_check
      _
    $region31: #{seq2seq_forward.1} parent=1 // pred_check_branch
      %42 = sbr.rel (0) target = $region33
    $region32: #{seq2seq_forward.1} parent=1 // pred_region
      _
    $region33: #{seq2seq_forward.1} parent=1 // pred_fallthru
      _
    // Predicated region
    $region34: #{seq2seq_forward.1} parent=1 // pred_check
      _
    $region35: #{seq2seq_forward.1} parent=1 // pred_check_branch
      %44 = sbr.rel (0) target = $region37
    $region36: #{seq2seq_forward.1} parent=1 // pred_region
      _
    $region37: #{seq2seq_forward.1} parent=1 // pred_fallthru
      _
    // Predicated region
    $region38: #{seq2seq_forward.1} parent=1 // pred_check
      _
    $region39: #{seq2seq_forward.1} parent=1 // pred_check_branch
      %46 = sbr.rel (0) target = $region41
    $region40: #{seq2seq_forward.1} parent=1 // pred_region
      _
    $region41: #{seq2seq_forward.1} parent=1 // pred_fallthru
      _
    // Predicated region
    $region42: #{seq2seq_forward.1} parent=1 // pred_check
      _
    $region43: #{seq2seq_forward.1} parent=1 // pred_check_branch
      %48 = sbr.rel (0) target = $region45
    $region44: #{seq2seq_forward.1} parent=1 // pred_region
      _
    $region45: #{seq2seq_forward.1} parent=1 // pred_fallthru
      _
    // Predicated region
    $region46: #{seq2seq_forward.1} parent=1 // pred_check
      _
    $region47: #{seq2seq_forward.1} parent=1 // pred_check_branch
      %50 = sbr.rel (0) target = $region49
    $region48: #{seq2seq_forward.1} parent=1 // pred_region
      _
    $region49: #{seq2seq_forward.1} parent=1 // pred_fallthru
      _
    // Predicated region
    $region50: #{seq2seq_forward.1} parent=1 // pred_check
      _
    $region51: #{seq2seq_forward.1} parent=1 // pred_check_branch
      %52 = sbr.rel (0) target = $region53
    $region52: #{seq2seq_forward.1} parent=1 // pred_region
      %53 = dma.done [#allocation4], 16
    $region53: #{seq2seq_forward.1} parent=1 // pred_fallthru
      _
    %54 = sfence
    %v55 = vld [vmem:[%s1] sm:$0xff]
    %v56 = vld [vmem:[%s1 + $0x8] sm:$0xff]
    %v57 = vld [vmem:[%s1 + $0x10] sm:$0xff]
    %v58 = vld [vmem:[%s1 + $0x18] sm:$0xff]
    %v59 = vld [vmem:[%s3] sm:$0xff]
    %v60 = vld [vmem:[%s3 + $0x8] sm:$0xff]
    %vm61 = vcmask 130048
    %v63 = vsel %vm61, %v55, 0
    %v66 = vsel %vm61, %v56, 0
    %v69 = vsel %vm61, %v57, 0
    %v72 = vsel %vm61, %v58, 0
    %74 = vmatprep.subr.mxu0 0.0
    %75 = vmatpush1.msra.mxu0 0.0
    %76 = vmatprep.subr.mxu0 0.0
    %77 = vmatpush1.msra.mxu0 0.0
    %78 = vmatprep.subr.mxu0 0.0
    %79 = vmatpush1.msra.mxu0 0.0
    %80 = vmatprep.subr.mxu0 0.0
    %81 = vmatpush1.msra.mxu0 0.0
    %82 = vmatprep.subr.mxu0 0.0
    %83 = vmatpush1.msra.mxu0 0.0
    %84 = vmatprep.subr.mxu0 0.0
    %85 = vmatpush1.msra.mxu0 0.0
    %86 = vmatprep.subr.mxu0 0.0
    %87 = vmatpush1.msra.mxu0 0.0
    %88 = vmatprep.subr.mxu0 0.0
    %89 = vmatpush1.msra.mxu0 0.0
    %90 = vmatprep.subr.mxu0 0.0
    %91 = vmatpush1.msra.mxu0 0.0
    %92 = vmatprep.subr.mxu0 0.0
    %93 = vmatpush1.msra.mxu0 0.0
    %94 = vmatprep.subr.mxu0 0.0
    %95 = vmatpush1.msra.mxu0 0.0
    %96 = vmatprep.subr.mxu0 0.0
    %97 = vmatpush1.msra.mxu0 0.0
    %98 = vmatprep.subr.mxu0 0.0
    %99 = vmatpush1.msra.mxu0 0.0
    %100 = vmatprep.subr.mxu0 0.0
    %101 = vmatpush1.msra.mxu0 0.0
    %102 = vmatprep.subr.mxu0 0.0
    %103 = vmatpush1.msra.mxu0 %v60
    %104 = vmatprep.subr.mxu0 0.0
    %105 = vmatpush1.msra.mxu0 %v59
    %106 = vmatprep.subr.mxu0 0.0
    %107 = vmatpush2.msra.mxu0 0.0
    %108 = vmatprep.subr.mxu0 0.0
    %109 = vmatpush2.msra.mxu0 0.0
    %110 = vmatprep.subr.mxu0 0.0
    %111 = vmatpush2.msra.mxu0 0.0
    %112 = vmatprep.subr.mxu0 0.0
    %113 = vmatpush2.msra.mxu0 0.0
    %114 = vmatprep.subr.mxu0 0.0
    %115 = vmatpush2.msra.mxu0 0.0
    %116 = vmatprep.subr.mxu0 0.0
    %117 = vmatpush2.msra.mxu0 0.0
    %118 = vmatprep.subr.mxu0 0.0
    %119 = vmatpush2.msra.mxu0 0.0
    %120 = vmatprep.subr.mxu0 0.0
    %121 = vmatpush2.msra.mxu0 0.0
    %122 = vmatprep.subr.mxu0 0.0
    %123 = vmatpush2.msra.mxu0 0.0
    %124 = vmatprep.subr.mxu0 0.0
    %125 = vmatpush2.msra.mxu0 0.0
    %126 = vmatprep.subr.mxu0 0.0
    %127 = vmatpush2.msra.mxu0 0.0
    %128 = vmatprep.subr.mxu0 0.0
    %129 = vmatpush2.msra.mxu0 0.0
    %130 = vmatprep.subr.mxu0 0.0
    %131 = vmatpush2.msra.mxu0 0.0
    %132 = vmatprep.subr.mxu0 0.0
    %133 = vmatpush2.msra.mxu0 0.0
    %134 = vmatprep.subr.mxu0 0.0
    %135 = vmatpush2.msra.mxu0 0.0
    %136 = vmatprep.subr.mxu0 0.0
    %137 = vmatpush2.msra.mxu0 0.0
    %138 = vmatprep.mubr.f32.mxu0 0.0
    %139 = vmatmul.mubr.f32.gmra.mxu0 %v63
    %v140 = vpop.f32.mrf.mxu0
    %v141 = vadd.f32 0.0, %v140
    %v142 = vpop.f32.mrf.mxu0
    %143 = vmatprep.mubr.f32.mxu0 0.0
    %144 = vmatmul.mubr.f32.gmra.mxu0 %v66
    %v145 = vpop.f32.mrf.mxu0
    %v146 = vadd.f32 0.0, %v145
    %v147 = vpop.f32.mrf.mxu0
    %148 = vmatprep.mubr.f32.mxu0 0.0
    %149 = vmatmul.mubr.f32.gmra.mxu0 %v69
    %v150 = vpop.f32.mrf.mxu0
    %v151 = vadd.f32 0.0, %v150
    %v152 = vpop.f32.mrf.mxu0
    %153 = vmatprep.mubr.f32.mxu0 0.0
    %154 = vmatmul.mubr.f32.gmra.mxu0 %v72
    %v155 = vpop.f32.mrf.mxu0
    %v156 = vadd.f32 0.0, %v155
    %v157 = vpop.f32.mrf.mxu0
    %158 = vdwg.mxu0
    %v159 = vld [vmem:[%s4] sm:$0xff]
    %v160 = vld [vmem:[%s4 + $0x8] sm:$0xff]
    %v161 = vld [vmem:[%s4 + $0x10] sm:$0xff]
    %v162 = vld [vmem:[%s4 + $0x18] sm:$0xff]
    %v163 = vld [vmem:[%s6] sm:$0x1]
    %v165 = vlaneseq
    %v166 = vshrl.u32 %v165, 7
    %v167 = vsub.s32 0, %v166
    %v168 = vrot.slane %v163, %v167
    %vm170 = vcmask 261120
    %v172 = vsel %vm170, %v141, 0
    %v175 = vsel %vm170, %v146, 0
    %v178 = vsel %vm170, %v151, 0
    %v181 = vsel %vm170, %v156, 0
    %183 = vmatprep.subr.mxu0 0.0
    %184 = vmatpush1.msra.mxu0 0.0
    %185 = vmatprep.subr.mxu0 0.0
    %186 = vmatpush1.msra.mxu0 0.0
    %187 = vmatprep.subr.mxu0 0.0
    %188 = vmatpush1.msra.mxu0 0.0
    %189 = vmatprep.subr.mxu0 0.0
    %190 = vmatpush1.msra.mxu0 0.0
    %191 = vmatprep.subr.mxu0 0.0
    %192 = vmatpush1.msra.mxu0 0.0
    %193 = vmatprep.subr.mxu0 0.0
    %194 = vmatpush1.msra.mxu0 0.0
    %195 = vmatprep.subr.mxu0 0.0
    %196 = vmatpush1.msra.mxu0 0.0
    %197 = vmatprep.subr.mxu0 0.0
    %198 = vmatpush1.msra.mxu0 0.0
    %199 = vmatprep.subr.mxu0 0.0
    %200 = vmatpush1.msra.mxu0 0.0
    %201 = vmatprep.subr.mxu0 0.0
    %202 = vmatpush1.msra.mxu0 0.0
    %203 = vmatprep.subr.mxu0 0.0
    %204 = vmatpush1.msra.mxu0 0.0
    %205 = vmatprep.subr.mxu0 0.0
    %206 = vmatpush1.msra.mxu0 0.0
    %207 = vmatprep.subr.mxu0 0.0
    %208 = vmatpush1.msra.mxu0 %v162
    %209 = vmatprep.subr.mxu0 0.0
    %210 = vmatpush1.msra.mxu0 %v161
    %211 = vmatprep.subr.mxu0 0.0
    %212 = vmatpush1.msra.mxu0 %v160
    %213 = vmatprep.subr.mxu0 0.0
    %214 = vmatpush1.msra.mxu0 %v159
    %215 = vmatprep.subr.mxu0 0.0
    %216 = vmatpush2.msra.mxu0 0.0
    %217 = vmatprep.subr.mxu0 0.0
    %218 = vmatpush2.msra.mxu0 0.0
    %219 = vmatprep.subr.mxu0 0.0
    %220 = vmatpush2.msra.mxu0 0.0
    %221 = vmatprep.subr.mxu0 0.0
    %222 = vmatpush2.msra.mxu0 0.0
    %223 = vmatprep.subr.mxu0 0.0
    %224 = vmatpush2.msra.mxu0 0.0
    %225 = vmatprep.subr.mxu0 0.0
    %226 = vmatpush2.msra.mxu0 0.0
    %227 = vmatprep.subr.mxu0 0.0
    %228 = vmatpush2.msra.mxu0 0.0
    %229 = vmatprep.subr.mxu0 0.0
    %230 = vmatpush2.msra.mxu0 0.0
    %231 = vmatprep.subr.mxu0 0.0
    %232 = vmatpush2.msra.mxu0 0.0
    %233 = vmatprep.subr.mxu0 0.0
    %234 = vmatpush2.msra.mxu0 0.0
    %235 = vmatprep.subr.mxu0 0.0
    %236 = vmatpush2.msra.mxu0 0.0
    %237 = vmatprep.subr.mxu0 0.0
    %238 = vmatpush2.msra.mxu0 0.0
    %239 = vmatprep.subr.mxu0 0.0
    %240 = vmatpush2.msra.mxu0 0.0
    %241 = vmatprep.subr.mxu0 0.0
    %242 = vmatpush2.msra.mxu0 0.0
    %243 = vmatprep.subr.mxu0 0.0
    %244 = vmatpush2.msra.mxu0 0.0
    %245 = vmatprep.subr.mxu0 0.0
    %246 = vmatpush2.msra.mxu0 0.0
    %247 = vmatprep.mubr.f32.mxu0 0.0
    %248 = vmatmul.mubr.f32.gmra.mxu0 %v172
    %v249 = vpop.f32.mrf.mxu0
    %v250 = vadd.f32 %v168, %v249
    %v251 = vpop.f32.mrf.mxu0
    %252 = vmatprep.mubr.f32.mxu0 0.0
    %253 = vmatmul.mubr.f32.gmra.mxu0 %v175
    %v254 = vpop.f32.mrf.mxu0
    %v255 = vadd.f32 %v168, %v254
    %v256 = vpop.f32.mrf.mxu0
    %257 = vmatprep.mubr.f32.mxu0 0.0
    %258 = vmatmul.mubr.f32.gmra.mxu0 %v178
    %v259 = vpop.f32.mrf.mxu0
    %v260 = vadd.f32 %v168, %v259
    %v261 = vpop.f32.mrf.mxu0
    %262 = vmatprep.mubr.f32.mxu0 0.0
    %263 = vmatmul.mubr.f32.gmra.mxu0 %v181
    %v264 = vpop.f32.mrf.mxu0
    %v265 = vadd.f32 %v168, %v264
    %v266 = vpop.f32.mrf.mxu0
    %267 = vdwg.mxu0
    %v268 = vld [vmem:[%s5] sm:$0xff]
    %v269 = vld [vmem:[%s5 + $0x8] sm:$0xff]
    %v270 = vld [vmem:[%s5 + $0x10] sm:$0xff]
    %v271 = vld [vmem:[%s5 + $0x18] sm:$0xff]
    %v273 = vsel %vm170, 0.0, 0
    %275 = vmatprep.subr.mxu0 0.0
    %276 = vmatpush1.msra.mxu0 0.0
    %277 = vmatprep.subr.mxu0 0.0
    %278 = vmatpush1.msra.mxu0 0.0
    %279 = vmatprep.subr.mxu0 0.0
    %280 = vmatpush1.msra.mxu0 0.0
    %281 = vmatprep.subr.mxu0 0.0
    %282 = vmatpush1.msra.mxu0 0.0
    %283 = vmatprep.subr.mxu0 0.0
    %284 = vmatpush1.msra.mxu0 0.0
    %285 = vmatprep.subr.mxu0 0.0
    %286 = vmatpush1.msra.mxu0 0.0
    %287 = vmatprep.subr.mxu0 0.0
    %288 = vmatpush1.msra.mxu0 0.0
    %289 = vmatprep.subr.mxu0 0.0
    %290 = vmatpush1.msra.mxu0 0.0
    %291 = vmatprep.subr.mxu0 0.0
    %292 = vmatpush1.msra.mxu0 0.0
    %293 = vmatprep.subr.mxu0 0.0
    %294 = vmatpush1.msra.mxu0 0.0
    %295 = vmatprep.subr.mxu0 0.0
    %296 = vmatpush1.msra.mxu0 0.0
    %297 = vmatprep.subr.mxu0 0.0
    %298 = vmatpush1.msra.mxu0 0.0
    %299 = vmatprep.subr.mxu0 0.0
    %300 = vmatpush1.msra.mxu0 %v271
    %301 = vmatprep.subr.mxu0 0.0
    %302 = vmatpush1.msra.mxu0 %v270
    %303 = vmatprep.subr.mxu0 0.0
    %304 = vmatpush1.msra.mxu0 %v269
    %305 = vmatprep.subr.mxu0 0.0
    %306 = vmatpush1.msra.mxu0 %v268
    %307 = vmatprep.subr.mxu0 0.0
    %308 = vmatpush2.msra.mxu0 0.0
    %309 = vmatprep.subr.mxu0 0.0
    %310 = vmatpush2.msra.mxu0 0.0
    %311 = vmatprep.subr.mxu0 0.0
    %312 = vmatpush2.msra.mxu0 0.0
    %313 = vmatprep.subr.mxu0 0.0
    %314 = vmatpush2.msra.mxu0 0.0
    %315 = vmatprep.subr.mxu0 0.0
    %316 = vmatpush2.msra.mxu0 0.0
    %317 = vmatprep.subr.mxu0 0.0
    %318 = vmatpush2.msra.mxu0 0.0
    %319 = vmatprep.subr.mxu0 0.0
    %320 = vmatpush2.msra.mxu0 0.0
    %321 = vmatprep.subr.mxu0 0.0
    %322 = vmatpush2.msra.mxu0 0.0
    %323 = vmatprep.subr.mxu0 0.0
    %324 = vmatpush2.msra.mxu0 0.0
    %325 = vmatprep.subr.mxu0 0.0
    %326 = vmatpush2.msra.mxu0 0.0
    %327 = vmatprep.subr.mxu0 0.0
    %328 = vmatpush2.msra.mxu0 0.0
    %329 = vmatprep.subr.mxu0 0.0
    %330 = vmatpush2.msra.mxu0 0.0
    %331 = vmatprep.subr.mxu0 0.0
    %332 = vmatpush2.msra.mxu0 0.0
    %333 = vmatprep.subr.mxu0 0.0
    %334 = vmatpush2.msra.mxu0 0.0
    %335 = vmatprep.subr.mxu0 0.0
    %336 = vmatpush2.msra.mxu0 0.0
    %337 = vmatprep.subr.mxu0 0.0
    %338 = vmatpush2.msra.mxu0 0.0
    %339 = vmatprep.mubr.f32.mxu0 0.0
    %340 = vmatmul.mubr.f32.gmra.mxu0 %v273
    %v341 = vpop.f32.mrf.mxu0
    %v342 = vadd.f32 0.0, %v341
    %v343 = vpop.f32.mrf.mxu0
    %344 = vdwg.mxu0
    %v345 = vadd.f32 %v250, %v342
    %v346 = vxor.u32 %v345, 2147483648
    %v347 = vmul.f32 %v346, 1.442695
    %v348 = vpow.pop %v347
    %v349 = vadd.f32 %v348, 1.0
    %v350 = vrcp.pop %v349
    %v351 = vmul.f32 1.0, %v350
    %v352 = vtanh.pop %v345
    %v353 = vmul.f32 %v351, 0.0
    %355 = vrot.lane.b32.xlu0 %v352, 64
    %v356 = vpop.permute.xlu0 %355
    %v358 = vmul.f32 %v351, %v356
    %360 = vrot.lane.b32.xlu0 %v358, 32
    %v361 = vpop.permute.xlu0 %360
    %v363 = vadd.f32 %v353, %v361
    %v364 = vtanh.pop %v363
    %366 = vrot.lane.b32.xlu0 %v364, 64
    %v367 = vpop.permute.xlu0 %366
    %v369 = vmul.f32 %v351, %v367
    %371 = vrot.lane.b32.xlu0 %v369, 32
    %v372 = vpop.permute.xlu0 %371
    %v373 = vsel %vm170, %v372, 0
    %375 = vmatprep.subr.mxu0 0.0
    %376 = vmatpush1.msra.mxu0 0.0
    %377 = vmatprep.subr.mxu0 0.0
    %378 = vmatpush1.msra.mxu0 0.0
    %379 = vmatprep.subr.mxu0 0.0
    %380 = vmatpush1.msra.mxu0 0.0
    %381 = vmatprep.subr.mxu0 0.0
    %382 = vmatpush1.msra.mxu0 0.0
    %383 = vmatprep.subr.mxu0 0.0
    %384 = vmatpush1.msra.mxu0 0.0
    %385 = vmatprep.subr.mxu0 0.0
    %386 = vmatpush1.msra.mxu0 0.0
    %387 = vmatprep.subr.mxu0 0.0
    %388 = vmatpush1.msra.mxu0 0.0
    %389 = vmatprep.subr.mxu0 0.0
    %390 = vmatpush1.msra.mxu0 0.0
    %391 = vmatprep.subr.mxu0 0.0
    %392 = vmatpush1.msra.mxu0 0.0
    %393 = vmatprep.subr.mxu0 0.0
    %394 = vmatpush1.msra.mxu0 0.0
    %395 = vmatprep.subr.mxu0 0.0
    %396 = vmatpush1.msra.mxu0 0.0
    %397 = vmatprep.subr.mxu0 0.0
    %398 = vmatpush1.msra.mxu0 0.0
    %399 = vmatprep.subr.mxu0 0.0
    %400 = vmatpush1.msra.mxu0 %v271
    %401 = vmatprep.subr.mxu0 0.0
    %402 = vmatpush1.msra.mxu0 %v270
    %403 = vmatprep.subr.mxu0 0.0
    %404 = vmatpush1.msra.mxu0 %v269
    %405 = vmatprep.subr.mxu0 0.0
    %406 = vmatpush1.msra.mxu0 %v268
    %407 = vmatprep.subr.mxu0 0.0
    %408 = vmatpush2.msra.mxu0 0.0
    %409 = vmatprep.subr.mxu0 0.0
    %410 = vmatpush2.msra.mxu0 0.0
    %411 = vmatprep.subr.mxu0 0.0
    %412 = vmatpush2.msra.mxu0 0.0
    %413 = vmatprep.subr.mxu0 0.0
    %414 = vmatpush2.msra.mxu0 0.0
    %415 = vmatprep.subr.mxu0 0.0
    %416 = vmatpush2.msra.mxu0 0.0
    %417 = vmatprep.subr.mxu0 0.0
    %418 = vmatpush2.msra.mxu0 0.0
    %419 = vmatprep.subr.mxu0 0.0
    %420 = vmatpush2.msra.mxu0 0.0
    %421 = vmatprep.subr.mxu0 0.0
    %422 = vmatpush2.msra.mxu0 0.0
    %423 = vmatprep.subr.mxu0 0.0
    %424 = vmatpush2.msra.mxu0 0.0
    %425 = vmatprep.subr.mxu0 0.0
    %426 = vmatpush2.msra.mxu0 0.0
    %427 = vmatprep.subr.mxu0 0.0
    %428 = vmatpush2.msra.mxu0 0.0
    %429 = vmatprep.subr.mxu0 0.0
    %430 = vmatpush2.msra.mxu0 0.0
    %431 = vmatprep.subr.mxu0 0.0
    %432 = vmatpush2.msra.mxu0 0.0
    %433 = vmatprep.subr.mxu0 0.0
    %434 = vmatpush2.msra.mxu0 0.0
    %435 = vmatprep.subr.mxu0 0.0
    %436 = vmatpush2.msra.mxu0 0.0
    %437 = vmatprep.subr.mxu0 0.0
    %438 = vmatpush2.msra.mxu0 0.0
    %439 = vmatprep.mubr.f32.mxu0 0.0
    %440 = vmatmul.mubr.f32.gmra.mxu0 %v373
    %v441 = vpop.f32.mrf.mxu0
    %v442 = vadd.f32 0.0, %v441
    %v443 = vpop.f32.mrf.mxu0
    %444 = vdwg.mxu0
    %v446 = vrot.slane %v442, 4
    %v448 = vadd.f32 %v250, %v446
    %v449 = vxor.u32 %v448, 2147483648
    %v450 = vmul.f32 %v449, 1.442695
    %v451 = vpow.pop %v450
    %v452 = vadd.f32 %v451, 1.0
    %v453 = vrcp.pop %v452
    %v454 = vmul.f32 1.0, %v453
    %v455 = vtanh.pop %v448
    %v457 = vrot.slane %v363, 4
    %v459 = vmul.f32 %v454, %v457
    %461 = vrot.lane.b32.xlu0 %v455, 64
    %v462 = vpop.permute.xlu0 %461
    %v464 = vmul.f32 %v454, %v462
    %466 = vrot.lane.b32.xlu0 %v464, 32
    %v467 = vpop.permute.xlu0 %466
    %v469 = vadd.f32 %v459, %v467
    %v470 = vtanh.pop %v469
    %472 = vrot.lane.b32.xlu0 %v470, 64
    %v473 = vpop.permute.xlu0 %472
    %v475 = vmul.f32 %v454, %v473
    %v477 = vrot.slane %v475, 4
    %478 = vrot.lane.b32.xlu0 %v477, 32
    %v479 = vpop.permute.xlu0 %478
    %v480 = vsel %vm170, %v479, 0
    %482 = vmatprep.subr.mxu0 0.0
    %483 = vmatpush1.msra.mxu0 0.0
    %484 = vmatprep.subr.mxu0 0.0
    %485 = vmatpush1.msra.mxu0 0.0
    %486 = vmatprep.subr.mxu0 0.0
    %487 = vmatpush1.msra.mxu0 0.0
    %488 = vmatprep.subr.mxu0 0.0
    %489 = vmatpush1.msra.mxu0 0.0
    %490 = vmatprep.subr.mxu0 0.0
    %491 = vmatpush1.msra.mxu0 0.0
    %492 = vmatprep.subr.mxu0 0.0
    %493 = vmatpush1.msra.mxu0 0.0
    %494 = vmatprep.subr.mxu0 0.0
    %495 = vmatpush1.msra.mxu0 0.0
    %496 = vmatprep.subr.mxu0 0.0
    %497 = vmatpush1.msra.mxu0 0.0
    %498 = vmatprep.subr.mxu0 0.0
    %499 = vmatpush1.msra.mxu0 0.0
    %500 = vmatprep.subr.mxu0 0.0
    %501 = vmatpush1.msra.mxu0 0.0
    %502 = vmatprep.subr.mxu0 0.0
    %503 = vmatpush1.msra.mxu0 0.0
    %504 = vmatprep.subr.mxu0 0.0
    %505 = vmatpush1.msra.mxu0 0.0
    %506 = vmatprep.subr.mxu0 0.0
    %507 = vmatpush1.msra.mxu0 %v271
    %508 = vmatprep.subr.mxu0 0.0
    %509 = vmatpush1.msra.mxu0 %v270
    %510 = vmatprep.subr.mxu0 0.0
    %511 = vmatpush1.msra.mxu0 %v269
    %512 = vmatprep.subr.mxu0 0.0
    %513 = vmatpush1.msra.mxu0 %v268
    %514 = vmatprep.subr.mxu0 0.0
    %515 = vmatpush2.msra.mxu0 0.0
    %516 = vmatprep.subr.mxu0 0.0
    %517 = vmatpush2.msra.mxu0 0.0
    %518 = vmatprep.subr.mxu0 0.0
    %519 = vmatpush2.msra.mxu0 0.0
    %520 = vmatprep.subr.mxu0 0.0
    %521 = vmatpush2.msra.mxu0 0.0
    %522 = vmatprep.subr.mxu0 0.0
    %523 = vmatpush2.msra.mxu0 0.0
    %524 = vmatprep.subr.mxu0 0.0
    %525 = vmatpush2.msra.mxu0 0.0
    %526 = vmatprep.subr.mxu0 0.0
    %527 = vmatpush2.msra.mxu0 0.0
    %528 = vmatprep.subr.mxu0 0.0
    %529 = vmatpush2.msra.mxu0 0.0
    %530 = vmatprep.subr.mxu0 0.0
    %531 = vmatpush2.msra.mxu0 0.0
    %532 = vmatprep.subr.mxu0 0.0
    %533 = vmatpush2.msra.mxu0 0.0
    %534 = vmatprep.subr.mxu0 0.0
    %535 = vmatpush2.msra.mxu0 0.0
    %536 = vmatprep.subr.mxu0 0.0
    %537 = vmatpush2.msra.mxu0 0.0
    %538 = vmatprep.subr.mxu0 0.0
    %539 = vmatpush2.msra.mxu0 0.0
    %540 = vmatprep.subr.mxu0 0.0
    %541 = vmatpush2.msra.mxu0 0.0
    %542 = vmatprep.subr.mxu0 0.0
    %543 = vmatpush2.msra.mxu0 0.0
    %544 = vmatprep.subr.mxu0 0.0
    %545 = vmatpush2.msra.mxu0 0.0
    %546 = vmatprep.mubr.f32.mxu0 0.0
    %547 = vmatmul.mubr.f32.gmra.mxu0 %v480
    %v548 = vpop.f32.mrf.mxu0
    %v549 = vadd.f32 0.0, %v548
    %v550 = vpop.f32.mrf.mxu0
    %551 = vdwg.mxu0
    %v552 = vadd.f32 %v255, %v549
    %v553 = vxor.u32 %v552, 2147483648
    %v554 = vmul.f32 %v553, 1.442695
    %v555 = vpow.pop %v554
    %v556 = vadd.f32 %v555, 1.0
    %v557 = vrcp.pop %v556
    %v558 = vmul.f32 1.0, %v557
    %v559 = vtanh.pop %v552
    %v561 = vrot.slane %v469, 4
    %v563 = vmul.f32 %v558, %v561
    %565 = vrot.lane.b32.xlu0 %v559, 64
    %v566 = vpop.permute.xlu0 %565
    %v568 = vmul.f32 %v558, %v566
    %570 = vrot.lane.b32.xlu0 %v568, 32
    %v571 = vpop.permute.xlu0 %570
    %v573 = vadd.f32 %v563, %v571
    %v574 = vtanh.pop %v573
    %576 = vrot.lane.b32.xlu0 %v574, 64
    %v577 = vpop.permute.xlu0 %576
    %v579 = vmul.f32 %v558, %v577
    %581 = vrot.lane.b32.xlu0 %v579, 32
    %v582 = vpop.permute.xlu0 %581
    %v583 = vsel %vm170, %v582, 0
    %585 = vmatprep.subr.mxu0 0.0
    %586 = vmatpush1.msra.mxu0 0.0
    %587 = vmatprep.subr.mxu0 0.0
    %588 = vmatpush1.msra.mxu0 0.0
    %589 = vmatprep.subr.mxu0 0.0
    %590 = vmatpush1.msra.mxu0 0.0
    %591 = vmatprep.subr.mxu0 0.0
    %592 = vmatpush1.msra.mxu0 0.0
    %593 = vmatprep.subr.mxu0 0.0
    %594 = vmatpush1.msra.mxu0 0.0
    %595 = vmatprep.subr.mxu0 0.0
    %596 = vmatpush1.msra.mxu0 0.0
    %597 = vmatprep.subr.mxu0 0.0
    %598 = vmatpush1.msra.mxu0 0.0
    %599 = vmatprep.subr.mxu0 0.0
    %600 = vmatpush1.msra.mxu0 0.0
    %601 = vmatprep.subr.mxu0 0.0
    %602 = vmatpush1.msra.mxu0 0.0
    %603 = vmatprep.subr.mxu0 0.0
    %604 = vmatpush1.msra.mxu0 0.0
    %605 = vmatprep.subr.mxu0 0.0
    %606 = vmatpush1.msra.mxu0 0.0
    %607 = vmatprep.subr.mxu0 0.0
    %608 = vmatpush1.msra.mxu0 0.0
    %609 = vmatprep.subr.mxu0 0.0
    %610 = vmatpush1.msra.mxu0 %v271
    %611 = vmatprep.subr.mxu0 0.0
    %612 = vmatpush1.msra.mxu0 %v270
    %613 = vmatprep.subr.mxu0 0.0
    %614 = vmatpush1.msra.mxu0 %v269
    %615 = vmatprep.subr.mxu0 0.0
    %616 = vmatpush1.msra.mxu0 %v268
    %617 = vmatprep.subr.mxu0 0.0
    %618 = vmatpush2.msra.mxu0 0.0
    %619 = vmatprep.subr.mxu0 0.0
    %620 = vmatpush2.msra.mxu0 0.0
    %621 = vmatprep.subr.mxu0 0.0
    %622 = vmatpush2.msra.mxu0 0.0
    %623 = vmatprep.subr.mxu0 0.0
    %624 = vmatpush2.msra.mxu0 0.0
    %625 = vmatprep.subr.mxu0 0.0
    %626 = vmatpush2.msra.mxu0 0.0
    %627 = vmatprep.subr.mxu0 0.0
    %628 = vmatpush2.msra.mxu0 0.0
    %629 = vmatprep.subr.mxu0 0.0
    %630 = vmatpush2.msra.mxu0 0.0
    %631 = vmatprep.subr.mxu0 0.0
    %632 = vmatpush2.msra.mxu0 0.0
    %633 = vmatprep.subr.mxu0 0.0
    %634 = vmatpush2.msra.mxu0 0.0
    %635 = vmatprep.subr.mxu0 0.0
    %636 = vmatpush2.msra.mxu0 0.0
    %637 = vmatprep.subr.mxu0 0.0
    %638 = vmatpush2.msra.mxu0 0.0
    %639 = vmatprep.subr.mxu0 0.0
    %640 = vmatpush2.msra.mxu0 0.0
    %641 = vmatprep.subr.mxu0 0.0
    %642 = vmatpush2.msra.mxu0 0.0
    %643 = vmatprep.subr.mxu0 0.0
    %644 = vmatpush2.msra.mxu0 0.0
    %645 = vmatprep.subr.mxu0 0.0
    %646 = vmatpush2.msra.mxu0 0.0
    %647 = vmatprep.subr.mxu0 0.0
    %648 = vmatpush2.msra.mxu0 0.0
    %649 = vmatprep.mubr.f32.mxu0 0.0
    %650 = vmatmul.mubr.f32.gmra.mxu0 %v583
    %v651 = vpop.f32.mrf.mxu0
    %v652 = vadd.f32 0.0, %v651
    %v653 = vpop.f32.mrf.mxu0
    %654 = vdwg.mxu0
    %v656 = vrot.slane %v652, 4
    %v658 = vadd.f32 %v255, %v656
    %v659 = vxor.u32 %v658, 2147483648
    %v660 = vmul.f32 %v659, 1.442695
    %v661 = vpow.pop %v660
    %v662 = vadd.f32 %v661, 1.0
    %v663 = vrcp.pop %v662
    %v664 = vmul.f32 1.0, %v663
    %v665 = vtanh.pop %v658
    %v667 = vrot.slane %v573, 4
    %v669 = vmul.f32 %v664, %v667
    %671 = vrot.lane.b32.xlu0 %v665, 64
    %v672 = vpop.permute.xlu0 %671
    %v674 = vmul.f32 %v664, %v672
    %676 = vrot.lane.b32.xlu0 %v674, 32
    %v677 = vpop.permute.xlu0 %676
    %v679 = vadd.f32 %v669, %v677
    %v680 = vtanh.pop %v679
    %682 = vrot.lane.b32.xlu0 %v680, 64
    %v683 = vpop.permute.xlu0 %682
    %v685 = vmul.f32 %v664, %v683
    %v687 = vrot.slane %v685, 4
    %688 = vrot.lane.b32.xlu0 %v687, 32
    %v689 = vpop.permute.xlu0 %688
    %v690 = vsel %vm170, %v689, 0
    %692 = vmatprep.subr.mxu0 0.0
    %693 = vmatpush1.msra.mxu0 0.0
    %694 = vmatprep.subr.mxu0 0.0
    %695 = vmatpush1.msra.mxu0 0.0
    %696 = vmatprep.subr.mxu0 0.0
    %697 = vmatpush1.msra.mxu0 0.0
    %698 = vmatprep.subr.mxu0 0.0
    %699 = vmatpush1.msra.mxu0 0.0
    %700 = vmatprep.subr.mxu0 0.0
    %701 = vmatpush1.msra.mxu0 0.0
    %702 = vmatprep.subr.mxu0 0.0
    %703 = vmatpush1.msra.mxu0 0.0
    %704 = vmatprep.subr.mxu0 0.0
    %705 = vmatpush1.msra.mxu0 0.0
    %706 = vmatprep.subr.mxu0 0.0
    %707 = vmatpush1.msra.mxu0 0.0
    %708 = vmatprep.subr.mxu0 0.0
    %709 = vmatpush1.msra.mxu0 0.0
    %710 = vmatprep.subr.mxu0 0.0
    %711 = vmatpush1.msra.mxu0 0.0
    %712 = vmatprep.subr.mxu0 0.0
    %713 = vmatpush1.msra.mxu0 0.0
    %714 = vmatprep.subr.mxu0 0.0
    %715 = vmatpush1.msra.mxu0 0.0
    %716 = vmatprep.subr.mxu0 0.0
    %717 = vmatpush1.msra.mxu0 %v271
    %718 = vmatprep.subr.mxu0 0.0
    %719 = vmatpush1.msra.mxu0 %v270
    %720 = vmatprep.subr.mxu0 0.0
    %721 = vmatpush1.msra.mxu0 %v269
    %722 = vmatprep.subr.mxu0 0.0
    %723 = vmatpush1.msra.mxu0 %v268
    %724 = vmatprep.subr.mxu0 0.0
    %725 = vmatpush2.msra.mxu0 0.0
    %726 = vmatprep.subr.mxu0 0.0
    %727 = vmatpush2.msra.mxu0 0.0
    %728 = vmatprep.subr.mxu0 0.0
    %729 = vmatpush2.msra.mxu0 0.0
    %730 = vmatprep.subr.mxu0 0.0
    %731 = vmatpush2.msra.mxu0 0.0
    %732 = vmatprep.subr.mxu0 0.0
    %733 = vmatpush2.msra.mxu0 0.0
    %734 = vmatprep.subr.mxu0 0.0
    %735 = vmatpush2.msra.mxu0 0.0
    %736 = vmatprep.subr.mxu0 0.0
    %737 = vmatpush2.msra.mxu0 0.0
    %738 = vmatprep.subr.mxu0 0.0
    %739 = vmatpush2.msra.mxu0 0.0
    %740 = vmatprep.subr.mxu0 0.0
    %741 = vmatpush2.msra.mxu0 0.0
    %742 = vmatprep.subr.mxu0 0.0
    %743 = vmatpush2.msra.mxu0 0.0
    %744 = vmatprep.subr.mxu0 0.0
    %745 = vmatpush2.msra.mxu0 0.0
    %746 = vmatprep.subr.mxu0 0.0
    %747 = vmatpush2.msra.mxu0 0.0
    %748 = vmatprep.subr.mxu0 0.0
    %749 = vmatpush2.msra.mxu0 0.0
    %750 = vmatprep.subr.mxu0 0.0
    %751 = vmatpush2.msra.mxu0 0.0
    %752 = vmatprep.subr.mxu0 0.0
    %753 = vmatpush2.msra.mxu0 0.0
    %754 = vmatprep.subr.mxu0 0.0
    %755 = vmatpush2.msra.mxu0 0.0
    %756 = vmatprep.mubr.f32.mxu0 0.0
    %757 = vmatmul.mubr.f32.gmra.mxu0 %v690
    %v758 = vpop.f32.mrf.mxu0
    %v759 = vadd.f32 0.0, %v758
    %v760 = vpop.f32.mrf.mxu0
    %761 = vdwg.mxu0
    %v762 = vadd.f32 %v260, %v759
    %v763 = vxor.u32 %v762, 2147483648
    %v764 = vmul.f32 %v763, 1.442695
    %v765 = vpow.pop %v764
    %v766 = vadd.f32 %v765, 1.0
    %v767 = vrcp.pop %v766
    %v768 = vmul.f32 1.0, %v767
    %v769 = vtanh.pop %v762
    %v771 = vrot.slane %v679, 4
    %v773 = vmul.f32 %v768, %v771
    %775 = vrot.lane.b32.xlu0 %v769, 64
    %v776 = vpop.permute.xlu0 %775
    %v778 = vmul.f32 %v768, %v776
    %780 = vrot.lane.b32.xlu0 %v778, 32
    %v781 = vpop.permute.xlu0 %780
    %v783 = vadd.f32 %v773, %v781
    %v784 = vtanh.pop %v783
    %786 = vrot.lane.b32.xlu0 %v784, 64
    %v787 = vpop.permute.xlu0 %786
    %v789 = vmul.f32 %v768, %v787
    %791 = vrot.lane.b32.xlu0 %v789, 32
    %v792 = vpop.permute.xlu0 %791
    %v793 = vsel %vm170, %v792, 0
    %795 = vmatprep.subr.mxu0 0.0
    %796 = vmatpush1.msra.mxu0 0.0
    %797 = vmatprep.subr.mxu0 0.0
    %798 = vmatpush1.msra.mxu0 0.0
    %799 = vmatprep.subr.mxu0 0.0
    %800 = vmatpush1.msra.mxu0 0.0
    %801 = vmatprep.subr.mxu0 0.0
    %802 = vmatpush1.msra.mxu0 0.0
    %803 = vmatprep.subr.mxu0 0.0
    %804 = vmatpush1.msra.mxu0 0.0
    %805 = vmatprep.subr.mxu0 0.0
    %806 = vmatpush1.msra.mxu0 0.0
    %807 = vmatprep.subr.mxu0 0.0
    %808 = vmatpush1.msra.mxu0 0.0
    %809 = vmatprep.subr.mxu0 0.0
    %810 = vmatpush1.msra.mxu0 0.0
    %811 = vmatprep.subr.mxu0 0.0
    %812 = vmatpush1.msra.mxu0 0.0
    %813 = vmatprep.subr.mxu0 0.0
    %814 = vmatpush1.msra.mxu0 0.0
    %815 = vmatprep.subr.mxu0 0.0
    %816 = vmatpush1.msra.mxu0 0.0
    %817 = vmatprep.subr.mxu0 0.0
    %818 = vmatpush1.msra.mxu0 0.0
    %819 = vmatprep.subr.mxu0 0.0
    %820 = vmatpush1.msra.mxu0 %v271
    %821 = vmatprep.subr.mxu0 0.0
    %822 = vmatpush1.msra.mxu0 %v270
    %823 = vmatprep.subr.mxu0 0.0
    %824 = vmatpush1.msra.mxu0 %v269
    %825 = vmatprep.subr.mxu0 0.0
    %826 = vmatpush1.msra.mxu0 %v268
    %827 = vmatprep.subr.mxu0 0.0
    %828 = vmatpush2.msra.mxu0 0.0
    %829 = vmatprep.subr.mxu0 0.0
    %830 = vmatpush2.msra.mxu0 0.0
    %831 = vmatprep.subr.mxu0 0.0
    %832 = vmatpush2.msra.mxu0 0.0
    %833 = vmatprep.subr.mxu0 0.0
    %834 = vmatpush2.msra.mxu0 0.0
    %835 = vmatprep.subr.mxu0 0.0
    %836 = vmatpush2.msra.mxu0 0.0
    %837 = vmatprep.subr.mxu0 0.0
    %838 = vmatpush2.msra.mxu0 0.0
    %839 = vmatprep.subr.mxu0 0.0
    %840 = vmatpush2.msra.mxu0 0.0
    %841 = vmatprep.subr.mxu0 0.0
    %842 = vmatpush2.msra.mxu0 0.0
    %843 = vmatprep.subr.mxu0 0.0
    %844 = vmatpush2.msra.mxu0 0.0
    %845 = vmatprep.subr.mxu0 0.0
    %846 = vmatpush2.msra.mxu0 0.0
    %847 = vmatprep.subr.mxu0 0.0
    %848 = vmatpush2.msra.mxu0 0.0
    %849 = vmatprep.subr.mxu0 0.0
    %850 = vmatpush2.msra.mxu0 0.0
    %851 = vmatprep.subr.mxu0 0.0
    %852 = vmatpush2.msra.mxu0 0.0
    %853 = vmatprep.subr.mxu0 0.0
    %854 = vmatpush2.msra.mxu0 0.0
    %855 = vmatprep.subr.mxu0 0.0
    %856 = vmatpush2.msra.mxu0 0.0
    %857 = vmatprep.subr.mxu0 0.0
    %858 = vmatpush2.msra.mxu0 0.0
    %859 = vmatprep.mubr.f32.mxu0 0.0
    %860 = vmatmul.mubr.f32.gmra.mxu0 %v793
    %v861 = vpop.f32.mrf.mxu0
    %v862 = vadd.f32 0.0, %v861
    %v863 = vpop.f32.mrf.mxu0
    %864 = vdwg.mxu0
    %v866 = vrot.slane %v862, 4
    %v868 = vadd.f32 %v260, %v866
    %v869 = vxor.u32 %v868, 2147483648
    %v870 = vmul.f32 %v869, 1.442695
    %v871 = vpow.pop %v870
    %v872 = vadd.f32 %v871, 1.0
    %v873 = vrcp.pop %v872
    %v874 = vmul.f32 1.0, %v873
    %v875 = vtanh.pop %v868
    %v877 = vrot.slane %v783, 4
    %v879 = vmul.f32 %v874, %v877
    %881 = vrot.lane.b32.xlu0 %v875, 64
    %v882 = vpop.permute.xlu0 %881
    %v884 = vmul.f32 %v874, %v882
    %886 = vrot.lane.b32.xlu0 %v884, 32
    %v887 = vpop.permute.xlu0 %886
    %v889 = vadd.f32 %v879, %v887
    %v890 = vtanh.pop %v889
    %892 = vrot.lane.b32.xlu0 %v890, 64
    %v893 = vpop.permute.xlu0 %892
    %v895 = vmul.f32 %v874, %v893
    %v897 = vrot.slane %v895, 4
    %898 = vrot.lane.b32.xlu0 %v897, 32
    %v899 = vpop.permute.xlu0 %898
    %v900 = vsel %vm170, %v899, 0
    %902 = vmatprep.subr.mxu0 0.0
    %903 = vmatpush1.msra.mxu0 0.0
    %904 = vmatprep.subr.mxu0 0.0
    %905 = vmatpush1.msra.mxu0 0.0
    %906 = vmatprep.subr.mxu0 0.0
    %907 = vmatpush1.msra.mxu0 0.0
    %908 = vmatprep.subr.mxu0 0.0
    %909 = vmatpush1.msra.mxu0 0.0
    %910 = vmatprep.subr.mxu0 0.0
    %911 = vmatpush1.msra.mxu0 0.0
    %912 = vmatprep.subr.mxu0 0.0
    %913 = vmatpush1.msra.mxu0 0.0
    %914 = vmatprep.subr.mxu0 0.0
    %915 = vmatpush1.msra.mxu0 0.0
    %916 = vmatprep.subr.mxu0 0.0
    %917 = vmatpush1.msra.mxu0 0.0
    %918 = vmatprep.subr.mxu0 0.0
    %919 = vmatpush1.msra.mxu0 0.0
    %920 = vmatprep.subr.mxu0 0.0
    %921 = vmatpush1.msra.mxu0 0.0
    %922 = vmatprep.subr.mxu0 0.0
    %923 = vmatpush1.msra.mxu0 0.0
    %924 = vmatprep.subr.mxu0 0.0
    %925 = vmatpush1.msra.mxu0 0.0
    %926 = vmatprep.subr.mxu0 0.0
    %927 = vmatpush1.msra.mxu0 %v271
    %928 = vmatprep.subr.mxu0 0.0
    %929 = vmatpush1.msra.mxu0 %v270
    %930 = vmatprep.subr.mxu0 0.0
    %931 = vmatpush1.msra.mxu0 %v269
    %932 = vmatprep.subr.mxu0 0.0
    %933 = vmatpush1.msra.mxu0 %v268
    %934 = vmatprep.subr.mxu0 0.0
    %935 = vmatpush2.msra.mxu0 0.0
    %936 = vmatprep.subr.mxu0 0.0
    %937 = vmatpush2.msra.mxu0 0.0
    %938 = vmatprep.subr.mxu0 0.0
    %939 = vmatpush2.msra.mxu0 0.0
    %940 = vmatprep.subr.mxu0 0.0
    %941 = vmatpush2.msra.mxu0 0.0
    %942 = vmatprep.subr.mxu0 0.0
    %943 = vmatpush2.msra.mxu0 0.0
    %944 = vmatprep.subr.mxu0 0.0
    %945 = vmatpush2.msra.mxu0 0.0
    %946 = vmatprep.subr.mxu0 0.0
    %947 = vmatpush2.msra.mxu0 0.0
    %948 = vmatprep.subr.mxu0 0.0
    %949 = vmatpush2.msra.mxu0 0.0
    %950 = vmatprep.subr.mxu0 0.0
    %951 = vmatpush2.msra.mxu0 0.0
    %952 = vmatprep.subr.mxu0 0.0
    %953 = vmatpush2.msra.mxu0 0.0
    %954 = vmatprep.subr.mxu0 0.0
    %955 = vmatpush2.msra.mxu0 0.0
    %956 = vmatprep.subr.mxu0 0.0
    %957 = vmatpush2.msra.mxu0 0.0
    %958 = vmatprep.subr.mxu0 0.0
    %959 = vmatpush2.msra.mxu0 0.0
    %960 = vmatprep.subr.mxu0 0.0
    %961 = vmatpush2.msra.mxu0 0.0
    %962 = vmatprep.subr.mxu0 0.0
    %963 = vmatpush2.msra.mxu0 0.0
    %964 = vmatprep.subr.mxu0 0.0
    %965 = vmatpush2.msra.mxu0 0.0
    %966 = vmatprep.mubr.f32.mxu0 0.0
    %967 = vmatmul.mubr.f32.gmra.mxu0 %v900
    %v968 = vpop.f32.mrf.mxu0
    %v969 = vadd.f32 0.0, %v968
    %v970 = vpop.f32.mrf.mxu0
    %971 = vdwg.mxu0
    %v972 = vadd.f32 %v265, %v969
    %v973 = vxor.u32 %v972, 2147483648
    %v974 = vmul.f32 %v973, 1.442695
    %v975 = vpow.pop %v974
    %v976 = vadd.f32 %v975, 1.0
    %v977 = vrcp.pop %v976
    %v978 = vmul.f32 1.0, %v977
    %v979 = vtanh.pop %v972
    %v981 = vrot.slane %v889, 4
    %v983 = vmul.f32 %v978, %v981
    %985 = vrot.lane.b32.xlu0 %v979, 64
    %v986 = vpop.permute.xlu0 %985
    %v988 = vmul.f32 %v978, %v986
    %990 = vrot.lane.b32.xlu0 %v988, 32
    %v991 = vpop.permute.xlu0 %990
    %v993 = vadd.f32 %v983, %v991
    %v994 = vtanh.pop %v993
    %996 = vrot.lane.b32.xlu0 %v994, 64
    %v997 = vpop.permute.xlu0 %996
    %v999 = vmul.f32 %v978, %v997
    %1001 = vrot.lane.b32.xlu0 %v999, 32
    %v1002 = vpop.permute.xlu0 %1001
    %v1003 = vsel %vm170, %v1002, 0
    %1005 = vmatprep.subr.mxu0 0.0
    %1006 = vmatpush1.msra.mxu0 0.0
    %1007 = vmatprep.subr.mxu0 0.0
    %1008 = vmatpush1.msra.mxu0 0.0
    %1009 = vmatprep.subr.mxu0 0.0
    %1010 = vmatpush1.msra.mxu0 0.0
    %1011 = vmatprep.subr.mxu0 0.0
    %1012 = vmatpush1.msra.mxu0 0.0
    %1013 = vmatprep.subr.mxu0 0.0
    %1014 = vmatpush1.msra.mxu0 0.0
    %1015 = vmatprep.subr.mxu0 0.0
    %1016 = vmatpush1.msra.mxu0 0.0
    %1017 = vmatprep.subr.mxu0 0.0
    %1018 = vmatpush1.msra.mxu0 0.0
    %1019 = vmatprep.subr.mxu0 0.0
    %1020 = vmatpush1.msra.mxu0 0.0
    %1021 = vmatprep.subr.mxu0 0.0
    %1022 = vmatpush1.msra.mxu0 0.0
    %1023 = vmatprep.subr.mxu0 0.0
    %1024 = vmatpush1.msra.mxu0 0.0
    %1025 = vmatprep.subr.mxu0 0.0
    %1026 = vmatpush1.msra.mxu0 0.0
    %1027 = vmatprep.subr.mxu0 0.0
    %1028 = vmatpush1.msra.mxu0 0.0
    %1029 = vmatprep.subr.mxu0 0.0
    %1030 = vmatpush1.msra.mxu0 %v271
    %1031 = vmatprep.subr.mxu0 0.0
    %1032 = vmatpush1.msra.mxu0 %v270
    %1033 = vmatprep.subr.mxu0 0.0
    %1034 = vmatpush1.msra.mxu0 %v269
    %1035 = vmatprep.subr.mxu0 0.0
    %1036 = vmatpush1.msra.mxu0 %v268
    %1037 = vmatprep.subr.mxu0 0.0
    %1038 = vmatpush2.msra.mxu0 0.0
    %1039 = vmatprep.subr.mxu0 0.0
    %1040 = vmatpush2.msra.mxu0 0.0
    %1041 = vmatprep.subr.mxu0 0.0
    %1042 = vmatpush2.msra.mxu0 0.0
    %1043 = vmatprep.subr.mxu0 0.0
    %1044 = vmatpush2.msra.mxu0 0.0
    %1045 = vmatprep.subr.mxu0 0.0
    %1046 = vmatpush2.msra.mxu0 0.0
    %1047 = vmatprep.subr.mxu0 0.0
    %1048 = vmatpush2.msra.mxu0 0.0
    %1049 = vmatprep.subr.mxu0 0.0
    %1050 = vmatpush2.msra.mxu0 0.0
    %1051 = vmatprep.subr.mxu0 0.0
    %1052 = vmatpush2.msra.mxu0 0.0
    %1053 = vmatprep.subr.mxu0 0.0
    %1054 = vmatpush2.msra.mxu0 0.0
    %1055 = vmatprep.subr.mxu0 0.0
    %1056 = vmatpush2.msra.mxu0 0.0
    %1057 = vmatprep.subr.mxu0 0.0
    %1058 = vmatpush2.msra.mxu0 0.0
    %1059 = vmatprep.subr.mxu0 0.0
    %1060 = vmatpush2.msra.mxu0 0.0
    %1061 = vmatprep.subr.mxu0 0.0
    %1062 = vmatpush2.msra.mxu0 0.0
    %1063 = vmatprep.subr.mxu0 0.0
    %1064 = vmatpush2.msra.mxu0 0.0
    %1065 = vmatprep.subr.mxu0 0.0
    %1066 = vmatpush2.msra.mxu0 0.0
    %1067 = vmatprep.subr.mxu0 0.0
    %1068 = vmatpush2.msra.mxu0 0.0
    %1069 = vmatprep.mubr.f32.mxu0 0.0
    %1070 = vmatmul.mubr.f32.gmra.mxu0 %v1003
    %v1071 = vpop.f32.mrf.mxu0
    %v1072 = vadd.f32 0.0, %v1071
    %v1073 = vpop.f32.mrf.mxu0
    %1074 = vdwg.mxu0
    %v1076 = vrot.slane %v1072, 4
    %v1078 = vadd.f32 %v265, %v1076
    %v1079 = vxor.u32 %v1078, 2147483648
    %v1080 = vmul.f32 %v1079, 1.442695
    %v1081 = vpow.pop %v1080
    %v1082 = vadd.f32 %v1081, 1.0
    %v1083 = vrcp.pop %v1082
    %v1084 = vmul.f32 1.0, %v1083
    %v1085 = vtanh.pop %v1078
    %v1087 = vrot.slane %v993, 4
    %v1089 = vmul.f32 %v1084, %v1087
    %1091 = vrot.lane.b32.xlu0 %v1085, 64
    %v1092 = vpop.permute.xlu0 %1091
    %v1094 = vmul.f32 %v1084, %v1092
    %1096 = vrot.lane.b32.xlu0 %v1094, 32
    %v1097 = vpop.permute.xlu0 %1096
    %v1099 = vadd.f32 %v1089, %v1097
    %v1100 = vtanh.pop %v1099
    %1102 = vrot.lane.b32.xlu0 %v1100, 64
    %v1103 = vpop.permute.xlu0 %1102
    %v1105 = vmul.f32 %v1084, %v1103
    %v1106 = vld [vmem:[%s7] sm:$0xff]
    %v1107 = vld [vmem:[%s7 + $0x8] sm:$0xff]
    %v1108 = vld [vmem:[%s7 + $0x10] sm:$0xff]
    %v1109 = vld [vmem:[%s7 + $0x18] sm:$0xff]
    %v1110 = vld [vmem:[%s7 + $0x20] sm:$0xff]
    %v1111 = vld [vmem:[%s7 + $0x28] sm:$0xff]
    %v1112 = vld [vmem:[%s7 + $0x30] sm:$0xff]
    %v1113 = vld [vmem:[%s7 + $0x38] sm:$0xff]
    %v1114 = vld [vmem:[%s7 + $0x40] sm:$0xff]
    %v1115 = vld [vmem:[%s7 + $0x48] sm:$0xff]
    %v1116 = vld [vmem:[%s7 + $0x50] sm:$0xff]
    %v1117 = vld [vmem:[%s7 + $0x58] sm:$0xff]
    %v1118 = vld [vmem:[%s7 + $0x60] sm:$0xff]
    %v1119 = vld [vmem:[%s7 + $0x68] sm:$0xff]
    %v1120 = vld [vmem:[%s7 + $0x70] sm:$0xff]
    %v1121 = vld [vmem:[%s7 + $0x78] sm:$0xff]
    %v1122 = vld [vmem:[%s8] sm:$0xff]
    %v1123 = vld [vmem:[%s8 + $0x8] sm:$0xff]
    %v1124 = vld [vmem:[%s8 + $0x10] sm:$0xff]
    %v1125 = vld [vmem:[%s8 + $0x18] sm:$0xff]
    %v1126 = vld [vmem:[%s8 + $0x20] sm:$0xff]
    %v1127 = vld [vmem:[%s8 + $0x28] sm:$0xff]
    %v1128 = vld [vmem:[%s8 + $0x30] sm:$0xff]
    %v1129 = vld [vmem:[%s8 + $0x38] sm:$0xff]
    %v1130 = vld [vmem:[%s9] sm:$0x1]
    %v1131 = vld [vmem:[%s10] sm:$0xff]
    %v1132 = vld [vmem:[%s10 + $0x8] sm:$0xff]
    %v1133 = vld [vmem:[%s10 + $0x10] sm:$0xff]
    %v1134 = vld [vmem:[%s10 + $0x18] sm:$0xff]
    %v1135 = vld [vmem:[%s11] sm:$0x1]
    %v1136 = vlaneseq
    %v1137 = vand.u32 %v1136, 127
    %v1138 = vcvt.s32.f32 %v1137
    %1139 = vst [vmem:[#allocation5] sm:$0xf] 0.0
    %v1140 = vld [vmem:[%s2] sm:$0xf]
    %1141 = vmatprep.subr.mxu0 0.0
    %1142 = vmatpush1.msra.mxu0 %v1121
    %1143 = vmatprep.subr.mxu0 0.0
    %1144 = vmatpush1.msra.mxu0 %v1120
    %1145 = vmatprep.subr.mxu0 0.0
    %1146 = vmatpush1.msra.mxu0 %v1119
    %1147 = vmatprep.subr.mxu0 0.0
    %1148 = vmatpush1.msra.mxu0 %v1118
    %1149 = vmatprep.subr.mxu0 0.0
    %1150 = vmatpush1.msra.mxu0 %v1117
    %1151 = vmatprep.subr.mxu0 0.0
    %1152 = vmatpush1.msra.mxu0 %v1116
    %1153 = vmatprep.subr.mxu0 0.0
    %1154 = vmatpush1.msra.mxu0 %v1115
    %1155 = vmatprep.subr.mxu0 0.0
    %1156 = vmatpush1.msra.mxu0 %v1114
    %1157 = vmatprep.subr.mxu0 0.0
    %1158 = vmatpush1.msra.mxu0 %v1113
    %1159 = vmatprep.subr.mxu0 0.0
    %1160 = vmatpush1.msra.mxu0 %v1112
    %1161 = vmatprep.subr.mxu0 0.0
    %1162 = vmatpush1.msra.mxu0 %v1111
    %1163 = vmatprep.subr.mxu0 0.0
    %1164 = vmatpush1.msra.mxu0 %v1110
    %1165 = vmatprep.subr.mxu0 0.0
    %1166 = vmatpush1.msra.mxu0 %v1109
    %1167 = vmatprep.subr.mxu0 0.0
    %1168 = vmatpush1.msra.mxu0 %v1108
    %1169 = vmatprep.subr.mxu0 0.0
    %1170 = vmatpush1.msra.mxu0 %v1107
    %1171 = vmatprep.subr.mxu0 0.0
    %1172 = vmatpush1.msra.mxu0 %v1106
    %1173 = vmatprep.subr.mxu0 0.0
    %1174 = vmatpush2.msra.mxu0 0.0
    %1175 = vmatprep.subr.mxu0 0.0
    %1176 = vmatpush2.msra.mxu0 0.0
    %1177 = vmatprep.subr.mxu0 0.0
    %1178 = vmatpush2.msra.mxu0 0.0
    %1179 = vmatprep.subr.mxu0 0.0
    %1180 = vmatpush2.msra.mxu0 0.0
    %1181 = vmatprep.subr.mxu0 0.0
    %1182 = vmatpush2.msra.mxu0 0.0
    %1183 = vmatprep.subr.mxu0 0.0
    %1184 = vmatpush2.msra.mxu0 0.0
    %1185 = vmatprep.subr.mxu0 0.0
    %1186 = vmatpush2.msra.mxu0 0.0
    %1187 = vmatprep.subr.mxu0 0.0
    %1188 = vmatpush2.msra.mxu0 0.0
    %1189 = vmatprep.subr.mxu0 0.0
    %1190 = vmatpush2.msra.mxu0 0.0
    %1191 = vmatprep.subr.mxu0 0.0
    %1192 = vmatpush2.msra.mxu0 0.0
    %1193 = vmatprep.subr.mxu0 0.0
    %1194 = vmatpush2.msra.mxu0 0.0
    %1195 = vmatprep.subr.mxu0 0.0
    %1196 = vmatpush2.msra.mxu0 0.0
    %1197 = vmatprep.subr.mxu0 0.0
    %1198 = vmatpush2.msra.mxu0 0.0
    %1199 = vmatprep.subr.mxu0 0.0
    %1200 = vmatpush2.msra.mxu0 0.0
    %1201 = vmatprep.subr.mxu0 0.0
    %1202 = vmatpush2.msra.mxu0 0.0
    %1203 = vmatprep.subr.mxu0 0.0
    %1204 = vmatpush2.msra.mxu0 0.0
    %1205 = vmatprep.mubr.f32.mxu0 0.0
    %1206 = vmatmul.mubr.f32.gmra.mxu0 %v1140
    %v1207 = vpop.f32.mrf.mxu0
    %v1208 = vadd.f32 0.0, %v1207
    %v1209 = vpop.f32.mrf.mxu0
    %1210 = vdwg.mxu0
    %v1212 = vrot.slane %v1105, 4
    %1213 = vrot.lane.b32.xlu0 %v1212, 64
    %v1214 = vpop.permute.xlu0 %1213
    %v1216 = vsel %vm170, %v1208, %v1214
    %v1218 = vlaneseq
    %v1219 = vshrl.u32 %v1218, 7
    %v1220 = vsub.s32 0, %v1219
    %v1221 = vrot.slane %v1130, %v1220
    %vm1223 = vcmask 523264
    %v1225 = vsel %vm1223, %v1216, 0
    %1227 = vmatprep.subr.mxu0 0.0
    %1228 = vmatpush1.msra.mxu0 0.0
    %1229 = vmatprep.subr.mxu0 0.0
    %1230 = vmatpush1.msra.mxu0 0.0
    %1231 = vmatprep.subr.mxu0 0.0
    %1232 = vmatpush1.msra.mxu0 0.0
    %1233 = vmatprep.subr.mxu0 0.0
    %1234 = vmatpush1.msra.mxu0 0.0
    %1235 = vmatprep.subr.mxu0 0.0
    %1236 = vmatpush1.msra.mxu0 0.0
    %1237 = vmatprep.subr.mxu0 0.0
    %1238 = vmatpush1.msra.mxu0 0.0
    %1239 = vmatprep.subr.mxu0 0.0
    %1240 = vmatpush1.msra.mxu0 0.0
    %1241 = vmatprep.subr.mxu0 0.0
    %1242 = vmatpush1.msra.mxu0 0.0
    %1243 = vmatprep.subr.mxu0 0.0
    %1244 = vmatpush1.msra.mxu0 %v1129
    %1245 = vmatprep.subr.mxu0 0.0
    %1246 = vmatpush1.msra.mxu0 %v1128
    %1247 = vmatprep.subr.mxu0 0.0
    %1248 = vmatpush1.msra.mxu0 %v1127
    %1249 = vmatprep.subr.mxu0 0.0
    %1250 = vmatpush1.msra.mxu0 %v1126
    %1251 = vmatprep.subr.mxu0 0.0
    %1252 = vmatpush1.msra.mxu0 %v1125
    %1253 = vmatprep.subr.mxu0 0.0
    %1254 = vmatpush1.msra.mxu0 %v1124
    %1255 = vmatprep.subr.mxu0 0.0
    %1256 = vmatpush1.msra.mxu0 %v1123
    %1257 = vmatprep.subr.mxu0 0.0
    %1258 = vmatpush1.msra.mxu0 %v1122
    %1259 = vmatprep.subr.mxu0 0.0
    %1260 = vmatpush2.msra.mxu0 0.0
    %1261 = vmatprep.subr.mxu0 0.0
    %1262 = vmatpush2.msra.mxu0 0.0
    %1263 = vmatprep.subr.mxu0 0.0
    %1264 = vmatpush2.msra.mxu0 0.0
    %1265 = vmatprep.subr.mxu0 0.0
    %1266 = vmatpush2.msra.mxu0 0.0
    %1267 = vmatprep.subr.mxu0 0.0
    %1268 = vmatpush2.msra.mxu0 0.0
    %1269 = vmatprep.subr.mxu0 0.0
    %1270 = vmatpush2.msra.mxu0 0.0
    %1271 = vmatprep.subr.mxu0 0.0
    %1272 = vmatpush2.msra.mxu0 0.0
    %1273 = vmatprep.subr.mxu0 0.0
    %1274 = vmatpush2.msra.mxu0 0.0
    %1275 = vmatprep.subr.mxu0 0.0
    %1276 = vmatpush2.msra.mxu0 0.0
    %1277 = vmatprep.subr.mxu0 0.0
    %1278 = vmatpush2.msra.mxu0 0.0
    %1279 = vmatprep.subr.mxu0 0.0
    %1280 = vmatpush2.msra.mxu0 0.0
    %1281 = vmatprep.subr.mxu0 0.0
    %1282 = vmatpush2.msra.mxu0 0.0
    %1283 = vmatprep.subr.mxu0 0.0
    %1284 = vmatpush2.msra.mxu0 0.0
    %1285 = vmatprep.subr.mxu0 0.0
    %1286 = vmatpush2.msra.mxu0 0.0
    %1287 = vmatprep.subr.mxu0 0.0
    %1288 = vmatpush2.msra.mxu0 0.0
    %1289 = vmatprep.subr.mxu0 0.0
    %1290 = vmatpush2.msra.mxu0 0.0
    %1291 = vmatprep.mubr.f32.mxu0 0.0
    %1292 = vmatmul.mubr.f32.gmra.mxu0 %v1225
    %v1293 = vpop.f32.mrf.mxu0
    %v1294 = vadd.f32 %v1221, %v1293
    %v1295 = vpop.f32.mrf.mxu0
    %1296 = vdwg.mxu0
    %v1297 = vxor.u32 %v1294, 2147483648
    %v1298 = vmul.f32 %v1297, 1.442695
    %v1299 = vpow.pop %v1298
    %v1300 = vadd.f32 %v1299, 1.0
    %v1301 = vrcp.pop %v1300
    %v1302 = vmul.f32 1.0, %v1301
    %v1303 = vtanh.pop %v1294
    %v1305 = vrot.slane %v1099, 4
    %v1307 = vmul.f32 %v1302, %v1305
    %1309 = vrot.lane.b32.xlu0 %v1303, 64
    %v1310 = vpop.permute.xlu0 %1309
    %v1312 = vmul.f32 %v1302, %v1310
    %1314 = vrot.lane.b32.xlu0 %v1312, 32
    %v1315 = vpop.permute.xlu0 %1314
    %v1317 = vadd.f32 %v1307, %v1315
    %v1318 = vtanh.pop %v1317
    %1320 = vrot.lane.b32.xlu0 %v1318, 64
    %v1321 = vpop.permute.xlu0 %1320
    %v1323 = vmul.f32 %v1302, %v1321
    %v1325 = vlaneseq
    %v1326 = vshrl.u32 %v1325, 7
    %v1327 = vsub.s32 0, %v1326
    %v1328 = vrot.slane %v1135, %v1327
    %1331 = vrot.lane.b32.xlu0 %v1323, 32
    %v1332 = vpop.permute.xlu0 %1331
    %v1333 = vsel %vm170, %v1332, 0
    %1335 = vmatprep.subr.mxu0 0.0
    %1336 = vmatpush1.msra.mxu0 0.0
    %1337 = vmatprep.subr.mxu0 0.0
    %1338 = vmatpush1.msra.mxu0 0.0
    %1339 = vmatprep.subr.mxu0 0.0
    %1340 = vmatpush1.msra.mxu0 0.0
    %1341 = vmatprep.subr.mxu0 0.0
    %1342 = vmatpush1.msra.mxu0 0.0
    %1343 = vmatprep.subr.mxu0 0.0
    %1344 = vmatpush1.msra.mxu0 0.0
    %1345 = vmatprep.subr.mxu0 0.0
    %1346 = vmatpush1.msra.mxu0 0.0
    %1347 = vmatprep.subr.mxu0 0.0
    %1348 = vmatpush1.msra.mxu0 0.0
    %1349 = vmatprep.subr.mxu0 0.0
    %1350 = vmatpush1.msra.mxu0 0.0
    %1351 = vmatprep.subr.mxu0 0.0
    %1352 = vmatpush1.msra.mxu0 0.0
    %1353 = vmatprep.subr.mxu0 0.0
    %1354 = vmatpush1.msra.mxu0 0.0
    %1355 = vmatprep.subr.mxu0 0.0
    %1356 = vmatpush1.msra.mxu0 0.0
    %1357 = vmatprep.subr.mxu0 0.0
    %1358 = vmatpush1.msra.mxu0 0.0
    %1359 = vmatprep.subr.mxu0 0.0
    %1360 = vmatpush1.msra.mxu0 %v1134
    %1361 = vmatprep.subr.mxu0 0.0
    %1362 = vmatpush1.msra.mxu0 %v1133
    %1363 = vmatprep.subr.mxu0 0.0
    %1364 = vmatpush1.msra.mxu0 %v1132
    %1365 = vmatprep.subr.mxu0 0.0
    %1366 = vmatpush1.msra.mxu0 %v1131
    %1367 = vmatprep.subr.mxu0 0.0
    %1368 = vmatpush2.msra.mxu0 0.0
    %1369 = vmatprep.subr.mxu0 0.0
    %1370 = vmatpush2.msra.mxu0 0.0
    %1371 = vmatprep.subr.mxu0 0.0
    %1372 = vmatpush2.msra.mxu0 0.0
    %1373 = vmatprep.subr.mxu0 0.0
    %1374 = vmatpush2.msra.mxu0 0.0
    %1375 = vmatprep.subr.mxu0 0.0
    %1376 = vmatpush2.msra.mxu0 0.0
    %1377 = vmatprep.subr.mxu0 0.0
    %1378 = vmatpush2.msra.mxu0 0.0
    %1379 = vmatprep.subr.mxu0 0.0
    %1380 = vmatpush2.msra.mxu0 0.0
    %1381 = vmatprep.subr.mxu0 0.0
    %1382 = vmatpush2.msra.mxu0 0.0
    %1383 = vmatprep.subr.mxu0 0.0
    %1384 = vmatpush2.msra.mxu0 0.0
    %1385 = vmatprep.subr.mxu0 0.0
    %1386 = vmatpush2.msra.mxu0 0.0
    %1387 = vmatprep.subr.mxu0 0.0
    %1388 = vmatpush2.msra.mxu0 0.0
    %1389 = vmatprep.subr.mxu0 0.0
    %1390 = vmatpush2.msra.mxu0 0.0
    %1391 = vmatprep.subr.mxu0 0.0
    %1392 = vmatpush2.msra.mxu0 0.0
    %1393 = vmatprep.subr.mxu0 0.0
    %1394 = vmatpush2.msra.mxu0 0.0
    %1395 = vmatprep.subr.mxu0 0.0
    %1396 = vmatpush2.msra.mxu0 0.0
    %1397 = vmatprep.subr.mxu0 0.0
    %1398 = vmatpush2.msra.mxu0 0.0
    %1399 = vmatprep.mubr.f32.mxu0 0.0
    %1400 = vmatmul.mubr.f32.gmra.mxu0 %v1333
    %v1401 = vpop.f32.mrf.mxu0
    %v1402 = vadd.f32 %v1328, %v1401
    %v1403 = vpop.f32.mrf.mxu0
    %1404 = vdwg.mxu0
    %s1405 = scalar_lea.vmem [#allocation5], 4
    %1406 = vst [vmem:[%s1405] sm:$0xf] %v1402
    %vm1407 = vcmask 1043456
    %v1408 = vsel %vm1407, %v1402, -inf
    %1409 = vmax.xlane.f32.xlu0 %v1408
    %v1410 = vpop.xlane.xlu0 %1409
    %vm1411 = vcmp.eq.f32.partialorder %v1402, %v1410
    %v1412 = vsel %vm1411, %v1138, 128.0
    %v1413 = vsel %vm1407, %v1412, inf
    %1414 = vmin.xlane.f32.xlu0 %v1413
    %v1415 = vpop.xlane.xlu0 %1414
    %vm1416 = vcmp.eq.f32.partialorder %v1138, %v1415
    %v1417 = vsel %vm1416, 1, 0
    %v1418 = vcvt.s32.f32 %v1417
    %s1419 = sld [smem:[#allocation2 + $0x1]]
    %p1420 = scmp.ne.s32.totalorder %s1419, 0
    %s1421 = scalar_select %p1420, 1, 0
    %s1422 = scvt.s32.f32 %s1421
    %s1423 = scalar_lea.vmem %s2, 4
    %v1424 = vld [vmem:[%s1423] sm:$0xf]
    %v1425 = vstv %s1422
    %v1426 = vmul.f32 %v1425, %v1424
    %s1427 = ssub.f32 1.0, %s1422
    %v1428 = vstv %s1427
    %v1429 = vmul.f32 %v1428, %v1418
    %v1430 = vadd.f32 %v1426, %v1429
    %1431 = vmatprep.subr.mxu0 0.0
    %1432 = vmatpush1.msra.mxu0 %v1121
    %1433 = vmatprep.subr.mxu0 0.0
    %1434 = vmatpush1.msra.mxu0 %v1120
    %1435 = vmatprep.subr.mxu0 0.0
    %1436 = vmatpush1.msra.mxu0 %v1119
    %1437 = vmatprep.subr.mxu0 0.0
    %1438 = vmatpush1.msra.mxu0 %v1118
    %1439 = vmatprep.subr.mxu0 0.0
    %1440 = vmatpush1.msra.mxu0 %v1117
    %1441 = vmatprep.subr.mxu0 0.0
    %1442 = vmatpush1.msra.mxu0 %v1116
    %1443 = vmatprep.subr.mxu0 0.0
    %1444 = vmatpush1.msra.mxu0 %v1115
    %1445 = vmatprep.subr.mxu0 0.0
    %1446 = vmatpush1.msra.mxu0 %v1114
    %1447 = vmatprep.subr.mxu0 0.0
    %1448 = vmatpush1.msra.mxu0 %v1113
    %1449 = vmatprep.subr.mxu0 0.0
    %1450 = vmatpush1.msra.mxu0 %v1112
    %1451 = vmatprep.subr.mxu0 0.0
    %1452 = vmatpush1.msra.mxu0 %v1111
    %1453 = vmatprep.subr.mxu0 0.0
    %1454 = vmatpush1.msra.mxu0 %v1110
    %1455 = vmatprep.subr.mxu0 0.0
    %1456 = vmatpush1.msra.mxu0 %v1109
    %1457 = vmatprep.subr.mxu0 0.0
    %1458 = vmatpush1.msra.mxu0 %v1108
    %1459 = vmatprep.subr.mxu0 0.0
    %1460 = vmatpush1.msra.mxu0 %v1107
    %1461 = vmatprep.subr.mxu0 0.0
    %1462 = vmatpush1.msra.mxu0 %v1106
    %1463 = vmatprep.subr.mxu0 0.0
    %1464 = vmatpush2.msra.mxu0 0.0
    %1465 = vmatprep.subr.mxu0 0.0
    %1466 = vmatpush2.msra.mxu0 0.0
    %1467 = vmatprep.subr.mxu0 0.0
    %1468 = vmatpush2.msra.mxu0 0.0
    %1469 = vmatprep.subr.mxu0 0.0
    %1470 = vmatpush2.msra.mxu0 0.0
    %1471 = vmatprep.subr.mxu0 0.0
    %1472 = vmatpush2.msra.mxu0 0.0
    %1473 = vmatprep.subr.mxu0 0.0
    %1474 = vmatpush2.msra.mxu0 0.0
    %1475 = vmatprep.subr.mxu0 0.0
    %1476 = vmatpush2.msra.mxu0 0.0
    %1477 = vmatprep.subr.mxu0 0.0
    %1478 = vmatpush2.msra.mxu0 0.0
    %1479 = vmatprep.subr.mxu0 0.0
    %1480 = vmatpush2.msra.mxu0 0.0
    %1481 = vmatprep.subr.mxu0 0.0
    %1482 = vmatpush2.msra.mxu0 0.0
    %1483 = vmatprep.subr.mxu0 0.0
    %1484 = vmatpush2.msra.mxu0 0.0
    %1485 = vmatprep.subr.mxu0 0.0
    %1486 = vmatpush2.msra.mxu0 0.0
    %1487 = vmatprep.subr.mxu0 0.0
    %1488 = vmatpush2.msra.mxu0 0.0
    %1489 = vmatprep.subr.mxu0 0.0
    %1490 = vmatpush2.msra.mxu0 0.0
    %1491 = vmatprep.subr.mxu0 0.0
    %1492 = vmatpush2.msra.mxu0 0.0
    %1493 = vmatprep.subr.mxu0 0.0
    %1494 = vmatpush2.msra.mxu0 0.0
    %1495 = vmatprep.mubr.f32.mxu0 0.0
    %1496 = vmatmul.mubr.f32.gmra.mxu0 %v1430
    %v1497 = vpop.f32.mrf.mxu0
    %v1498 = vadd.f32 0.0, %v1497
    %v1499 = vpop.f32.mrf.mxu0
    %1500 = vdwg.mxu0
    %1501 = vrot.lane.b32.xlu0 %v1323, 64
    %v1502 = vpop.permute.xlu0 %1501
    %v1504 = vsel %vm170, %v1498, %v1502
    %v1506 = vsel %vm1223, %v1504, 0
    %1508 = vmatprep.subr.mxu0 0.0
    %1509 = vmatpush1.msra.mxu0 0.0
    %1510 = vmatprep.subr.mxu0 0.0
    %1511 = vmatpush1.msra.mxu0 0.0
    %1512 = vmatprep.subr.mxu0 0.0
    %1513 = vmatpush1.msra.mxu0 0.0
    %1514 = vmatprep.subr.mxu0 0.0
    %1515 = vmatpush1.msra.mxu0 0.0
    %1516 = vmatprep.subr.mxu0 0.0
    %1517 = vmatpush1.msra.mxu0 0.0
    %1518 = vmatprep.subr.mxu0 0.0
    %1519 = vmatpush1.msra.mxu0 0.0
    %1520 = vmatprep.subr.mxu0 0.0
    %1521 = vmatpush1.msra.mxu0 0.0
    %1522 = vmatprep.subr.mxu0 0.0
    %1523 = vmatpush1.msra.mxu0 0.0
    %1524 = vmatprep.subr.mxu0 0.0
    %1525 = vmatpush1.msra.mxu0 %v1129
    %1526 = vmatprep.subr.mxu0 0.0
    %1527 = vmatpush1.msra.mxu0 %v1128
    %1528 = vmatprep.subr.mxu0 0.0
    %1529 = vmatpush1.msra.mxu0 %v1127
    %1530 = vmatprep.subr.mxu0 0.0
    %1531 = vmatpush1.msra.mxu0 %v1126
    %1532 = vmatprep.subr.mxu0 0.0
    %1533 = vmatpush1.msra.mxu0 %v1125
    %1534 = vmatprep.subr.mxu0 0.0
    %1535 = vmatpush1.msra.mxu0 %v1124
    %1536 = vmatprep.subr.mxu0 0.0
    %1537 = vmatpush1.msra.mxu0 %v1123
    %1538 = vmatprep.subr.mxu0 0.0
    %1539 = vmatpush1.msra.mxu0 %v1122
    %1540 = vmatprep.subr.mxu0 0.0
    %1541 = vmatpush2.msra.mxu0 0.0
    %1542 = vmatprep.subr.mxu0 0.0
    %1543 = vmatpush2.msra.mxu0 0.0
    %1544 = vmatprep.subr.mxu0 0.0
    %1545 = vmatpush2.msra.mxu0 0.0
    %1546 = vmatprep.subr.mxu0 0.0
    %1547 = vmatpush2.msra.mxu0 0.0
    %1548 = vmatprep.subr.mxu0 0.0
    %1549 = vmatpush2.msra.mxu0 0.0
    %1550 = vmatprep.subr.mxu0 0.0
    %1551 = vmatpush2.msra.mxu0 0.0
    %1552 = vmatprep.subr.mxu0 0.0
    %1553 = vmatpush2.msra.mxu0 0.0
    %1554 = vmatprep.subr.mxu0 0.0
    %1555 = vmatpush2.msra.mxu0 0.0
    %1556 = vmatprep.subr.mxu0 0.0
    %1557 = vmatpush2.msra.mxu0 0.0
    %1558 = vmatprep.subr.mxu0 0.0
    %1559 = vmatpush2.msra.mxu0 0.0
    %1560 = vmatprep.subr.mxu0 0.0
    %1561 = vmatpush2.msra.mxu0 0.0
    %1562 = vmatprep.subr.mxu0 0.0
    %1563 = vmatpush2.msra.mxu0 0.0
    %1564 = vmatprep.subr.mxu0 0.0
    %1565 = vmatpush2.msra.mxu0 0.0
    %1566 = vmatprep.subr.mxu0 0.0
    %1567 = vmatpush2.msra.mxu0 0.0
    %1568 = vmatprep.subr.mxu0 0.0
    %1569 = vmatpush2.msra.mxu0 0.0
    %1570 = vmatprep.subr.mxu0 0.0
    %1571 = vmatpush2.msra.mxu0 0.0
    %1572 = vmatprep.mubr.f32.mxu0 0.0
    %1573 = vmatmul.mubr.f32.gmra.mxu0 %v1506
    %v1574 = vpop.f32.mrf.mxu0
    %v1575 = vadd.f32 %v1221, %v1574
    %v1576 = vpop.f32.mrf.mxu0
    %1577 = vdwg.mxu0
    %v1578 = vxor.u32 %v1575, 2147483648
    %v1579 = vmul.f32 %v1578, 1.442695
    %v1580 = vpow.pop %v1579
    %v1581 = vadd.f32 %v1580, 1.0
    %v1582 = vrcp.pop %v1581
    %v1583 = vmul.f32 1.0, %v1582
    %v1584 = vtanh.pop %v1575
    %v1585 = vmul.f32 %v1583, %v1317
    %1587 = vrot.lane.b32.xlu0 %v1584, 64
    %v1588 = vpop.permute.xlu0 %1587
    %v1590 = vmul.f32 %v1583, %v1588
    %1592 = vrot.lane.b32.xlu0 %v1590, 32
    %v1593 = vpop.permute.xlu0 %1592
    %v1595 = vadd.f32 %v1585, %v1593
    %v1596 = vtanh.pop %v1595
    %1598 = vrot.lane.b32.xlu0 %v1596, 64
    %v1599 = vpop.permute.xlu0 %1598
    %v1601 = vmul.f32 %v1583, %v1599
    %1603 = vrot.lane.b32.xlu0 %v1601, 32
    %v1604 = vpop.permute.xlu0 %1603
    %v1605 = vsel %vm170, %v1604, 0
    %1607 = vmatprep.subr.mxu0 0.0
    %1608 = vmatpush1.msra.mxu0 0.0
    %1609 = vmatprep.subr.mxu0 0.0
    %1610 = vmatpush1.msra.mxu0 0.0
    %1611 = vmatprep.subr.mxu0 0.0
    %1612 = vmatpush1.msra.mxu0 0.0
    %1613 = vmatprep.subr.mxu0 0.0
    %1614 = vmatpush1.msra.mxu0 0.0
    %1615 = vmatprep.subr.mxu0 0.0
    %1616 = vmatpush1.msra.mxu0 0.0
    %1617 = vmatprep.subr.mxu0 0.0
    %1618 = vmatpush1.msra.mxu0 0.0
    %1619 = vmatprep.subr.mxu0 0.0
    %1620 = vmatpush1.msra.mxu0 0.0
    %1621 = vmatprep.subr.mxu0 0.0
    %1622 = vmatpush1.msra.mxu0 0.0
    %1623 = vmatprep.subr.mxu0 0.0
    %1624 = vmatpush1.msra.mxu0 0.0
    %1625 = vmatprep.subr.mxu0 0.0
    %1626 = vmatpush1.msra.mxu0 0.0
    %1627 = vmatprep.subr.mxu0 0.0
    %1628 = vmatpush1.msra.mxu0 0.0
    %1629 = vmatprep.subr.mxu0 0.0
    %1630 = vmatpush1.msra.mxu0 0.0
    %1631 = vmatprep.subr.mxu0 0.0
    %1632 = vmatpush1.msra.mxu0 %v1134
    %1633 = vmatprep.subr.mxu0 0.0
    %1634 = vmatpush1.msra.mxu0 %v1133
    %1635 = vmatprep.subr.mxu0 0.0
    %1636 = vmatpush1.msra.mxu0 %v1132
    %1637 = vmatprep.subr.mxu0 0.0
    %1638 = vmatpush1.msra.mxu0 %v1131
    %1639 = vmatprep.subr.mxu0 0.0
    %1640 = vmatpush2.msra.mxu0 0.0
    %1641 = vmatprep.subr.mxu0 0.0
    %1642 = vmatpush2.msra.mxu0 0.0
    %1643 = vmatprep.subr.mxu0 0.0
    %1644 = vmatpush2.msra.mxu0 0.0
    %1645 = vmatprep.subr.mxu0 0.0
    %1646 = vmatpush2.msra.mxu0 0.0
    %1647 = vmatprep.subr.mxu0 0.0
    %1648 = vmatpush2.msra.mxu0 0.0
    %1649 = vmatprep.subr.mxu0 0.0
    %1650 = vmatpush2.msra.mxu0 0.0
    %1651 = vmatprep.subr.mxu0 0.0
    %1652 = vmatpush2.msra.mxu0 0.0
    %1653 = vmatprep.subr.mxu0 0.0
    %1654 = vmatpush2.msra.mxu0 0.0
    %1655 = vmatprep.subr.mxu0 0.0
    %1656 = vmatpush2.msra.mxu0 0.0
    %1657 = vmatprep.subr.mxu0 0.0
    %1658 = vmatpush2.msra.mxu0 0.0
    %1659 = vmatprep.subr.mxu0 0.0
    %1660 = vmatpush2.msra.mxu0 0.0
    %1661 = vmatprep.subr.mxu0 0.0
    %1662 = vmatpush2.msra.mxu0 0.0
    %1663 = vmatprep.subr.mxu0 0.0
    %1664 = vmatpush2.msra.mxu0 0.0
    %1665 = vmatprep.subr.mxu0 0.0
    %1666 = vmatpush2.msra.mxu0 0.0
    %1667 = vmatprep.subr.mxu0 0.0
    %1668 = vmatpush2.msra.mxu0 0.0
    %1669 = vmatprep.subr.mxu0 0.0
    %1670 = vmatpush2.msra.mxu0 0.0
    %1671 = vmatprep.mubr.f32.mxu0 0.0
    %1672 = vmatmul.mubr.f32.gmra.mxu0 %v1605
    %v1673 = vpop.f32.mrf.mxu0
    %v1674 = vadd.f32 %v1328, %v1673
    %v1675 = vpop.f32.mrf.mxu0
    %1676 = vdwg.mxu0
    %s1677 = scalar_lea.vmem [#allocation5], 8
    %1678 = vst [vmem:[%s1677] sm:$0xf] %v1674
    %v1679 = vsel %vm1407, %v1674, -inf
    %1680 = vmax.xlane.f32.xlu0 %v1679
    %v1681 = vpop.xlane.xlu0 %1680
    %vm1682 = vcmp.eq.f32.partialorder %v1674, %v1681
    %v1683 = vsel %vm1682, %v1138, 128.0
    %v1684 = vsel %vm1407, %v1683, inf
    %1685 = vmin.xlane.f32.xlu0 %v1684
    %v1686 = vpop.xlane.xlu0 %1685
    %vm1687 = vcmp.eq.f32.partialorder %v1138, %v1686
    %v1688 = vsel %vm1687, 1, 0
    %v1689 = vcvt.s32.f32 %v1688
    %s1690 = sld [smem:[#allocation2 + $0x2]]
    %p1691 = scmp.ne.s32.totalorder %s1690, 0
    %s1692 = scalar_select %p1691, 1, 0
    %s1693 = scvt.s32.f32 %s1692
    %s1694 = scalar_lea.vmem %s2, 8
    %v1695 = vld [vmem:[%s1694] sm:$0xf]
    %v1696 = vstv %s1693
    %v1697 = vmul.f32 %v1696, %v1695
    %s1698 = ssub.f32 1.0, %s1693
    %v1699 = vstv %s1698
    %v1700 = vmul.f32 %v1699, %v1689
    %v1701 = vadd.f32 %v1697, %v1700
    %1702 = vmatprep.subr.mxu0 0.0
    %1703 = vmatpush1.msra.mxu0 %v1121
    %1704 = vmatprep.subr.mxu0 0.0
    %1705 = vmatpush1.msra.mxu0 %v1120
    %1706 = vmatprep.subr.mxu0 0.0
    %1707 = vmatpush1.msra.mxu0 %v1119
    %1708 = vmatprep.subr.mxu0 0.0
    %1709 = vmatpush1.msra.mxu0 %v1118
    %1710 = vmatprep.subr.mxu0 0.0
    %1711 = vmatpush1.msra.mxu0 %v1117
    %1712 = vmatprep.subr.mxu0 0.0
    %1713 = vmatpush1.msra.mxu0 %v1116
    %1714 = vmatprep.subr.mxu0 0.0
    %1715 = vmatpush1.msra.mxu0 %v1115
    %1716 = vmatprep.subr.mxu0 0.0
    %1717 = vmatpush1.msra.mxu0 %v1114
    %1718 = vmatprep.subr.mxu0 0.0
    %1719 = vmatpush1.msra.mxu0 %v1113
    %1720 = vmatprep.subr.mxu0 0.0
    %1721 = vmatpush1.msra.mxu0 %v1112
    %1722 = vmatprep.subr.mxu0 0.0
    %1723 = vmatpush1.msra.mxu0 %v1111
    %1724 = vmatprep.subr.mxu0 0.0
    %1725 = vmatpush1.msra.mxu0 %v1110
    %1726 = vmatprep.subr.mxu0 0.0
    %1727 = vmatpush1.msra.mxu0 %v1109
    %1728 = vmatprep.subr.mxu0 0.0
    %1729 = vmatpush1.msra.mxu0 %v1108
    %1730 = vmatprep.subr.mxu0 0.0
    %1731 = vmatpush1.msra.mxu0 %v1107
    %1732 = vmatprep.subr.mxu0 0.0
    %1733 = vmatpush1.msra.mxu0 %v1106
    %1734 = vmatprep.subr.mxu0 0.0
    %1735 = vmatpush2.msra.mxu0 0.0
    %1736 = vmatprep.subr.mxu0 0.0
    %1737 = vmatpush2.msra.mxu0 0.0
    %1738 = vmatprep.subr.mxu0 0.0
    %1739 = vmatpush2.msra.mxu0 0.0
    %1740 = vmatprep.subr.mxu0 0.0
    %1741 = vmatpush2.msra.mxu0 0.0
    %1742 = vmatprep.subr.mxu0 0.0
    %1743 = vmatpush2.msra.mxu0 0.0
    %1744 = vmatprep.subr.mxu0 0.0
    %1745 = vmatpush2.msra.mxu0 0.0
    %1746 = vmatprep.subr.mxu0 0.0
    %1747 = vmatpush2.msra.mxu0 0.0
    %1748 = vmatprep.subr.mxu0 0.0
    %1749 = vmatpush2.msra.mxu0 0.0
    %1750 = vmatprep.subr.mxu0 0.0
    %1751 = vmatpush2.msra.mxu0 0.0
    %1752 = vmatprep.subr.mxu0 0.0
    %1753 = vmatpush2.msra.mxu0 0.0
    %1754 = vmatprep.subr.mxu0 0.0
    %1755 = vmatpush2.msra.mxu0 0.0
    %1756 = vmatprep.subr.mxu0 0.0
    %1757 = vmatpush2.msra.mxu0 0.0
    %1758 = vmatprep.subr.mxu0 0.0
    %1759 = vmatpush2.msra.mxu0 0.0
    %1760 = vmatprep.subr.mxu0 0.0
    %1761 = vmatpush2.msra.mxu0 0.0
    %1762 = vmatprep.subr.mxu0 0.0
    %1763 = vmatpush2.msra.mxu0 0.0
    %1764 = vmatprep.subr.mxu0 0.0
    %1765 = vmatpush2.msra.mxu0 0.0
    %1766 = vmatprep.mubr.f32.mxu0 0.0
    %1767 = vmatmul.mubr.f32.gmra.mxu0 %v1701
    %v1768 = vpop.f32.mrf.mxu0
    %v1769 = vadd.f32 0.0, %v1768
    %v1770 = vpop.f32.mrf.mxu0
    %1771 = vdwg.mxu0
    %1772 = vrot.lane.b32.xlu0 %v1601, 64
    %v1773 = vpop.permute.xlu0 %1772
    %v1775 = vsel %vm170, %v1769, %v1773
    %v1777 = vsel %vm1223, %v1775, 0
    %1779 = vmatprep.subr.mxu0 0.0
    %1780 = vmatpush1.msra.mxu0 0.0
    %1781 = vmatprep.subr.mxu0 0.0
    %1782 = vmatpush1.msra.mxu0 0.0
    %1783 = vmatprep.subr.mxu0 0.0
    %1784 = vmatpush1.msra.mxu0 0.0
    %1785 = vmatprep.subr.mxu0 0.0
    %1786 = vmatpush1.msra.mxu0 0.0
    %1787 = vmatprep.subr.mxu0 0.0
    %1788 = vmatpush1.msra.mxu0 0.0
    %1789 = vmatprep.subr.mxu0 0.0
    %1790 = vmatpush1.msra.mxu0 0.0
    %1791 = vmatprep.subr.mxu0 0.0
    %1792 = vmatpush1.msra.mxu0 0.0
    %1793 = vmatprep.subr.mxu0 0.0
    %1794 = vmatpush1.msra.mxu0 0.0
    %1795 = vmatprep.subr.mxu0 0.0
    %1796 = vmatpush1.msra.mxu0 %v1129
    %1797 = vmatprep.subr.mxu0 0.0
    %1798 = vmatpush1.msra.mxu0 %v1128
    %1799 = vmatprep.subr.mxu0 0.0
    %1800 = vmatpush1.msra.mxu0 %v1127
    %1801 = vmatprep.subr.mxu0 0.0
    %1802 = vmatpush1.msra.mxu0 %v1126
    %1803 = vmatprep.subr.mxu0 0.0
    %1804 = vmatpush1.msra.mxu0 %v1125
    %1805 = vmatprep.subr.mxu0 0.0
    %1806 = vmatpush1.msra.mxu0 %v1124
    %1807 = vmatprep.subr.mxu0 0.0
    %1808 = vmatpush1.msra.mxu0 %v1123
    %1809 = vmatprep.subr.mxu0 0.0
    %1810 = vmatpush1.msra.mxu0 %v1122
    %1811 = vmatprep.subr.mxu0 0.0
    %1812 = vmatpush2.msra.mxu0 0.0
    %1813 = vmatprep.subr.mxu0 0.0
    %1814 = vmatpush2.msra.mxu0 0.0
    %1815 = vmatprep.subr.mxu0 0.0
    %1816 = vmatpush2.msra.mxu0 0.0
    %1817 = vmatprep.subr.mxu0 0.0
    %1818 = vmatpush2.msra.mxu0 0.0
    %1819 = vmatprep.subr.mxu0 0.0
    %1820 = vmatpush2.msra.mxu0 0.0
    %1821 = vmatprep.subr.mxu0 0.0
    %1822 = vmatpush2.msra.mxu0 0.0
    %1823 = vmatprep.subr.mxu0 0.0
    %1824 = vmatpush2.msra.mxu0 0.0
    %1825 = vmatprep.subr.mxu0 0.0
    %1826 = vmatpush2.msra.mxu0 0.0
    %1827 = vmatprep.subr.mxu0 0.0
    %1828 = vmatpush2.msra.mxu0 0.0
    %1829 = vmatprep.subr.mxu0 0.0
    %1830 = vmatpush2.msra.mxu0 0.0
    %1831 = vmatprep.subr.mxu0 0.0
    %1832 = vmatpush2.msra.mxu0 0.0
    %1833 = vmatprep.subr.mxu0 0.0
    %1834 = vmatpush2.msra.mxu0 0.0
    %1835 = vmatprep.subr.mxu0 0.0
    %1836 = vmatpush2.msra.mxu0 0.0
    %1837 = vmatprep.subr.mxu0 0.0
    %1838 = vmatpush2.msra.mxu0 0.0
    %1839 = vmatprep.subr.mxu0 0.0
    %1840 = vmatpush2.msra.mxu0 0.0
    %1841 = vmatprep.subr.mxu0 0.0
    %1842 = vmatpush2.msra.mxu0 0.0
    %1843 = vmatprep.mubr.f32.mxu0 0.0
    %1844 = vmatmul.mubr.f32.gmra.mxu0 %v1777
    %v1845 = vpop.f32.mrf.mxu0
    %v1846 = vadd.f32 %v1221, %v1845
    %v1847 = vpop.f32.mrf.mxu0
    %1848 = vdwg.mxu0
    %v1849 = vxor.u32 %v1846, 2147483648
    %v1850 = vmul.f32 %v1849, 1.442695
    %v1851 = vpow.pop %v1850
    %v1852 = vadd.f32 %v1851, 1.0
    %v1853 = vrcp.pop %v1852
    %v1854 = vmul.f32 1.0, %v1853
    %v1855 = vtanh.pop %v1846
    %v1856 = vmul.f32 %v1854, %v1595
    %1858 = vrot.lane.b32.xlu0 %v1855, 64
    %v1859 = vpop.permute.xlu0 %1858
    %v1861 = vmul.f32 %v1854, %v1859
    %1863 = vrot.lane.b32.xlu0 %v1861, 32
    %v1864 = vpop.permute.xlu0 %1863
    %v1866 = vadd.f32 %v1856, %v1864
    %v1867 = vtanh.pop %v1866
    %1869 = vrot.lane.b32.xlu0 %v1867, 64
    %v1870 = vpop.permute.xlu0 %1869
    %v1872 = vmul.f32 %v1854, %v1870
    %1874 = vrot.lane.b32.xlu0 %v1872, 32
    %v1875 = vpop.permute.xlu0 %1874
    %v1876 = vsel %vm170, %v1875, 0
    %1878 = vmatprep.subr.mxu0 0.0
    %1879 = vmatpush1.msra.mxu0 0.0
    %1880 = vmatprep.subr.mxu0 0.0
    %1881 = vmatpush1.msra.mxu0 0.0
    %1882 = vmatprep.subr.mxu0 0.0
    %1883 = vmatpush1.msra.mxu0 0.0
    %1884 = vmatprep.subr.mxu0 0.0
    %1885 = vmatpush1.msra.mxu0 0.0
    %1886 = vmatprep.subr.mxu0 0.0
    %1887 = vmatpush1.msra.mxu0 0.0
    %1888 = vmatprep.subr.mxu0 0.0
    %1889 = vmatpush1.msra.mxu0 0.0
    %1890 = vmatprep.subr.mxu0 0.0
    %1891 = vmatpush1.msra.mxu0 0.0
    %1892 = vmatprep.subr.mxu0 0.0
    %1893 = vmatpush1.msra.mxu0 0.0
    %1894 = vmatprep.subr.mxu0 0.0
    %1895 = vmatpush1.msra.mxu0 0.0
    %1896 = vmatprep.subr.mxu0 0.0
    %1897 = vmatpush1.msra.mxu0 0.0
    %1898 = vmatprep.subr.mxu0 0.0
    %1899 = vmatpush1.msra.mxu0 0.0
    %1900 = vmatprep.subr.mxu0 0.0
    %1901 = vmatpush1.msra.mxu0 0.0
    %1902 = vmatprep.subr.mxu0 0.0
    %1903 = vmatpush1.msra.mxu0 %v1134
    %1904 = vmatprep.subr.mxu0 0.0
    %1905 = vmatpush1.msra.mxu0 %v1133
    %1906 = vmatprep.subr.mxu0 0.0
    %1907 = vmatpush1.msra.mxu0 %v1132
    %1908 = vmatprep.subr.mxu0 0.0
    %1909 = vmatpush1.msra.mxu0 %v1131
    %1910 = vmatprep.subr.mxu0 0.0
    %1911 = vmatpush2.msra.mxu0 0.0
    %1912 = vmatprep.subr.mxu0 0.0
    %1913 = vmatpush2.msra.mxu0 0.0
    %1914 = vmatprep.subr.mxu0 0.0
    %1915 = vmatpush2.msra.mxu0 0.0
    %1916 = vmatprep.subr.mxu0 0.0
    %1917 = vmatpush2.msra.mxu0 0.0
    %1918 = vmatprep.subr.mxu0 0.0
    %1919 = vmatpush2.msra.mxu0 0.0
    %1920 = vmatprep.subr.mxu0 0.0
    %1921 = vmatpush2.msra.mxu0 0.0
    %1922 = vmatprep.subr.mxu0 0.0
    %1923 = vmatpush2.msra.mxu0 0.0
    %1924 = vmatprep.subr.mxu0 0.0
    %1925 = vmatpush2.msra.mxu0 0.0
    %1926 = vmatprep.subr.mxu0 0.0
    %1927 = vmatpush2.msra.mxu0 0.0
    %1928 = vmatprep.subr.mxu0 0.0
    %1929 = vmatpush2.msra.mxu0 0.0
    %1930 = vmatprep.subr.mxu0 0.0
    %1931 = vmatpush2.msra.mxu0 0.0
    %1932 = vmatprep.subr.mxu0 0.0
    %1933 = vmatpush2.msra.mxu0 0.0
    %1934 = vmatprep.subr.mxu0 0.0
    %1935 = vmatpush2.msra.mxu0 0.0
    %1936 = vmatprep.subr.mxu0 0.0
    %1937 = vmatpush2.msra.mxu0 0.0
    %1938 = vmatprep.subr.mxu0 0.0
    %1939 = vmatpush2.msra.mxu0 0.0
    %1940 = vmatprep.subr.mxu0 0.0
    %1941 = vmatpush2.msra.mxu0 0.0
    %1942 = vmatprep.mubr.f32.mxu0 0.0
    %1943 = vmatmul.mubr.f32.gmra.mxu0 %v1876
    %v1944 = vpop.f32.mrf.mxu0
    %v1945 = vadd.f32 %v1328, %v1944
    %v1946 = vpop.f32.mrf.mxu0
    %1947 = vdwg.mxu0
    %s1948 = scalar_lea.vmem [#allocation5], 12
    %1949 = vst [vmem:[%s1948] sm:$0xf] %v1945
    %v1950 = vsel %vm1407, %v1945, -inf
    %1951 = vmax.xlane.f32.xlu0 %v1950
    %v1952 = vpop.xlane.xlu0 %1951
    %vm1953 = vcmp.eq.f32.partialorder %v1945, %v1952
    %v1954 = vsel %vm1953, %v1138, 128.0
    %v1955 = vsel %vm1407, %v1954, inf
    %1956 = vmin.xlane.f32.xlu0 %v1955
    %v1957 = vpop.xlane.xlu0 %1956
    %vm1958 = vcmp.eq.f32.partialorder %v1138, %v1957
    %v1959 = vsel %vm1958, 1, 0
    %v1960 = vcvt.s32.f32 %v1959
    %s1961 = sld [smem:[#allocation2 + $0x3]]
    %p1962 = scmp.ne.s32.totalorder %s1961, 0
    %s1963 = scalar_select %p1962, 1, 0
    %s1964 = scvt.s32.f32 %s1963
    %s1965 = scalar_lea.vmem %s2, 12
    %v1966 = vld [vmem:[%s1965] sm:$0xf]
    %v1967 = vstv %s1964
    %v1968 = vmul.f32 %v1967, %v1966
    %s1969 = ssub.f32 1.0, %s1964
    %v1970 = vstv %s1969
    %v1971 = vmul.f32 %v1970, %v1960
    %v1972 = vadd.f32 %v1968, %v1971
    %1973 = vmatprep.subr.mxu0 0.0
    %1974 = vmatpush1.msra.mxu0 %v1121
    %1975 = vmatprep.subr.mxu0 0.0
    %1976 = vmatpush1.msra.mxu0 %v1120
    %1977 = vmatprep.subr.mxu0 0.0
    %1978 = vmatpush1.msra.mxu0 %v1119
    %1979 = vmatprep.subr.mxu0 0.0
    %1980 = vmatpush1.msra.mxu0 %v1118
    %1981 = vmatprep.subr.mxu0 0.0
    %1982 = vmatpush1.msra.mxu0 %v1117
    %1983 = vmatprep.subr.mxu0 0.0
    %1984 = vmatpush1.msra.mxu0 %v1116
    %1985 = vmatprep.subr.mxu0 0.0
    %1986 = vmatpush1.msra.mxu0 %v1115
    %1987 = vmatprep.subr.mxu0 0.0
    %1988 = vmatpush1.msra.mxu0 %v1114
    %1989 = vmatprep.subr.mxu0 0.0
    %1990 = vmatpush1.msra.mxu0 %v1113
    %1991 = vmatprep.subr.mxu0 0.0
    %1992 = vmatpush1.msra.mxu0 %v1112
    %1993 = vmatprep.subr.mxu0 0.0
    %1994 = vmatpush1.msra.mxu0 %v1111
    %1995 = vmatprep.subr.mxu0 0.0
    %1996 = vmatpush1.msra.mxu0 %v1110
    %1997 = vmatprep.subr.mxu0 0.0
    %1998 = vmatpush1.msra.mxu0 %v1109
    %1999 = vmatprep.subr.mxu0 0.0
    %2000 = vmatpush1.msra.mxu0 %v1108
    %2001 = vmatprep.subr.mxu0 0.0
    %2002 = vmatpush1.msra.mxu0 %v1107
    %2003 = vmatprep.subr.mxu0 0.0
    %2004 = vmatpush1.msra.mxu0 %v1106
    %2005 = vmatprep.subr.mxu0 0.0
    %2006 = vmatpush2.msra.mxu0 0.0
    %2007 = vmatprep.subr.mxu0 0.0
    %2008 = vmatpush2.msra.mxu0 0.0
    %2009 = vmatprep.subr.mxu0 0.0
    %2010 = vmatpush2.msra.mxu0 0.0
    %2011 = vmatprep.subr.mxu0 0.0
    %2012 = vmatpush2.msra.mxu0 0.0
    %2013 = vmatprep.subr.mxu0 0.0
    %2014 = vmatpush2.msra.mxu0 0.0
    %2015 = vmatprep.subr.mxu0 0.0
    %2016 = vmatpush2.msra.mxu0 0.0
    %2017 = vmatprep.subr.mxu0 0.0
    %2018 = vmatpush2.msra.mxu0 0.0
    %2019 = vmatprep.subr.mxu0 0.0
    %2020 = vmatpush2.msra.mxu0 0.0
    %2021 = vmatprep.subr.mxu0 0.0
    %2022 = vmatpush2.msra.mxu0 0.0
    %2023 = vmatprep.subr.mxu0 0.0
    %2024 = vmatpush2.msra.mxu0 0.0
    %2025 = vmatprep.subr.mxu0 0.0
    %2026 = vmatpush2.msra.mxu0 0.0
    %2027 = vmatprep.subr.mxu0 0.0
    %2028 = vmatpush2.msra.mxu0 0.0
    %2029 = vmatprep.subr.mxu0 0.0
    %2030 = vmatpush2.msra.mxu0 0.0
    %2031 = vmatprep.subr.mxu0 0.0
    %2032 = vmatpush2.msra.mxu0 0.0
    %2033 = vmatprep.subr.mxu0 0.0
    %2034 = vmatpush2.msra.mxu0 0.0
    %2035 = vmatprep.subr.mxu0 0.0
    %2036 = vmatpush2.msra.mxu0 0.0
    %2037 = vmatprep.mubr.f32.mxu0 0.0
    %2038 = vmatmul.mubr.f32.gmra.mxu0 %v1972
    %v2039 = vpop.f32.mrf.mxu0
    %v2040 = vadd.f32 0.0, %v2039
    %v2041 = vpop.f32.mrf.mxu0
    %2042 = vdwg.mxu0
    %2043 = vrot.lane.b32.xlu0 %v1872, 64
    %v2044 = vpop.permute.xlu0 %2043
    %v2046 = vsel %vm170, %v2040, %v2044
    %v2048 = vsel %vm1223, %v2046, 0
    %2050 = vmatprep.subr.mxu0 0.0
    %2051 = vmatpush1.msra.mxu0 0.0
    %2052 = vmatprep.subr.mxu0 0.0
    %2053 = vmatpush1.msra.mxu0 0.0
    %2054 = vmatprep.subr.mxu0 0.0
    %2055 = vmatpush1.msra.mxu0 0.0
    %2056 = vmatprep.subr.mxu0 0.0
    %2057 = vmatpush1.msra.mxu0 0.0
    %2058 = vmatprep.subr.mxu0 0.0
    %2059 = vmatpush1.msra.mxu0 0.0
    %2060 = vmatprep.subr.mxu0 0.0
    %2061 = vmatpush1.msra.mxu0 0.0
    %2062 = vmatprep.subr.mxu0 0.0
    %2063 = vmatpush1.msra.mxu0 0.0
    %2064 = vmatprep.subr.mxu0 0.0
    %2065 = vmatpush1.msra.mxu0 0.0
    %2066 = vmatprep.subr.mxu0 0.0
    %2067 = vmatpush1.msra.mxu0 %v1129
    %2068 = vmatprep.subr.mxu0 0.0
    %2069 = vmatpush1.msra.mxu0 %v1128
    %2070 = vmatprep.subr.mxu0 0.0
    %2071 = vmatpush1.msra.mxu0 %v1127
    %2072 = vmatprep.subr.mxu0 0.0
    %2073 = vmatpush1.msra.mxu0 %v1126
    %2074 = vmatprep.subr.mxu0 0.0
    %2075 = vmatpush1.msra.mxu0 %v1125
    %2076 = vmatprep.subr.mxu0 0.0
    %2077 = vmatpush1.msra.mxu0 %v1124
    %2078 = vmatprep.subr.mxu0 0.0
    %2079 = vmatpush1.msra.mxu0 %v1123
    %2080 = vmatprep.subr.mxu0 0.0
    %2081 = vmatpush1.msra.mxu0 %v1122
    %2082 = vmatprep.subr.mxu0 0.0
    %2083 = vmatpush2.msra.mxu0 0.0
    %2084 = vmatprep.subr.mxu0 0.0
    %2085 = vmatpush2.msra.mxu0 0.0
    %2086 = vmatprep.subr.mxu0 0.0
    %2087 = vmatpush2.msra.mxu0 0.0
    %2088 = vmatprep.subr.mxu0 0.0
    %2089 = vmatpush2.msra.mxu0 0.0
    %2090 = vmatprep.subr.mxu0 0.0
    %2091 = vmatpush2.msra.mxu0 0.0
    %2092 = vmatprep.subr.mxu0 0.0
    %2093 = vmatpush2.msra.mxu0 0.0
    %2094 = vmatprep.subr.mxu0 0.0
    %2095 = vmatpush2.msra.mxu0 0.0
    %2096 = vmatprep.subr.mxu0 0.0
    %2097 = vmatpush2.msra.mxu0 0.0
    %2098 = vmatprep.subr.mxu0 0.0
    %2099 = vmatpush2.msra.mxu0 0.0
    %2100 = vmatprep.subr.mxu0 0.0
    %2101 = vmatpush2.msra.mxu0 0.0
    %2102 = vmatprep.subr.mxu0 0.0
    %2103 = vmatpush2.msra.mxu0 0.0
    %2104 = vmatprep.subr.mxu0 0.0
    %2105 = vmatpush2.msra.mxu0 0.0
    %2106 = vmatprep.subr.mxu0 0.0
    %2107 = vmatpush2.msra.mxu0 0.0
    %2108 = vmatprep.subr.mxu0 0.0
    %2109 = vmatpush2.msra.mxu0 0.0
    %2110 = vmatprep.subr.mxu0 0.0
    %2111 = vmatpush2.msra.mxu0 0.0
    %2112 = vmatprep.subr.mxu0 0.0
    %2113 = vmatpush2.msra.mxu0 0.0
    %2114 = vmatprep.mubr.f32.mxu0 0.0
    %2115 = vmatmul.mubr.f32.gmra.mxu0 %v2048
    %v2116 = vpop.f32.mrf.mxu0
    %v2117 = vadd.f32 %v1221, %v2116
    %v2118 = vpop.f32.mrf.mxu0
    %2119 = vdwg.mxu0
    %v2120 = vxor.u32 %v2117, 2147483648
    %v2121 = vmul.f32 %v2120, 1.442695
    %v2122 = vpow.pop %v2121
    %v2123 = vadd.f32 %v2122, 1.0
    %v2124 = vrcp.pop %v2123
    %v2125 = vmul.f32 1.0, %v2124
    %v2126 = vtanh.pop %v2117
    %v2127 = vmul.f32 %v2125, %v1866
    %2129 = vrot.lane.b32.xlu0 %v2126, 64
    %v2130 = vpop.permute.xlu0 %2129
    %v2132 = vmul.f32 %v2125, %v2130
    %2134 = vrot.lane.b32.xlu0 %v2132, 32
    %v2135 = vpop.permute.xlu0 %2134
    %v2137 = vadd.f32 %v2127, %v2135
    %v2138 = vtanh.pop %v2137
    %2140 = vrot.lane.b32.xlu0 %v2138, 64
    %v2141 = vpop.permute.xlu0 %2140
    %v2143 = vmul.f32 %v2125, %v2141
    %2145 = vrot.lane.b32.xlu0 %v2143, 32
    %v2146 = vpop.permute.xlu0 %2145
    %v2147 = vsel %vm170, %v2146, 0
    %2149 = vmatprep.subr.mxu0 0.0
    %2150 = vmatpush1.msra.mxu0 0.0
    %2151 = vmatprep.subr.mxu0 0.0
    %2152 = vmatpush1.msra.mxu0 0.0
    %2153 = vmatprep.subr.mxu0 0.0
    %2154 = vmatpush1.msra.mxu0 0.0
    %2155 = vmatprep.subr.mxu0 0.0
    %2156 = vmatpush1.msra.mxu0 0.0
    %2157 = vmatprep.subr.mxu0 0.0
    %2158 = vmatpush1.msra.mxu0 0.0
    %2159 = vmatprep.subr.mxu0 0.0
    %2160 = vmatpush1.msra.mxu0 0.0
    %2161 = vmatprep.subr.mxu0 0.0
    %2162 = vmatpush1.msra.mxu0 0.0
    %2163 = vmatprep.subr.mxu0 0.0
    %2164 = vmatpush1.msra.mxu0 0.0
    %2165 = vmatprep.subr.mxu0 0.0
    %2166 = vmatpush1.msra.mxu0 0.0
    %2167 = vmatprep.subr.mxu0 0.0
    %2168 = vmatpush1.msra.mxu0 0.0
    %2169 = vmatprep.subr.mxu0 0.0
    %2170 = vmatpush1.msra.mxu0 0.0
    %2171 = vmatprep.subr.mxu0 0.0
    %2172 = vmatpush1.msra.mxu0 0.0
    %2173 = vmatprep.subr.mxu0 0.0
    %2174 = vmatpush1.msra.mxu0 %v1134
    %2175 = vmatprep.subr.mxu0 0.0
    %2176 = vmatpush1.msra.mxu0 %v1133
    %2177 = vmatprep.subr.mxu0 0.0
    %2178 = vmatpush1.msra.mxu0 %v1132
    %2179 = vmatprep.subr.mxu0 0.0
    %2180 = vmatpush1.msra.mxu0 %v1131
    %2181 = vmatprep.subr.mxu0 0.0
    %2182 = vmatpush2.msra.mxu0 0.0
    %2183 = vmatprep.subr.mxu0 0.0
    %2184 = vmatpush2.msra.mxu0 0.0
    %2185 = vmatprep.subr.mxu0 0.0
    %2186 = vmatpush2.msra.mxu0 0.0
    %2187 = vmatprep.subr.mxu0 0.0
    %2188 = vmatpush2.msra.mxu0 0.0
    %2189 = vmatprep.subr.mxu0 0.0
    %2190 = vmatpush2.msra.mxu0 0.0
    %2191 = vmatprep.subr.mxu0 0.0
    %2192 = vmatpush2.msra.mxu0 0.0
    %2193 = vmatprep.subr.mxu0 0.0
    %2194 = vmatpush2.msra.mxu0 0.0
    %2195 = vmatprep.subr.mxu0 0.0
    %2196 = vmatpush2.msra.mxu0 0.0
    %2197 = vmatprep.subr.mxu0 0.0
    %2198 = vmatpush2.msra.mxu0 0.0
    %2199 = vmatprep.subr.mxu0 0.0
    %2200 = vmatpush2.msra.mxu0 0.0
    %2201 = vmatprep.subr.mxu0 0.0
    %2202 = vmatpush2.msra.mxu0 0.0
    %2203 = vmatprep.subr.mxu0 0.0
    %2204 = vmatpush2.msra.mxu0 0.0
    %2205 = vmatprep.subr.mxu0 0.0
    %2206 = vmatpush2.msra.mxu0 0.0
    %2207 = vmatprep.subr.mxu0 0.0
    %2208 = vmatpush2.msra.mxu0 0.0
    %2209 = vmatprep.subr.mxu0 0.0
    %2210 = vmatpush2.msra.mxu0 0.0
    %2211 = vmatprep.subr.mxu0 0.0
    %2212 = vmatpush2.msra.mxu0 0.0
    %2213 = vmatprep.mubr.f32.mxu0 0.0
    %2214 = vmatmul.mubr.f32.gmra.mxu0 %v2147
    %v2215 = vpop.f32.mrf.mxu0
    %v2216 = vadd.f32 %v1328, %v2215
    %v2217 = vpop.f32.mrf.mxu0
    %2218 = vdwg.mxu0
    %s2219 = scalar_lea.vmem [#allocation5], 16
    %2220 = vst [vmem:[%s2219] sm:$0xf] %v2216
    %v2221 = vsel %vm1407, %v2216, -inf
    %2222 = vmax.xlane.f32.xlu0 %v2221
    %v2223 = vpop.xlane.xlu0 %2222
    %vm2224 = vcmp.eq.f32.partialorder %v2216, %v2223
    %v2225 = vsel %vm2224, %v1138, 128.0
    %v2226 = vsel %vm1407, %v2225, inf
    %2227 = vmin.xlane.f32.xlu0 %v2226
    %v2228 = vpop.xlane.xlu0 %2227
    %vm2229 = vcmp.eq.f32.partialorder %v1138, %v2228
    %v2230 = vsel %vm2229, 1, 0
    %v2231 = vcvt.s32.f32 %v2230
    %s2232 = sld [smem:[#allocation2 + $0x4]]
    %p2233 = scmp.ne.s32.totalorder %s2232, 0
    %s2234 = scalar_select %p2233, 1, 0
    %s2235 = scvt.s32.f32 %s2234
    %s2236 = scalar_lea.vmem %s2, 16
    %v2237 = vld [vmem:[%s2236] sm:$0xf]
    %v2238 = vstv %s2235
    %v2239 = vmul.f32 %v2238, %v2237
    %s2240 = ssub.f32 1.0, %s2235
    %v2241 = vstv %s2240
    %v2242 = vmul.f32 %v2241, %v2231
    %v2243 = vadd.f32 %v2239, %v2242
    %2244 = vmatprep.subr.mxu0 0.0
    %2245 = vmatpush1.msra.mxu0 %v1121
    %2246 = vmatprep.subr.mxu0 0.0
    %2247 = vmatpush1.msra.mxu0 %v1120
    %2248 = vmatprep.subr.mxu0 0.0
    %2249 = vmatpush1.msra.mxu0 %v1119
    %2250 = vmatprep.subr.mxu0 0.0
    %2251 = vmatpush1.msra.mxu0 %v1118
    %2252 = vmatprep.subr.mxu0 0.0
    %2253 = vmatpush1.msra.mxu0 %v1117
    %2254 = vmatprep.subr.mxu0 0.0
    %2255 = vmatpush1.msra.mxu0 %v1116
    %2256 = vmatprep.subr.mxu0 0.0
    %2257 = vmatpush1.msra.mxu0 %v1115
    %2258 = vmatprep.subr.mxu0 0.0
    %2259 = vmatpush1.msra.mxu0 %v1114
    %2260 = vmatprep.subr.mxu0 0.0
    %2261 = vmatpush1.msra.mxu0 %v1113
    %2262 = vmatprep.subr.mxu0 0.0
    %2263 = vmatpush1.msra.mxu0 %v1112
    %2264 = vmatprep.subr.mxu0 0.0
    %2265 = vmatpush1.msra.mxu0 %v1111
    %2266 = vmatprep.subr.mxu0 0.0
    %2267 = vmatpush1.msra.mxu0 %v1110
    %2268 = vmatprep.subr.mxu0 0.0
    %2269 = vmatpush1.msra.mxu0 %v1109
    %2270 = vmatprep.subr.mxu0 0.0
    %2271 = vmatpush1.msra.mxu0 %v1108
    %2272 = vmatprep.subr.mxu0 0.0
    %2273 = vmatpush1.msra.mxu0 %v1107
    %2274 = vmatprep.subr.mxu0 0.0
    %2275 = vmatpush1.msra.mxu0 %v1106
    %2276 = vmatprep.subr.mxu0 0.0
    %2277 = vmatpush2.msra.mxu0 0.0
    %2278 = vmatprep.subr.mxu0 0.0
    %2279 = vmatpush2.msra.mxu0 0.0
    %2280 = vmatprep.subr.mxu0 0.0
    %2281 = vmatpush2.msra.mxu0 0.0
    %2282 = vmatprep.subr.mxu0 0.0
    %2283 = vmatpush2.msra.mxu0 0.0
    %2284 = vmatprep.subr.mxu0 0.0
    %2285 = vmatpush2.msra.mxu0 0.0
    %2286 = vmatprep.subr.mxu0 0.0
    %2287 = vmatpush2.msra.mxu0 0.0
    %2288 = vmatprep.subr.mxu0 0.0
    %2289 = vmatpush2.msra.mxu0 0.0
    %2290 = vmatprep.subr.mxu0 0.0
    %2291 = vmatpush2.msra.mxu0 0.0
    %2292 = vmatprep.subr.mxu0 0.0
    %2293 = vmatpush2.msra.mxu0 0.0
    %2294 = vmatprep.subr.mxu0 0.0
    %2295 = vmatpush2.msra.mxu0 0.0
    %2296 = vmatprep.subr.mxu0 0.0
    %2297 = vmatpush2.msra.mxu0 0.0
    %2298 = vmatprep.subr.mxu0 0.0
    %2299 = vmatpush2.msra.mxu0 0.0
    %2300 = vmatprep.subr.mxu0 0.0
    %2301 = vmatpush2.msra.mxu0 0.0
    %2302 = vmatprep.subr.mxu0 0.0
    %2303 = vmatpush2.msra.mxu0 0.0
    %2304 = vmatprep.subr.mxu0 0.0
    %2305 = vmatpush2.msra.mxu0 0.0
    %2306 = vmatprep.subr.mxu0 0.0
    %2307 = vmatpush2.msra.mxu0 0.0
    %2308 = vmatprep.mubr.f32.mxu0 0.0
    %2309 = vmatmul.mubr.f32.gmra.mxu0 %v2243
    %v2310 = vpop.f32.mrf.mxu0
    %v2311 = vadd.f32 0.0, %v2310
    %v2312 = vpop.f32.mrf.mxu0
    %2313 = vdwg.mxu0
    %2314 = vrot.lane.b32.xlu0 %v2143, 64
    %v2315 = vpop.permute.xlu0 %2314
    %v2317 = vsel %vm170, %v2311, %v2315
    %v2319 = vsel %vm1223, %v2317, 0
    %2321 = vmatprep.subr.mxu0 0.0
    %2322 = vmatpush1.msra.mxu0 0.0
    %2323 = vmatprep.subr.mxu0 0.0
    %2324 = vmatpush1.msra.mxu0 0.0
    %2325 = vmatprep.subr.mxu0 0.0
    %2326 = vmatpush1.msra.mxu0 0.0
    %2327 = vmatprep.subr.mxu0 0.0
    %2328 = vmatpush1.msra.mxu0 0.0
    %2329 = vmatprep.subr.mxu0 0.0
    %2330 = vmatpush1.msra.mxu0 0.0
    %2331 = vmatprep.subr.mxu0 0.0
    %2332 = vmatpush1.msra.mxu0 0.0
    %2333 = vmatprep.subr.mxu0 0.0
    %2334 = vmatpush1.msra.mxu0 0.0
    %2335 = vmatprep.subr.mxu0 0.0
    %2336 = vmatpush1.msra.mxu0 0.0
    %2337 = vmatprep.subr.mxu0 0.0
    %2338 = vmatpush1.msra.mxu0 %v1129
    %2339 = vmatprep.subr.mxu0 0.0
    %2340 = vmatpush1.msra.mxu0 %v1128
    %2341 = vmatprep.subr.mxu0 0.0
    %2342 = vmatpush1.msra.mxu0 %v1127
    %2343 = vmatprep.subr.mxu0 0.0
    %2344 = vmatpush1.msra.mxu0 %v1126
    %2345 = vmatprep.subr.mxu0 0.0
    %2346 = vmatpush1.msra.mxu0 %v1125
    %2347 = vmatprep.subr.mxu0 0.0
    %2348 = vmatpush1.msra.mxu0 %v1124
    %2349 = vmatprep.subr.mxu0 0.0
    %2350 = vmatpush1.msra.mxu0 %v1123
    %2351 = vmatprep.subr.mxu0 0.0
    %2352 = vmatpush1.msra.mxu0 %v1122
    %2353 = vmatprep.subr.mxu0 0.0
    %2354 = vmatpush2.msra.mxu0 0.0
    %2355 = vmatprep.subr.mxu0 0.0
    %2356 = vmatpush2.msra.mxu0 0.0
    %2357 = vmatprep.subr.mxu0 0.0
    %2358 = vmatpush2.msra.mxu0 0.0
    %2359 = vmatprep.subr.mxu0 0.0
    %2360 = vmatpush2.msra.mxu0 0.0
    %2361 = vmatprep.subr.mxu0 0.0
    %2362 = vmatpush2.msra.mxu0 0.0
    %2363 = vmatprep.subr.mxu0 0.0
    %2364 = vmatpush2.msra.mxu0 0.0
    %2365 = vmatprep.subr.mxu0 0.0
    %2366 = vmatpush2.msra.mxu0 0.0
    %2367 = vmatprep.subr.mxu0 0.0
    %2368 = vmatpush2.msra.mxu0 0.0
    %2369 = vmatprep.subr.mxu0 0.0
    %2370 = vmatpush2.msra.mxu0 0.0
    %2371 = vmatprep.subr.mxu0 0.0
    %2372 = vmatpush2.msra.mxu0 0.0
    %2373 = vmatprep.subr.mxu0 0.0
    %2374 = vmatpush2.msra.mxu0 0.0
    %2375 = vmatprep.subr.mxu0 0.0
    %2376 = vmatpush2.msra.mxu0 0.0
    %2377 = vmatprep.subr.mxu0 0.0
    %2378 = vmatpush2.msra.mxu0 0.0
    %2379 = vmatprep.subr.mxu0 0.0
    %2380 = vmatpush2.msra.mxu0 0.0
    %2381 = vmatprep.subr.mxu0 0.0
    %2382 = vmatpush2.msra.mxu0 0.0
    %2383 = vmatprep.subr.mxu0 0.0
    %2384 = vmatpush2.msra.mxu0 0.0
    %2385 = vmatprep.mubr.f32.mxu0 0.0
    %2386 = vmatmul.mubr.f32.gmra.mxu0 %v2319
    %v2387 = vpop.f32.mrf.mxu0
    %v2388 = vadd.f32 %v1221, %v2387
    %v2389 = vpop.f32.mrf.mxu0
    %2390 = vdwg.mxu0
    %v2391 = vxor.u32 %v2388, 2147483648
    %v2392 = vmul.f32 %v2391, 1.442695
    %v2393 = vpow.pop %v2392
    %v2394 = vadd.f32 %v2393, 1.0
    %v2395 = vrcp.pop %v2394
    %v2396 = vmul.f32 1.0, %v2395
    %v2397 = vtanh.pop %v2388
    %v2398 = vmul.f32 %v2396, %v2137
    %2400 = vrot.lane.b32.xlu0 %v2397, 64
    %v2401 = vpop.permute.xlu0 %2400
    %v2403 = vmul.f32 %v2396, %v2401
    %2405 = vrot.lane.b32.xlu0 %v2403, 32
    %v2406 = vpop.permute.xlu0 %2405
    %v2408 = vadd.f32 %v2398, %v2406
    %v2409 = vtanh.pop %v2408
    %2411 = vrot.lane.b32.xlu0 %v2409, 64
    %v2412 = vpop.permute.xlu0 %2411
    %v2414 = vmul.f32 %v2396, %v2412
    %2416 = vrot.lane.b32.xlu0 %v2414, 32
    %v2417 = vpop.permute.xlu0 %2416
    %v2418 = vsel %vm170, %v2417, 0
    %2420 = vmatprep.subr.mxu0 0.0
    %2421 = vmatpush1.msra.mxu0 0.0
    %2422 = vmatprep.subr.mxu0 0.0
    %2423 = vmatpush1.msra.mxu0 0.0
    %2424 = vmatprep.subr.mxu0 0.0
    %2425 = vmatpush1.msra.mxu0 0.0
    %2426 = vmatprep.subr.mxu0 0.0
    %2427 = vmatpush1.msra.mxu0 0.0
    %2428 = vmatprep.subr.mxu0 0.0
    %2429 = vmatpush1.msra.mxu0 0.0
    %2430 = vmatprep.subr.mxu0 0.0
    %2431 = vmatpush1.msra.mxu0 0.0
    %2432 = vmatprep.subr.mxu0 0.0
    %2433 = vmatpush1.msra.mxu0 0.0
    %2434 = vmatprep.subr.mxu0 0.0
    %2435 = vmatpush1.msra.mxu0 0.0
    %2436 = vmatprep.subr.mxu0 0.0
    %2437 = vmatpush1.msra.mxu0 0.0
    %2438 = vmatprep.subr.mxu0 0.0
    %2439 = vmatpush1.msra.mxu0 0.0
    %2440 = vmatprep.subr.mxu0 0.0
    %2441 = vmatpush1.msra.mxu0 0.0
    %2442 = vmatprep.subr.mxu0 0.0
    %2443 = vmatpush1.msra.mxu0 0.0
    %2444 = vmatprep.subr.mxu0 0.0
    %2445 = vmatpush1.msra.mxu0 %v1134
    %2446 = vmatprep.subr.mxu0 0.0
    %2447 = vmatpush1.msra.mxu0 %v1133
    %2448 = vmatprep.subr.mxu0 0.0
    %2449 = vmatpush1.msra.mxu0 %v1132
    %2450 = vmatprep.subr.mxu0 0.0
    %2451 = vmatpush1.msra.mxu0 %v1131
    %2452 = vmatprep.subr.mxu0 0.0
    %2453 = vmatpush2.msra.mxu0 0.0
    %2454 = vmatprep.subr.mxu0 0.0
    %2455 = vmatpush2.msra.mxu0 0.0
    %2456 = vmatprep.subr.mxu0 0.0
    %2457 = vmatpush2.msra.mxu0 0.0
    %2458 = vmatprep.subr.mxu0 0.0
    %2459 = vmatpush2.msra.mxu0 0.0
    %2460 = vmatprep.subr.mxu0 0.0
    %2461 = vmatpush2.msra.mxu0 0.0
    %2462 = vmatprep.subr.mxu0 0.0
    %2463 = vmatpush2.msra.mxu0 0.0
    %2464 = vmatprep.subr.mxu0 0.0
    %2465 = vmatpush2.msra.mxu0 0.0
    %2466 = vmatprep.subr.mxu0 0.0
    %2467 = vmatpush2.msra.mxu0 0.0
    %2468 = vmatprep.subr.mxu0 0.0
    %2469 = vmatpush2.msra.mxu0 0.0
    %2470 = vmatprep.subr.mxu0 0.0
    %2471 = vmatpush2.msra.mxu0 0.0
    %2472 = vmatprep.subr.mxu0 0.0
    %2473 = vmatpush2.msra.mxu0 0.0
    %2474 = vmatprep.subr.mxu0 0.0
    %2475 = vmatpush2.msra.mxu0 0.0
    %2476 = vmatprep.subr.mxu0 0.0
    %2477 = vmatpush2.msra.mxu0 0.0
    %2478 = vmatprep.subr.mxu0 0.0
    %2479 = vmatpush2.msra.mxu0 0.0
    %2480 = vmatprep.subr.mxu0 0.0
    %2481 = vmatpush2.msra.mxu0 0.0
    %2482 = vmatprep.subr.mxu0 0.0
    %2483 = vmatpush2.msra.mxu0 0.0
    %2484 = vmatprep.mubr.f32.mxu0 0.0
    %2485 = vmatmul.mubr.f32.gmra.mxu0 %v2418
    %v2486 = vpop.f32.mrf.mxu0
    %v2487 = vadd.f32 %v1328, %v2486
    %v2488 = vpop.f32.mrf.mxu0
    %2489 = vdwg.mxu0
    %s2490 = scalar_lea.vmem [#allocation5], 20
    %2491 = vst [vmem:[%s2490] sm:$0xf] %v2487
    %v2492 = vsel %vm1407, %v2487, -inf
    %2493 = vmax.xlane.f32.xlu0 %v2492
    %v2494 = vpop.xlane.xlu0 %2493
    %vm2495 = vcmp.eq.f32.partialorder %v2487, %v2494
    %v2496 = vsel %vm2495, %v1138, 128.0
    %v2497 = vsel %vm1407, %v2496, inf
    %2498 = vmin.xlane.f32.xlu0 %v2497
    %v2499 = vpop.xlane.xlu0 %2498
    %vm2500 = vcmp.eq.f32.partialorder %v1138, %v2499
    %v2501 = vsel %vm2500, 1, 0
    %v2502 = vcvt.s32.f32 %v2501
    %s2503 = sld [smem:[#allocation2 + $0x5]]
    %p2504 = scmp.ne.s32.totalorder %s2503, 0
    %s2505 = scalar_select %p2504, 1, 0
    %s2506 = scvt.s32.f32 %s2505
    %s2507 = scalar_lea.vmem %s2, 20
    %v2508 = vld [vmem:[%s2507] sm:$0xf]
    %v2509 = vstv %s2506
    %v2510 = vmul.f32 %v2509, %v2508
    %s2511 = ssub.f32 1.0, %s2506
    %v2512 = vstv %s2511
    %v2513 = vmul.f32 %v2512, %v2502
    %v2514 = vadd.f32 %v2510, %v2513
    %2515 = vmatprep.subr.mxu0 0.0
    %2516 = vmatpush1.msra.mxu0 %v1121
    %2517 = vmatprep.subr.mxu0 0.0
    %2518 = vmatpush1.msra.mxu0 %v1120
    %2519 = vmatprep.subr.mxu0 0.0
    %2520 = vmatpush1.msra.mxu0 %v1119
    %2521 = vmatprep.subr.mxu0 0.0
    %2522 = vmatpush1.msra.mxu0 %v1118
    %2523 = vmatprep.subr.mxu0 0.0
    %2524 = vmatpush1.msra.mxu0 %v1117
    %2525 = vmatprep.subr.mxu0 0.0
    %2526 = vmatpush1.msra.mxu0 %v1116
    %2527 = vmatprep.subr.mxu0 0.0
    %2528 = vmatpush1.msra.mxu0 %v1115
    %2529 = vmatprep.subr.mxu0 0.0
    %2530 = vmatpush1.msra.mxu0 %v1114
    %2531 = vmatprep.subr.mxu0 0.0
    %2532 = vmatpush1.msra.mxu0 %v1113
    %2533 = vmatprep.subr.mxu0 0.0
    %2534 = vmatpush1.msra.mxu0 %v1112
    %2535 = vmatprep.subr.mxu0 0.0
    %2536 = vmatpush1.msra.mxu0 %v1111
    %2537 = vmatprep.subr.mxu0 0.0
    %2538 = vmatpush1.msra.mxu0 %v1110
    %2539 = vmatprep.subr.mxu0 0.0
    %2540 = vmatpush1.msra.mxu0 %v1109
    %2541 = vmatprep.subr.mxu0 0.0
    %2542 = vmatpush1.msra.mxu0 %v1108
    %2543 = vmatprep.subr.mxu0 0.0
    %2544 = vmatpush1.msra.mxu0 %v1107
    %2545 = vmatprep.subr.mxu0 0.0
    %2546 = vmatpush1.msra.mxu0 %v1106
    %2547 = vmatprep.subr.mxu0 0.0
    %2548 = vmatpush2.msra.mxu0 0.0
    %2549 = vmatprep.subr.mxu0 0.0
    %2550 = vmatpush2.msra.mxu0 0.0
    %2551 = vmatprep.subr.mxu0 0.0
    %2552 = vmatpush2.msra.mxu0 0.0
    %2553 = vmatprep.subr.mxu0 0.0
    %2554 = vmatpush2.msra.mxu0 0.0
    %2555 = vmatprep.subr.mxu0 0.0
    %2556 = vmatpush2.msra.mxu0 0.0
    %2557 = vmatprep.subr.mxu0 0.0
    %2558 = vmatpush2.msra.mxu0 0.0
    %2559 = vmatprep.subr.mxu0 0.0
    %2560 = vmatpush2.msra.mxu0 0.0
    %2561 = vmatprep.subr.mxu0 0.0
    %2562 = vmatpush2.msra.mxu0 0.0
    %2563 = vmatprep.subr.mxu0 0.0
    %2564 = vmatpush2.msra.mxu0 0.0
    %2565 = vmatprep.subr.mxu0 0.0
    %2566 = vmatpush2.msra.mxu0 0.0
    %2567 = vmatprep.subr.mxu0 0.0
    %2568 = vmatpush2.msra.mxu0 0.0
    %2569 = vmatprep.subr.mxu0 0.0
    %2570 = vmatpush2.msra.mxu0 0.0
    %2571 = vmatprep.subr.mxu0 0.0
    %2572 = vmatpush2.msra.mxu0 0.0
    %2573 = vmatprep.subr.mxu0 0.0
    %2574 = vmatpush2.msra.mxu0 0.0
    %2575 = vmatprep.subr.mxu0 0.0
    %2576 = vmatpush2.msra.mxu0 0.0
    %2577 = vmatprep.subr.mxu0 0.0
    %2578 = vmatpush2.msra.mxu0 0.0
    %2579 = vmatprep.mubr.f32.mxu0 0.0
    %2580 = vmatmul.mubr.f32.gmra.mxu0 %v2514
    %v2581 = vpop.f32.mrf.mxu0
    %v2582 = vadd.f32 0.0, %v2581
    %v2583 = vpop.f32.mrf.mxu0
    %2584 = vdwg.mxu0
    %2585 = vrot.lane.b32.xlu0 %v2414, 64
    %v2586 = vpop.permute.xlu0 %2585
    %v2588 = vsel %vm170, %v2582, %v2586
    %v2590 = vsel %vm1223, %v2588, 0
    %2592 = vmatprep.subr.mxu0 0.0
    %2593 = vmatpush1.msra.mxu0 0.0
    %2594 = vmatprep.subr.mxu0 0.0
    %2595 = vmatpush1.msra.mxu0 0.0
    %2596 = vmatprep.subr.mxu0 0.0
    %2597 = vmatpush1.msra.mxu0 0.0
    %2598 = vmatprep.subr.mxu0 0.0
    %2599 = vmatpush1.msra.mxu0 0.0
    %2600 = vmatprep.subr.mxu0 0.0
    %2601 = vmatpush1.msra.mxu0 0.0
    %2602 = vmatprep.subr.mxu0 0.0
    %2603 = vmatpush1.msra.mxu0 0.0
    %2604 = vmatprep.subr.mxu0 0.0
    %2605 = vmatpush1.msra.mxu0 0.0
    %2606 = vmatprep.subr.mxu0 0.0
    %2607 = vmatpush1.msra.mxu0 0.0
    %2608 = vmatprep.subr.mxu0 0.0
    %2609 = vmatpush1.msra.mxu0 %v1129
    %2610 = vmatprep.subr.mxu0 0.0
    %2611 = vmatpush1.msra.mxu0 %v1128
    %2612 = vmatprep.subr.mxu0 0.0
    %2613 = vmatpush1.msra.mxu0 %v1127
    %2614 = vmatprep.subr.mxu0 0.0
    %2615 = vmatpush1.msra.mxu0 %v1126
    %2616 = vmatprep.subr.mxu0 0.0
    %2617 = vmatpush1.msra.mxu0 %v1125
    %2618 = vmatprep.subr.mxu0 0.0
    %2619 = vmatpush1.msra.mxu0 %v1124
    %2620 = vmatprep.subr.mxu0 0.0
    %2621 = vmatpush1.msra.mxu0 %v1123
    %2622 = vmatprep.subr.mxu0 0.0
    %2623 = vmatpush1.msra.mxu0 %v1122
    %2624 = vmatprep.subr.mxu0 0.0
    %2625 = vmatpush2.msra.mxu0 0.0
    %2626 = vmatprep.subr.mxu0 0.0
    %2627 = vmatpush2.msra.mxu0 0.0
    %2628 = vmatprep.subr.mxu0 0.0
    %2629 = vmatpush2.msra.mxu0 0.0
    %2630 = vmatprep.subr.mxu0 0.0
    %2631 = vmatpush2.msra.mxu0 0.0
    %2632 = vmatprep.subr.mxu0 0.0
    %2633 = vmatpush2.msra.mxu0 0.0
    %2634 = vmatprep.subr.mxu0 0.0
    %2635 = vmatpush2.msra.mxu0 0.0
    %2636 = vmatprep.subr.mxu0 0.0
    %2637 = vmatpush2.msra.mxu0 0.0
    %2638 = vmatprep.subr.mxu0 0.0
    %2639 = vmatpush2.msra.mxu0 0.0
    %2640 = vmatprep.subr.mxu0 0.0
    %2641 = vmatpush2.msra.mxu0 0.0
    %2642 = vmatprep.subr.mxu0 0.0
    %2643 = vmatpush2.msra.mxu0 0.0
    %2644 = vmatprep.subr.mxu0 0.0
    %2645 = vmatpush2.msra.mxu0 0.0
    %2646 = vmatprep.subr.mxu0 0.0
    %2647 = vmatpush2.msra.mxu0 0.0
    %2648 = vmatprep.subr.mxu0 0.0
    %2649 = vmatpush2.msra.mxu0 0.0
    %2650 = vmatprep.subr.mxu0 0.0
    %2651 = vmatpush2.msra.mxu0 0.0
    %2652 = vmatprep.subr.mxu0 0.0
    %2653 = vmatpush2.msra.mxu0 0.0
    %2654 = vmatprep.subr.mxu0 0.0
    %2655 = vmatpush2.msra.mxu0 0.0
    %2656 = vmatprep.mubr.f32.mxu0 0.0
    %2657 = vmatmul.mubr.f32.gmra.mxu0 %v2590
    %v2658 = vpop.f32.mrf.mxu0
    %v2659 = vadd.f32 %v1221, %v2658
    %v2660 = vpop.f32.mrf.mxu0
    %2661 = vdwg.mxu0
    %v2662 = vxor.u32 %v2659, 2147483648
    %v2663 = vmul.f32 %v2662, 1.442695
    %v2664 = vpow.pop %v2663
    %v2665 = vadd.f32 %v2664, 1.0
    %v2666 = vrcp.pop %v2665
    %v2667 = vmul.f32 1.0, %v2666
    %v2668 = vtanh.pop %v2659
    %v2669 = vmul.f32 %v2667, %v2408
    %2671 = vrot.lane.b32.xlu0 %v2668, 64
    %v2672 = vpop.permute.xlu0 %2671
    %v2674 = vmul.f32 %v2667, %v2672
    %2676 = vrot.lane.b32.xlu0 %v2674, 32
    %v2677 = vpop.permute.xlu0 %2676
    %v2679 = vadd.f32 %v2669, %v2677
    %v2680 = vtanh.pop %v2679
    %2682 = vrot.lane.b32.xlu0 %v2680, 64
    %v2683 = vpop.permute.xlu0 %2682
    %v2685 = vmul.f32 %v2667, %v2683
    %2687 = vrot.lane.b32.xlu0 %v2685, 32
    %v2688 = vpop.permute.xlu0 %2687
    %v2689 = vsel %vm170, %v2688, 0
    %2691 = vmatprep.subr.mxu0 0.0
    %2692 = vmatpush1.msra.mxu0 0.0
    %2693 = vmatprep.subr.mxu0 0.0
    %2694 = vmatpush1.msra.mxu0 0.0
    %2695 = vmatprep.subr.mxu0 0.0
    %2696 = vmatpush1.msra.mxu0 0.0
    %2697 = vmatprep.subr.mxu0 0.0
    %2698 = vmatpush1.msra.mxu0 0.0
    %2699 = vmatprep.subr.mxu0 0.0
    %2700 = vmatpush1.msra.mxu0 0.0
    %2701 = vmatprep.subr.mxu0 0.0
    %2702 = vmatpush1.msra.mxu0 0.0
    %2703 = vmatprep.subr.mxu0 0.0
    %2704 = vmatpush1.msra.mxu0 0.0
    %2705 = vmatprep.subr.mxu0 0.0
    %2706 = vmatpush1.msra.mxu0 0.0
    %2707 = vmatprep.subr.mxu0 0.0
    %2708 = vmatpush1.msra.mxu0 0.0
    %2709 = vmatprep.subr.mxu0 0.0
    %2710 = vmatpush1.msra.mxu0 0.0
    %2711 = vmatprep.subr.mxu0 0.0
    %2712 = vmatpush1.msra.mxu0 0.0
    %2713 = vmatprep.subr.mxu0 0.0
    %2714 = vmatpush1.msra.mxu0 0.0
    %2715 = vmatprep.subr.mxu0 0.0
    %2716 = vmatpush1.msra.mxu0 %v1134
    %2717 = vmatprep.subr.mxu0 0.0
    %2718 = vmatpush1.msra.mxu0 %v1133
    %2719 = vmatprep.subr.mxu0 0.0
    %2720 = vmatpush1.msra.mxu0 %v1132
    %2721 = vmatprep.subr.mxu0 0.0
    %2722 = vmatpush1.msra.mxu0 %v1131
    %2723 = vmatprep.subr.mxu0 0.0
    %2724 = vmatpush2.msra.mxu0 0.0
    %2725 = vmatprep.subr.mxu0 0.0
    %2726 = vmatpush2.msra.mxu0 0.0
    %2727 = vmatprep.subr.mxu0 0.0
    %2728 = vmatpush2.msra.mxu0 0.0
    %2729 = vmatprep.subr.mxu0 0.0
    %2730 = vmatpush2.msra.mxu0 0.0
    %2731 = vmatprep.subr.mxu0 0.0
    %2732 = vmatpush2.msra.mxu0 0.0
    %2733 = vmatprep.subr.mxu0 0.0
    %2734 = vmatpush2.msra.mxu0 0.0
    %2735 = vmatprep.subr.mxu0 0.0
    %2736 = vmatpush2.msra.mxu0 0.0
    %2737 = vmatprep.subr.mxu0 0.0
    %2738 = vmatpush2.msra.mxu0 0.0
    %2739 = vmatprep.subr.mxu0 0.0
    %2740 = vmatpush2.msra.mxu0 0.0
    %2741 = vmatprep.subr.mxu0 0.0
    %2742 = vmatpush2.msra.mxu0 0.0
    %2743 = vmatprep.subr.mxu0 0.0
    %2744 = vmatpush2.msra.mxu0 0.0
    %2745 = vmatprep.subr.mxu0 0.0
    %2746 = vmatpush2.msra.mxu0 0.0
    %2747 = vmatprep.subr.mxu0 0.0
    %2748 = vmatpush2.msra.mxu0 0.0
    %2749 = vmatprep.subr.mxu0 0.0
    %2750 = vmatpush2.msra.mxu0 0.0
    %2751 = vmatprep.subr.mxu0 0.0
    %2752 = vmatpush2.msra.mxu0 0.0
    %2753 = vmatprep.subr.mxu0 0.0
    %2754 = vmatpush2.msra.mxu0 0.0
    %2755 = vmatprep.mubr.f32.mxu0 0.0
    %2756 = vmatmul.mubr.f32.gmra.mxu0 %v2689
    %v2757 = vpop.f32.mrf.mxu0
    %v2758 = vadd.f32 %v1328, %v2757
    %v2759 = vpop.f32.mrf.mxu0
    %2760 = vdwg.mxu0
    %s2761 = scalar_lea.vmem [#allocation5], 24
    %2762 = vst [vmem:[%s2761] sm:$0xf] %v2758
    %v2763 = vsel %vm1407, %v2758, -inf
    %2764 = vmax.xlane.f32.xlu0 %v2763
    %v2765 = vpop.xlane.xlu0 %2764
    %vm2766 = vcmp.eq.f32.partialorder %v2758, %v2765
    %v2767 = vsel %vm2766, %v1138, 128.0
    %v2768 = vsel %vm1407, %v2767, inf
    %2769 = vmin.xlane.f32.xlu0 %v2768
    %v2770 = vpop.xlane.xlu0 %2769
    %vm2771 = vcmp.eq.f32.partialorder %v1138, %v2770
    %v2772 = vsel %vm2771, 1, 0
    %v2773 = vcvt.s32.f32 %v2772
    %s2774 = sld [smem:[#allocation2 + $0x6]]
    %p2775 = scmp.ne.s32.totalorder %s2774, 0
    %s2776 = scalar_select %p2775, 1, 0
    %s2777 = scvt.s32.f32 %s2776
    %s2778 = scalar_lea.vmem %s2, 24
    %v2779 = vld [vmem:[%s2778] sm:$0xf]
    %v2780 = vstv %s2777
    %v2781 = vmul.f32 %v2780, %v2779
    %s2782 = ssub.f32 1.0, %s2777
    %v2783 = vstv %s2782
    %v2784 = vmul.f32 %v2783, %v2773
    %v2785 = vadd.f32 %v2781, %v2784
    %2786 = vmatprep.subr.mxu0 0.0
    %2787 = vmatpush1.msra.mxu0 %v1121
    %2788 = vmatprep.subr.mxu0 0.0
    %2789 = vmatpush1.msra.mxu0 %v1120
    %2790 = vmatprep.subr.mxu0 0.0
    %2791 = vmatpush1.msra.mxu0 %v1119
    %2792 = vmatprep.subr.mxu0 0.0
    %2793 = vmatpush1.msra.mxu0 %v1118
    %2794 = vmatprep.subr.mxu0 0.0
    %2795 = vmatpush1.msra.mxu0 %v1117
    %2796 = vmatprep.subr.mxu0 0.0
    %2797 = vmatpush1.msra.mxu0 %v1116
    %2798 = vmatprep.subr.mxu0 0.0
    %2799 = vmatpush1.msra.mxu0 %v1115
    %2800 = vmatprep.subr.mxu0 0.0
    %2801 = vmatpush1.msra.mxu0 %v1114
    %2802 = vmatprep.subr.mxu0 0.0
    %2803 = vmatpush1.msra.mxu0 %v1113
    %2804 = vmatprep.subr.mxu0 0.0
    %2805 = vmatpush1.msra.mxu0 %v1112
    %2806 = vmatprep.subr.mxu0 0.0
    %2807 = vmatpush1.msra.mxu0 %v1111
    %2808 = vmatprep.subr.mxu0 0.0
    %2809 = vmatpush1.msra.mxu0 %v1110
    %2810 = vmatprep.subr.mxu0 0.0
    %2811 = vmatpush1.msra.mxu0 %v1109
    %2812 = vmatprep.subr.mxu0 0.0
    %2813 = vmatpush1.msra.mxu0 %v1108
    %2814 = vmatprep.subr.mxu0 0.0
    %2815 = vmatpush1.msra.mxu0 %v1107
    %2816 = vmatprep.subr.mxu0 0.0
    %2817 = vmatpush1.msra.mxu0 %v1106
    %2818 = vmatprep.subr.mxu0 0.0
    %2819 = vmatpush2.msra.mxu0 0.0
    %2820 = vmatprep.subr.mxu0 0.0
    %2821 = vmatpush2.msra.mxu0 0.0
    %2822 = vmatprep.subr.mxu0 0.0
    %2823 = vmatpush2.msra.mxu0 0.0
    %2824 = vmatprep.subr.mxu0 0.0
    %2825 = vmatpush2.msra.mxu0 0.0
    %2826 = vmatprep.subr.mxu0 0.0
    %2827 = vmatpush2.msra.mxu0 0.0
    %2828 = vmatprep.subr.mxu0 0.0
    %2829 = vmatpush2.msra.mxu0 0.0
    %2830 = vmatprep.subr.mxu0 0.0
    %2831 = vmatpush2.msra.mxu0 0.0
    %2832 = vmatprep.subr.mxu0 0.0
    %2833 = vmatpush2.msra.mxu0 0.0
    %2834 = vmatprep.subr.mxu0 0.0
    %2835 = vmatpush2.msra.mxu0 0.0
    %2836 = vmatprep.subr.mxu0 0.0
    %2837 = vmatpush2.msra.mxu0 0.0
    %2838 = vmatprep.subr.mxu0 0.0
    %2839 = vmatpush2.msra.mxu0 0.0
    %2840 = vmatprep.subr.mxu0 0.0
    %2841 = vmatpush2.msra.mxu0 0.0
    %2842 = vmatprep.subr.mxu0 0.0
    %2843 = vmatpush2.msra.mxu0 0.0
    %2844 = vmatprep.subr.mxu0 0.0
    %2845 = vmatpush2.msra.mxu0 0.0
    %2846 = vmatprep.subr.mxu0 0.0
    %2847 = vmatpush2.msra.mxu0 0.0
    %2848 = vmatprep.subr.mxu0 0.0
    %2849 = vmatpush2.msra.mxu0 0.0
    %2850 = vmatprep.mubr.f32.mxu0 0.0
    %2851 = vmatmul.mubr.f32.gmra.mxu0 %v2785
    %v2852 = vpop.f32.mrf.mxu0
    %v2853 = vadd.f32 0.0, %v2852
    %v2854 = vpop.f32.mrf.mxu0
    %2855 = vdwg.mxu0
    %2856 = vrot.lane.b32.xlu0 %v2685, 64
    %v2857 = vpop.permute.xlu0 %2856
    %v2859 = vsel %vm170, %v2853, %v2857
    %v2861 = vsel %vm1223, %v2859, 0
    %2863 = vmatprep.subr.mxu0 0.0
    %2864 = vmatpush1.msra.mxu0 0.0
    %2865 = vmatprep.subr.mxu0 0.0
    %2866 = vmatpush1.msra.mxu0 0.0
    %2867 = vmatprep.subr.mxu0 0.0
    %2868 = vmatpush1.msra.mxu0 0.0
    %2869 = vmatprep.subr.mxu0 0.0
    %2870 = vmatpush1.msra.mxu0 0.0
    %2871 = vmatprep.subr.mxu0 0.0
    %2872 = vmatpush1.msra.mxu0 0.0
    %2873 = vmatprep.subr.mxu0 0.0
    %2874 = vmatpush1.msra.mxu0 0.0
    %2875 = vmatprep.subr.mxu0 0.0
    %2876 = vmatpush1.msra.mxu0 0.0
    %2877 = vmatprep.subr.mxu0 0.0
    %2878 = vmatpush1.msra.mxu0 0.0
    %2879 = vmatprep.subr.mxu0 0.0
    %2880 = vmatpush1.msra.mxu0 %v1129
    %2881 = vmatprep.subr.mxu0 0.0
    %2882 = vmatpush1.msra.mxu0 %v1128
    %2883 = vmatprep.subr.mxu0 0.0
    %2884 = vmatpush1.msra.mxu0 %v1127
    %2885 = vmatprep.subr.mxu0 0.0
    %2886 = vmatpush1.msra.mxu0 %v1126
    %2887 = vmatprep.subr.mxu0 0.0
    %2888 = vmatpush1.msra.mxu0 %v1125
    %2889 = vmatprep.subr.mxu0 0.0
    %2890 = vmatpush1.msra.mxu0 %v1124
    %2891 = vmatprep.subr.mxu0 0.0
    %2892 = vmatpush1.msra.mxu0 %v1123
    %2893 = vmatprep.subr.mxu0 0.0
    %2894 = vmatpush1.msra.mxu0 %v1122
    %2895 = vmatprep.subr.mxu0 0.0
    %2896 = vmatpush2.msra.mxu0 0.0
    %2897 = vmatprep.subr.mxu0 0.0
    %2898 = vmatpush2.msra.mxu0 0.0
    %2899 = vmatprep.subr.mxu0 0.0
    %2900 = vmatpush2.msra.mxu0 0.0
    %2901 = vmatprep.subr.mxu0 0.0
    %2902 = vmatpush2.msra.mxu0 0.0
    %2903 = vmatprep.subr.mxu0 0.0
    %2904 = vmatpush2.msra.mxu0 0.0
    %2905 = vmatprep.subr.mxu0 0.0
    %2906 = vmatpush2.msra.mxu0 0.0
    %2907 = vmatprep.subr.mxu0 0.0
    %2908 = vmatpush2.msra.mxu0 0.0
    %2909 = vmatprep.subr.mxu0 0.0
    %2910 = vmatpush2.msra.mxu0 0.0
    %2911 = vmatprep.subr.mxu0 0.0
    %2912 = vmatpush2.msra.mxu0 0.0
    %2913 = vmatprep.subr.mxu0 0.0
    %2914 = vmatpush2.msra.mxu0 0.0
    %2915 = vmatprep.subr.mxu0 0.0
    %2916 = vmatpush2.msra.mxu0 0.0
    %2917 = vmatprep.subr.mxu0 0.0
    %2918 = vmatpush2.msra.mxu0 0.0
    %2919 = vmatprep.subr.mxu0 0.0
    %2920 = vmatpush2.msra.mxu0 0.0
    %2921 = vmatprep.subr.mxu0 0.0
    %2922 = vmatpush2.msra.mxu0 0.0
    %2923 = vmatprep.subr.mxu0 0.0
    %2924 = vmatpush2.msra.mxu0 0.0
    %2925 = vmatprep.subr.mxu0 0.0
    %2926 = vmatpush2.msra.mxu0 0.0
    %2927 = vmatprep.mubr.f32.mxu0 0.0
    %2928 = vmatmul.mubr.f32.gmra.mxu0 %v2861
    %v2929 = vpop.f32.mrf.mxu0
    %v2930 = vadd.f32 %v1221, %v2929
    %v2931 = vpop.f32.mrf.mxu0
    %2932 = vdwg.mxu0
    %v2933 = vxor.u32 %v2930, 2147483648
    %v2934 = vmul.f32 %v2933, 1.442695
    %v2935 = vpow.pop %v2934
    %v2936 = vadd.f32 %v2935, 1.0
    %v2937 = vrcp.pop %v2936
    %v2938 = vmul.f32 1.0, %v2937
    %v2939 = vtanh.pop %v2930
    %v2940 = vmul.f32 %v2938, %v2679
    %2942 = vrot.lane.b32.xlu0 %v2939, 64
    %v2943 = vpop.permute.xlu0 %2942
    %v2945 = vmul.f32 %v2938, %v2943
    %2947 = vrot.lane.b32.xlu0 %v2945, 32
    %v2948 = vpop.permute.xlu0 %2947
    %v2950 = vadd.f32 %v2940, %v2948
    %v2951 = vtanh.pop %v2950
    %2953 = vrot.lane.b32.xlu0 %v2951, 64
    %v2954 = vpop.permute.xlu0 %2953
    %v2956 = vmul.f32 %v2938, %v2954
    %2958 = vrot.lane.b32.xlu0 %v2956, 32
    %v2959 = vpop.permute.xlu0 %2958
    %v2960 = vsel %vm170, %v2959, 0
    %2962 = vmatprep.subr.mxu0 0.0
    %2963 = vmatpush1.msra.mxu0 0.0
    %2964 = vmatprep.subr.mxu0 0.0
    %2965 = vmatpush1.msra.mxu0 0.0
    %2966 = vmatprep.subr.mxu0 0.0
    %2967 = vmatpush1.msra.mxu0 0.0
    %2968 = vmatprep.subr.mxu0 0.0
    %2969 = vmatpush1.msra.mxu0 0.0
    %2970 = vmatprep.subr.mxu0 0.0
    %2971 = vmatpush1.msra.mxu0 0.0
    %2972 = vmatprep.subr.mxu0 0.0
    %2973 = vmatpush1.msra.mxu0 0.0
    %2974 = vmatprep.subr.mxu0 0.0
    %2975 = vmatpush1.msra.mxu0 0.0
    %2976 = vmatprep.subr.mxu0 0.0
    %2977 = vmatpush1.msra.mxu0 0.0
    %2978 = vmatprep.subr.mxu0 0.0
    %2979 = vmatpush1.msra.mxu0 0.0
    %2980 = vmatprep.subr.mxu0 0.0
    %2981 = vmatpush1.msra.mxu0 0.0
    %2982 = vmatprep.subr.mxu0 0.0
    %2983 = vmatpush1.msra.mxu0 0.0
    %2984 = vmatprep.subr.mxu0 0.0
    %2985 = vmatpush1.msra.mxu0 0.0
    %2986 = vmatprep.subr.mxu0 0.0
    %2987 = vmatpush1.msra.mxu0 %v1134
    %2988 = vmatprep.subr.mxu0 0.0
    %2989 = vmatpush1.msra.mxu0 %v1133
    %2990 = vmatprep.subr.mxu0 0.0
    %2991 = vmatpush1.msra.mxu0 %v1132
    %2992 = vmatprep.subr.mxu0 0.0
    %2993 = vmatpush1.msra.mxu0 %v1131
    %2994 = vmatprep.subr.mxu0 0.0
    %2995 = vmatpush2.msra.mxu0 0.0
    %2996 = vmatprep.subr.mxu0 0.0
    %2997 = vmatpush2.msra.mxu0 0.0
    %2998 = vmatprep.subr.mxu0 0.0
    %2999 = vmatpush2.msra.mxu0 0.0
    %3000 = vmatprep.subr.mxu0 0.0
    %3001 = vmatpush2.msra.mxu0 0.0
    %3002 = vmatprep.subr.mxu0 0.0
    %3003 = vmatpush2.msra.mxu0 0.0
    %3004 = vmatprep.subr.mxu0 0.0
    %3005 = vmatpush2.msra.mxu0 0.0
    %3006 = vmatprep.subr.mxu0 0.0
    %3007 = vmatpush2.msra.mxu0 0.0
    %3008 = vmatprep.subr.mxu0 0.0
    %3009 = vmatpush2.msra.mxu0 0.0
    %3010 = vmatprep.subr.mxu0 0.0
    %3011 = vmatpush2.msra.mxu0 0.0
    %3012 = vmatprep.subr.mxu0 0.0
    %3013 = vmatpush2.msra.mxu0 0.0
    %3014 = vmatprep.subr.mxu0 0.0
    %3015 = vmatpush2.msra.mxu0 0.0
    %3016 = vmatprep.subr.mxu0 0.0
    %3017 = vmatpush2.msra.mxu0 0.0
    %3018 = vmatprep.subr.mxu0 0.0
    %3019 = vmatpush2.msra.mxu0 0.0
    %3020 = vmatprep.subr.mxu0 0.0
    %3021 = vmatpush2.msra.mxu0 0.0
    %3022 = vmatprep.subr.mxu0 0.0
    %3023 = vmatpush2.msra.mxu0 0.0
    %3024 = vmatprep.subr.mxu0 0.0
    %3025 = vmatpush2.msra.mxu0 0.0
    %3026 = vmatprep.mubr.f32.mxu0 0.0
    %3027 = vmatmul.mubr.f32.gmra.mxu0 %v2960
    %v3028 = vpop.f32.mrf.mxu0
    %v3029 = vadd.f32 %v1328, %v3028
    %v3030 = vpop.f32.mrf.mxu0
    %3031 = vdwg.mxu0
    %s3032 = scalar_lea.vmem [#allocation5], 28
    %3033 = vst [vmem:[%s3032] sm:$0xf] %v3029
    // Predicated region
    $region54: #{seq2seq_forward.1} parent=1 // pred_check
      _
    $region55: #{seq2seq_forward.1} parent=1 // pred_check_branch
      %3035 = sbr.rel (0) target = $region57
    $region56: #{seq2seq_forward.1} parent=1 // pred_region
      %s3037 = ssub.s32 512, 512
      %3038 = vsyncadd [#allocation3], %s3037
      %s3039 = sshll.u32 [#allocation5], 4
      %s3040 = int_to_ptr.vmem [resolvable:$true] %s3039
      %3045 = dma.vmem_to_hbm [thread:$0]  %s3040, 512, %s12, [#allocation3], 64, 64, 4
    $region57: #{seq2seq_forward.1} parent=1 // pred_fallthru
      _
    // Predicated region
    $region58: #{seq2seq_forward.1} parent=1 // pred_check
      _
    $region59: #{seq2seq_forward.1} parent=1 // pred_check_branch
      %3047 = sbr.rel (0) target = $region61
    $region60: #{seq2seq_forward.1} parent=1 // pred_region
      %3048 = dma.done [#allocation3], 512
    $region61: #{seq2seq_forward.1} parent=1 // pred_fallthru
      _
    %3049 = vsyncpa [#allocation3], 1
    %3050 = vsyncpa [#allocation4], 1

</llo_original>
